<compile_context>
chip_gen: v7x
topology: tpu7x:2x2x1
jax: 0.10.0
libtpu: 0.0.40
codegen_flags: <defaults>
</compile_context>

<pallas_src>
import numpy as np
import jax
import jax.numpy as jnp
from jax.experimental import pallas as pl
from jax.experimental.pallas import tpu as pltpu

# bf16 into the MXU with f32 accumulation.  Set to jnp.float32 for bit-closer
# parity with the f32 PyTorch reference (at ~2x the HBM traffic).
MXU_DTYPE = jnp.bfloat16
# tanh GELU (EUP) vs exact erf GELU (VPU polynomial, PyTorch default).
GELU_APPROX = True


# ----------------------------------------------------------------------------
# small helpers
# ----------------------------------------------------------------------------
def _round_up(v, m):
    return (v + m - 1) // m * m


def _largest_tile(dim, unit, cap):
    """Largest multiple of `unit` that divides `dim` and is <= cap.
    Caller guarantees dim % unit == 0."""
    cap = min(cap, dim)
    t = (cap // unit) * unit
    while t > unit and dim % t != 0:
        t -= unit
    return max(t, unit)


# ----------------------------------------------------------------------------
# Pallas tiled matmul: y = act?(x @ w [+ b] [+ add]), f32 accumulation
# ----------------------------------------------------------------------------
def _make_kernel_k1(has_bias, has_add, act):
    """Single-K-step kernel: no accumulator scratch, straight dot + epilogue."""
    def kernel(*refs):
        it = iter(refs)
        x_ref = next(it)
        w_ref = next(it)
        b_ref = next(it) if has_bias else None
        s_ref = next(it) if has_add else None
        o_ref = next(it)

        y = jnp.dot(x_ref[...], w_ref[...], preferred_element_type=jnp.float32)
        if has_bias:
            y = y + b_ref[...]
        if has_add:
            y = y + s_ref[...].astype(jnp.float32)
        if act:
            y = jax.nn.gelu(y, approximate=GELU_APPROX)
        o_ref[...] = y.astype(o_ref.dtype)
    return kernel


def _make_kernel_acc(has_bias, has_add, act):
    """Multi-K-step kernel: f32 accumulator scratch, pl.when init/finalize."""
    def kernel(*refs):
        it = iter(refs)
        x_ref = next(it)
        w_ref = next(it)
        b_ref = next(it) if has_bias else None
        s_ref = next(it) if has_add else None
        o_ref = next(it)
        acc_ref = next(it)

        k = pl.program_id(2)

        @pl.when(k == 0)
        def _():
            acc_ref[...] = jnp.zeros_like(acc_ref)

        acc_ref[...] += jnp.dot(x_ref[...], w_ref[...],
                                preferred_element_type=jnp.float32)

        @pl.when(k == pl.num_programs(2) - 1)
        def _():
            y = acc_ref[...]
            if has_bias:
                y = y + b_ref[...]
            if has_add:
                y = y + s_ref[...].astype(jnp.float32)
            if act:
                y = jax.nn.gelu(y, approximate=GELU_APPROX)
            o_ref[...] = y.astype(o_ref.dtype)
    return kernel


def pallas_matmul(x, w, b=None, add=None, act=False, out_dtype=MXU_DTYPE,
                  *, tm, tn, tk):
    """y = act?(x @ w [+ b] [+ add]).  Caller guarantees tm|M, tn|N, tk|K and
    that operands are already in their final (pre-padded / pre-cast) layout."""
    M, K = x.shape
    Kw, N = w.shape
    assert K == Kw
    assert M % tm == 0 and N % tn == 0 and K % tk == 0
    nm, nn, nk = M // tm, N // tn, K // tk
    has_bias = b is not None
    has_add = add is not None

    args = [x, w]
    if nk == 1:
        in_specs = [pl.BlockSpec((tm, tk), lambda i, j: (i, 0)),
                    pl.BlockSpec((tk, tn), lambda i, j: (0, j))]
        if has_bias:
            args.append(b)
            in_specs.append(pl.BlockSpec((1, tn), lambda i, j: (0, j)))
        if has_add:
            args.append(add)
            in_specs.append(pl.BlockSpec((tm, tn), lambda i, j: (i, j)))
        return pl.pallas_call(
            _make_kernel_k1(has_bias, has_add, act),
            grid=(nm, nn),
            in_specs=in_specs,
            out_specs=pl.BlockSpec((tm, tn), lambda i, j: (i, j)),
            out_shape=jax.ShapeDtypeStruct((M, N), out_dtype),
            compiler_params=pltpu.CompilerParams(
                dimension_semantics=("parallel", "parallel")),
        )(*args)

    in_specs = [pl.BlockSpec((tm, tk), lambda i, j, k: (i, k)),
                pl.BlockSpec((tk, tn), lambda i, j, k: (k, j))]
    if has_bias:
        args.append(b)
        in_specs.append(pl.BlockSpec((1, tn), lambda i, j, k: (0, j)))
    if has_add:
        args.append(add)
        in_specs.append(pl.BlockSpec((tm, tn), lambda i, j, k: (i, j)))
    return pl.pallas_call(
        _make_kernel_acc(has_bias, has_add, act),
        grid=(nm, nn, nk),
        in_specs=in_specs,
        out_specs=pl.BlockSpec((tm, tn), lambda i, j, k: (i, j)),
        out_shape=jax.ShapeDtypeStruct((M, N), out_dtype),
        scratch_shapes=[pltpu.VMEM((tm, tn), jnp.float32)],
        compiler_params=pltpu.CompilerParams(
            dimension_semantics=("parallel", "parallel", "arbitrary")),
    )(*args)


def conv_matmul(x, w, b, add=None, act=False, out_dtype=MXU_DTYPE, tm_max=1024):
    """1x1 conv on a channels-last row slab x:(M, K).  K and N are single full
    blocks; tm divides M (no pad/slice of the big slab in the common case)."""
    M0 = x.shape[0]
    Mp = _round_up(M0, 16)
    if Mp != M0:
        # TODO(synk): rare remainder path (B*H*W not 16-aligned) pads the slab.
        x = jnp.pad(x, ((0, Mp - M0), (0, 0)))
        if add is not None:
            add = jnp.pad(add, ((0, Mp - M0), (0, 0)))
    K = x.shape[1]
    N = w.shape[1]
    tm = _largest_tile(Mp, 16, tm_max)
    out = pallas_matmul(x, w, b, add=add, act=act, out_dtype=out_dtype,
                        tm=tm, tn=N, tk=K)
    return out[:M0] if Mp != M0 else out


def spec_matmul(x, w, b, act, tn_max=512, tk_max=2048):
    """Spectral-MLP dense layer on a tiny-M (16-row) slab, big pre-padded bf16
    weight.  Large tk/tn stream >=1-2 MiB of weight per grid step; tn is capped
    at Np//2 when possible so >=2 N blocks feed both v7x TensorCores."""
    Mp, Kp = x.shape
    Np = w.shape[1]
    tk = _largest_tile(Kp, 128, tk_max)
    cap_n = Np if Np <= 128 else min(tn_max, max(128, Np // 2))
    tn = _largest_tile(Np, 128, cap_n)
    return pallas_matmul(x, w, b, act=act, out_dtype=MXU_DTYPE,
                         tm=Mp, tn=tn, tk=tk)


# ----------------------------------------------------------------------------
# Spherical-harmonics transform (equiangular grid, 'ortho' norm) -- JAX glue
# ----------------------------------------------------------------------------
def _clenshaw_curtis(nlat):
    N = nlat - 1
    theta = np.pi * np.arange(nlat) / N
    x = np.cos(theta)
    w = np.zeros(nlat)
    for i in range(nlat):
        s = 0.0
        for k in range(1, N // 2 + 1):
            bk = 1.0 if 2 * k == N else 2.0
            s += bk * np.cos(2 * k * theta[i]) / (4 * k * k - 1)
        w[i] = (2.0 / N) * (1.0 - s)
    w[0] *= 0.5
    w[-1] *= 0.5
    return x, w


def _precompute_legendre(mmax, lmax, x):
    """Orthonormal associated Legendre P̄_l^m(x), shape (mmax, lmax, nlat)."""
    nlat = x.shape[0]
    P = np.zeros((mmax, lmax, nlat), dtype=np.float64)
    sint = np.sqrt(np.clip(1.0 - x * x, 0.0, None))
    pmm = np.full(nlat, np.sqrt(1.0 / (4.0 * np.pi)))
    for m in range(mmax):
        if m > 0:
            pmm = pmm * sint * np.sqrt((2.0 * m + 1.0) / (2.0 * m))
        if m >= lmax:
            continue
        P[m, m] = pmm
        if m + 1 < lmax:
            P[m, m + 1] = np.sqrt(2.0 * m + 3.0) * x * pmm
        for l in range(m + 2, lmax):
            a = np.sqrt((4.0 * l * l - 1.0) / (l * l - m * m))
            bc = np.sqrt(((l - 1.0) ** 2 - m * m) / (4.0 * (l - 1.0) ** 2 - 1.0))
            P[m, l] = a * (x * P[m, l - 1] - bc * P[m, l - 2])
    return P


def precompute_sht_mats(H, W, modes):
    m0, m1 = modes
    x, wq = _clenshaw_curtis(H)
    pct_fwd = _precompute_legendre(m1, m0, x)          # (m1, m0, H) forward
    pct_inv = _precompute_legendre(W // 2 + 1, H, x)   # (W//2+1, H, H) inverse
    return (jnp.asarray(pct_fwd, jnp.float32),
            jnp.asarray(wq, jnp.float32),
            jnp.asarray(pct_inv, jnp.float32))


def sht_channels_last(x_bhwc, pct_fwd, wq, mmax):
    # (B, H, W, C) real -> (B, C, lmax, mmax) complex
    xf = (2.0 * np.pi) * jnp.fft.rfft(x_bhwc, axis=2, norm="forward")
    xf = xf[:, :, :mmax, :]                           # (B, H, mmax, C)
    Wm = pct_fwd * wq[None, None, :]                  # (mmax, lmax, H)
    return jnp.einsum('bjmc,mlj->bclm', xf, Wm)


def isht_channels_last(c, pct_inv, nlon):
    # (B, C, lmax, mmax) complex -> (B, H, W, C) real (channels-last directly)
    g = jnp.einsum('bclm,mlj->bjmc', c, pct_inv)
    return jnp.fft.irfft(g, n=nlon, axis=2, norm="forward")


# ----------------------------------------------------------------------------
# SpectralConv3d / SFNOBlock3d / SFNO3d forward (channels-last rows)
# ----------------------------------------------------------------------------
def spectral_conv_forward(x_rows, shape, spec_layers, modes, sht_mats):
    pct_fwd, wq, pct_inv = sht_mats
    B, H, W, C = shape
    m0, m1 = modes

    x_bhwc = x_rows.reshape(B, H, W, C).astype(jnp.float32)
    xhat = sht_channels_last(x_bhwc, pct_fwd, wq, m1)            # (B,C,m0,m1) cplx

    nmx, nmy = min(H, m0), min(W // 2 + 1, m1)
    xhat_u = xhat[:, :, :nmx, :nmy]
    if nmx < m0 or nmy < m1:
        xhat_u = (jnp.zeros((B, C, m0, m1), jnp.complex64)
                  .at[:, :, :nmx, :nmy].set(xhat_u))

    # contiguous real||imag packing; spectral weights were row/col permuted at
    # prep time so this matches torch.stack((real, imag), -1).reshape(B, -1).
    v = jnp.concatenate([jnp.real(xhat_u).reshape(B, -1),
                         jnp.imag(xhat_u).reshape(B, -1)], axis=1)
    d_io = v.shape[1]                                            # 2*C*m0*m1

    Kp0 = spec_layers[0][0].shape[0]                             # padded K of layer 0
    Mp = max(16, _round_up(B, 16))
    h = (jnp.zeros((Mp, Kp0), MXU_DTYPE)
         .at[:B, :d_io].set(v.astype(MXU_DTYPE)))

    for wl, bl in spec_layers[:-1]:
        h = spec_matmul(h, wl, bl, act=True)                     # Linear + GELU
    wl, _ = spec_layers[-1]
    h = spec_matmul(h, wl, None, act=False)                      # final, bias=False

    out = h[:B, :d_io].astype(jnp.float32).reshape(B, 2, C, m0, m1)
    out_c = (out[:, 0] + 1j * out[:, 1]).astype(jnp.complex64)

    # zero_padding_fft
    full = (jnp.zeros((B, C, H, W // 2 + 1), jnp.complex64)
            .at[:, :, :nmx, :nmy].set(out_c[:, :, :nmx, :nmy]))
    y = isht_channels_last(full, pct_inv, W)                     # (B,H,W,C) f32
    return y.reshape(B * H * W, C).astype(MXU_DTYPE)             # bf16 residual


def sfno3d_forward(prep, x_nchw, modes, width, out_channels, sht_mats):
    B, Cin, H, W = x_nchw.shape
    M = B * H * W

    # Single entry transpose NCHW -> NHWC rows; channels-last from here on.
    rows = jnp.transpose(x_nchw, (0, 2, 3, 1)).reshape(M, Cin).astype(MXU_DTYPE)
    wl, bl = prep['lifting']
    if wl.shape[0] != Cin:                       # tiny K pad of the lifting input
        rows = jnp.pad(rows, ((0, 0), (0, wl.shape[0] - Cin)))
    rows = conv_matmul(rows, wl, bl)             # lifting 1x1 conv -> bf16 (M,width)

    for blk in prep['blocks']:
        spec_rows = spectral_conv_forward(rows, (B, H, W, width),
                                          blk['spec'], modes, sht_mats)
        wb, bb = blk['bypass']
        # gelu(spectral + bypass) fused into one Pallas matmul, bf16 out
        rows = conv_matmul(rows, wb, bb, add=spec_rows, act=True)

    wp, bp = prep['projection']
    out_rows = conv_matmul(rows, wp, bp, out_dtype=jnp.float32)  # f32 final
    out_rows = out_rows[:, :out_channels]

    # Single exit transpose back to NCHW.
    return jnp.transpose(out_rows.reshape(B, H, W, out_channels), (0, 3, 1, 2))


# ----------------------------------------------------------------------------
# Parameter init (PyTorch-default-style uniform) + one-time prep (pad/cast)
# ----------------------------------------------------------------------------
def _linear_init(key, fan_in, fan_out, bias=True):
    k1, k2 = jax.random.split(key)
    bound = 1.0 / np.sqrt(fan_in)
    w = jax.random.uniform(k1, (fan_in, fan_out), jnp.float32, -bound, bound)
    b = (jax.random.uniform(k2, (fan_out,), jnp.float32, -bound, bound)
         if bias else None)
    return w, b


def init_params(key, in_channels, out_channels, modes, width, n_blocks,
                spectral_hidden_layers, spectral_hidden_width):
    m0, m1 = modes
    d_in = 2 * width * m0 * m1
    d_hid = spectral_hidden_width * width * m0 * m1
    d_out = 2 * width * m0 * m1

    keys = jax.random.split(key, 2 + n_blocks * (spectral_hidden_layers + 1))
    ki = iter(range(len(keys)))

    params = {'lifting': _linear_init(keys[next(ki)], in_channels, width),
              'blocks': [],
              'projection': None}
    for _ in range(n_blocks):
        spec = [_linear_init(keys[next(ki)], d_in, d_hid)]
        for _ in range(spectral_hidden_layers - 2):
            spec.append(_linear_init(keys[next(ki)], d_hid, d_hid))
        spec.append(_linear_init(keys[next(ki)], d_hid, d_out, bias=False))
        bypass = _linear_init(keys[next(ki)], width, width)
        params['blocks'].append({'spec': spec, 'bypass': bypass})
    params['projection'] = _linear_init(keys[next(ki)], width, out_channels)
    return params


def _pack_perm(P):
    """Map contiguous real||imag index -> PyTorch interleaved (real,imag) index."""
    q = np.arange(2 * P)
    return 2 * (q % P) + (q // P)


def prepare_params(params, modes, width):
    """Pad + cast every weight to bf16 tile-aligned layout ONCE; permute the
    first/last spectral weights to the contiguous real||imag packing."""
    assert width % 8 == 0, "width must be a multiple of 8 (sublane alignment)"
    m0, m1 = modes
    perm = _pack_perm(width * m0 * m1)

    def prep_linear(w, b, pad_k=8, pad_n=8):
        K, N = w.shape
        Kp, Np = _round_up(K, pad_k), _round_up(N, pad_n)
        wp = jnp.pad(w, ((0, Kp - K), (0, Np - N))).astype(MXU_DTYPE)
        bp = None
        if b is not None:
            bp = jnp.pad(b, (0, Np - N)).reshape(1, Np).astype(jnp.float32)
        return wp, bp

    prep = {'lifting': prep_linear(*params['lifting']), 'blocks': []}
    for blk in params['blocks']:
        spec = blk['spec']
        spec_p = []
        for li, (w, b) in enumerate(spec):
            if li == 0:
                w = w[perm, :]            # input packing permutation
            if li == len(spec) - 1:
                w = w[:, perm]            # output packing permutation
            spec_p.append(prep_linear(w, b, pad_k=128, pad_n=128))
        prep['blocks'].append({'spec': spec_p,
                               'bypass': prep_linear(*blk['bypass'])})
    prep['projection'] = prep_linear(*params['projection'])
    return prep


# ----------------------------------------------------------------------------
if __name__ == "__main__":
    B, IN_C, OUT_C, H, W = 2, 3, 2, 16, 16
    MODES = (4, 4)
    WIDTH = 8
    N_BLOCKS = 2
    SPEC_LAYERS = 2
    SPEC_WIDTH = 4

    key = jax.random.PRNGKey(0)
    k_par, k_x = jax.random.split(key)
    raw_params = init_params(k_par, IN_C, OUT_C, MODES, WIDTH, N_BLOCKS,
                             SPEC_LAYERS, SPEC_WIDTH)
    prep = prepare_params(raw_params, MODES, WIDTH)   # pad/cast/permute ONCE
    x = jax.random.normal(k_x, (B, IN_C, H, W), jnp.float32)

    sht_mats = precompute_sht_mats(H, W, MODES)

    fwd = jax.jit(lambda p, xx: sfno3d_forward(p, xx, MODES, WIDTH, OUT_C,
                                               sht_mats))
    y = jax.block_until_ready(fwd(prep, x))
    assert y.shape == (B, OUT_C, H, W), y.shape
    assert bool(jnp.all(jnp.isfinite(y)))
    print("KERNEL_OK")
</pallas_src>

<mosaic_0001>
module attributes {stable_mosaic.version = 11 : i64} {
  func.func @kernel(%arg0: i32, %arg1: i32, %arg2: memref<512x8xbf16, #tpu.memory_space<vmem>>, %arg3: memref<8x8xbf16, #tpu.memory_space<vmem>>, %arg4: memref<1x8xf32, #tpu.memory_space<vmem>>, %arg5: memref<512x8xbf16, #tpu.memory_space<vmem>>) attributes {dimension_semantics = [#tpu.dimension_semantics<parallel>, #tpu.dimension_semantics<parallel>], iteration_bounds = array<i64: 1, 1>, scalar_prefetch = 0 : i64, scratch_operands = 0 : i64, tpu.core_type = #tpu.core_type<tc>, window_params = [{transform_indices = @transform_0, window_bounds = array<i64: 512, 8>}, {transform_indices = @transform_1, window_bounds = array<i64: 8, 8>}, {transform_indices = @transform_2, window_bounds = array<i64: 1, 8>}, {transform_indices = @transform_3, window_bounds = array<i64: 512, 8>}]} {
    %c0 = arith.constant 0 : index
    %c0_0 = arith.constant 0 : index
    %0 = vector.load %arg2[%c0, %c0_0] : memref<512x8xbf16, #tpu.memory_space<vmem>>, vector<512x8xbf16>
    %c0_1 = arith.constant 0 : index
    %c0_2 = arith.constant 0 : index
    %1 = vector.load %arg3[%c0_1, %c0_2] : memref<8x8xbf16, #tpu.memory_space<vmem>>, vector<8x8xbf16>
    %cst = arith.constant dense<0.000000e+00> : vector<512x8xf32>
    %2 = tpu.matmul %0, %1, %cst {dimension_numbers = #tpu.dot_dimension_numbers<[1], [0], [0], [1], [0, 0, 1, 1], [], []>} : vector<512x8xbf16>, vector<8x8xbf16>, vector<512x8xf32> -> vector<512x8xf32>
    %c0_3 = arith.constant 0 : index
    %c0_4 = arith.constant 0 : index
    %3 = vector.load %arg4[%c0_3, %c0_4] : memref<1x8xf32, #tpu.memory_space<vmem>>, vector<1x8xf32>
    %4 = vector.broadcast %3 : vector<1x8xf32> to vector<512x8xf32>
    %5 = arith.addf %2, %4 : vector<512x8xf32>
    %6 = arith.truncf %5 : vector<512x8xf32> to vector<512x8xbf16>
    %c0_5 = arith.constant 0 : index
    %c0_6 = arith.constant 0 : index
    %7 = vector.load %arg5[%c0_5, %c0_6] : memref<512x8xbf16, #tpu.memory_space<vmem>>, vector<512x8xbf16>
    tpu.vector_store %arg5[%c0_5, %c0_6], %6 {strides = array<i32>} : memref<512x8xbf16, #tpu.memory_space<vmem>>, vector<512x8xbf16>,
    return
  }
  func.func @transform_0(%arg0: i32, %arg1: i32) -> (i32, i32) {
    %c0_i32 = arith.constant 0 : i32
    %c0_i32_0 = arith.constant 0 : i32
    return %arg0, %c0_i32 : i32, i32
  }
  func.func @transform_1(%arg0: i32, %arg1: i32) -> (i32, i32) {
    %c0_i32 = arith.constant 0 : i32
    %c0_i32_0 = arith.constant 0 : i32
    return %c0_i32, %arg1 : i32, i32
  }
  func.func @transform_2(%arg0: i32, %arg1: i32) -> (i32, i32) {
    %c0_i32 = arith.constant 0 : i32
    %c0_i32_0 = arith.constant 0 : i32
    return %c0_i32, %arg1 : i32, i32
  }
  func.func @transform_3(%arg0: i32, %arg1: i32) -> (i32, i32) {
    %c0_i32 = arith.constant 0 : i32
    return %arg0, %arg1 : i32, i32
  }
}

module attributes {stable_mosaic.version = 11 : i64} {
  func.func @kernel(%arg0: i32, %arg1: i32, %arg2: memref<16x512xbf16, #tpu.memory_space<vmem>>, %arg3: memref<512x128xbf16, #tpu.memory_space<vmem>>, %arg4: memref<16x128xbf16, #tpu.memory_space<vmem>>) attributes {dimension_semantics = [#tpu.dimension_semantics<parallel>, #tpu.dimension_semantics<parallel>], iteration_bounds = array<i64: 1, 2>, scalar_prefetch = 0 : i64, scratch_operands = 0 : i64, tpu.core_type = #tpu.core_type<tc>, window_params = [{transform_indices = @transform_0, window_bounds = array<i64: 16, 512>}, {transform_indices = @transform_1, window_bounds = array<i64: 512, 128>}, {transform_indices = @transform_2, window_bounds = array<i64: 16, 128>}]} {
    %c0 = arith.constant 0 : index
    %c0_0 = arith.constant 0 : index
    %0 = vector.load %arg2[%c0, %c0_0] : memref<16x512xbf16, #tpu.memory_space<vmem>>, vector<16x512xbf16>
    %c0_1 = arith.constant 0 : index
    %c0_2 = arith.constant 0 : index
    %1 = vector.load %arg3[%c0_1, %c0_2] : memref<512x128xbf16, #tpu.memory_space<vmem>>, vector<512x128xbf16>
    %cst = arith.constant dense<0.000000e+00> : vector<16x128xf32>
    %2 = tpu.matmul %0, %1, %cst {dimension_numbers = #tpu.dot_dimension_numbers<[1], [0], [0], [1], [0, 0, 1, 1], [], []>} : vector<16x512xbf16>, vector<512x128xbf16>, vector<16x128xf32> -> vector<16x128xf32>
    %3 = arith.truncf %2 : vector<16x128xf32> to vector<16x128xbf16>
    %c0_3 = arith.constant 0 : index
    %c0_4 = arith.constant 0 : index
    %4 = vector.load %arg4[%c0_3, %c0_4] : memref<16x128xbf16, #tpu.memory_space<vmem>>, vector<16x128xbf16>
    tpu.vector_store %arg4[%c0_3, %c0_4], %3 {strides = array<i32>} : memref<16x128xbf16, #tpu.memory_space<vmem>>, vector<16x128xbf16>,
    return
  }
  func.func @transform_0(%arg0: i32, %arg1: i32) -> (i32, i32) {
    %c0_i32 = arith.constant 0 : i32
    %c0_i32_0 = arith.constant 0 : i32
    return %arg0, %c0_i32 : i32, i32
  }
  func.func @transform_1(%arg0: i32, %arg1: i32) -> (i32, i32) {
    %c0_i32 = arith.constant 0 : i32
    %c0_i32_0 = arith.constant 0 : i32
    return %c0_i32, %arg1 : i32, i32
  }
  func.func @transform_2(%arg0: i32, %arg1: i32) -> (i32, i32) {
    %c0_i32 = arith.constant 0 : i32
    return %arg0, %arg1 : i32, i32
  }
}

module attributes {stable_mosaic.version = 11 : i64} {
  func.func @kernel(%arg0: i32, %arg1: i32, %arg2: memref<16x256xbf16, #tpu.memory_space<vmem>>, %arg3: memref<256x256xbf16, #tpu.memory_space<vmem>>, %arg4: memref<1x256xf32, #tpu.memory_space<vmem>>, %arg5: memref<16x256xbf16, #tpu.memory_space<vmem>>) attributes {dimension_semantics = [#tpu.dimension_semantics<parallel>, #tpu.dimension_semantics<parallel>], iteration_bounds = array<i64: 1, 2>, scalar_prefetch = 0 : i64, scratch_operands = 0 : i64, tpu.core_type = #tpu.core_type<tc>, window_params = [{transform_indices = @transform_0, window_bounds = array<i64: 16, 256>}, {transform_indices = @transform_1, window_bounds = array<i64: 256, 256>}, {transform_indices = @transform_2, window_bounds = array<i64: 1, 256>}, {transform_indices = @transform_3, window_bounds = array<i64: 16, 256>}]} {
    %c0 = arith.constant 0 : index
    %c0_0 = arith.constant 0 : index
    %0 = vector.load %arg2[%c0, %c0_0] : memref<16x256xbf16, #tpu.memory_space<vmem>>, vector<16x256xbf16>
    %c0_1 = arith.constant 0 : index
    %c0_2 = arith.constant 0 : index
    %1 = vector.load %arg3[%c0_1, %c0_2] : memref<256x256xbf16, #tpu.memory_space<vmem>>, vector<256x256xbf16>
    %cst = arith.constant dense<0.000000e+00> : vector<16x256xf32>
    %2 = tpu.matmul %0, %1, %cst {dimension_numbers = #tpu.dot_dimension_numbers<[1], [0], [0], [1], [0, 0, 1, 1], [], []>} : vector<16x256xbf16>, vector<256x256xbf16>, vector<16x256xf32> -> vector<16x256xf32>
    %c0_3 = arith.constant 0 : index
    %c0_4 = arith.constant 0 : index
    %3 = vector.load %arg4[%c0_3, %c0_4] : memref<1x256xf32, #tpu.memory_space<vmem>>, vector<1x256xf32>
    %4 = vector.broadcast %3 : vector<1x256xf32> to vector<16x256xf32>
    %5 = arith.addf %2, %4 : vector<16x256xf32>
    %6 = arith.mulf %5, %5 : vector<16x256xf32>
    %7 = arith.mulf %5, %6 : vector<16x256xf32>
    %cst_5 = arith.constant 4.471500e-02 : f32
    %8 = vector.broadcast %cst_5 : f32 to vector<16x256xf32>
    %9 = arith.mulf %8, %7 : vector<16x256xf32>
    %10 = arith.addf %5, %9 : vector<16x256xf32>
    %cst_6 = arith.constant 0.797884583 : f32
    %11 = vector.broadcast %cst_6 : f32 to vector<16x256xf32>
    %12 = arith.mulf %11, %10 : vector<16x256xf32>
    %13 = math.tanh %12 : vector<16x256xf32>
    %cst_7 = arith.constant 1.000000e+00 : f32
    %14 = vector.broadcast %cst_7 : f32 to vector<16x256xf32>
    %15 = arith.addf %14, %13 : vector<16x256xf32>
    %cst_8 = arith.constant 5.000000e-01 : f32
    %16 = vector.broadcast %cst_8 : f32 to vector<16x256xf32>
    %17 = arith.mulf %16, %15 : vector<16x256xf32>
    %18 = arith.mulf %5, %17 : vector<16x256xf32>
    %19 = arith.truncf %18 : vector<16x256xf32> to vector<16x256xbf16>
    %c0_9 = arith.constant 0 : index
    %c0_10 = arith.constant 0 : index
    %20 = vector.load %arg5[%c0_9, %c0_10] : memref<16x256xbf16, #tpu.memory_space<vmem>>, vector<16x256xbf16>
    tpu.vector_store %arg5[%c0_9, %c0_10], %19 {strides = array<i32>} : memref<16x256xbf16, #tpu.memory_space<vmem>>, vector<16x256xbf16>,
    return
  }
  func.func @transform_0(%arg0: i32, %arg1: i32) -> (i32, i32) {
    %c0_i32 = arith.constant 0 : i32
    %c0_i32_0 = arith.constant 0 : i32
    return %arg0, %c0_i32 : i32, i32
  }
  func.func @transform_1(%arg0: i32, %arg1: i32) -> (i32, i32) {
    %c0_i32 = arith.constant 0 : i32
    %c0_i32_0 = arith.constant 0 : i32
    return %c0_i32, %arg1 : i32, i32
  }
  func.func @transform_2(%arg0: i32, %arg1: i32) -> (i32, i32) {
    %c0_i32 = arith.constant 0 : i32
    %c0_i32_0 = arith.constant 0 : i32
    return %c0_i32, %arg1 : i32, i32
  }
  func.func @transform_3(%arg0: i32, %arg1: i32) -> (i32, i32) {
    %c0_i32 = arith.constant 0 : i32
    return %arg0, %arg1 : i32, i32
  }
}

module attributes {stable_mosaic.version = 11 : i64} {
  func.func @kernel(%arg0: i32, %arg1: i32, %arg2: memref<512x8xbf16, #tpu.memory_space<vmem>>, %arg3: memref<8x8xbf16, #tpu.memory_space<vmem>>, %arg4: memref<1x8xf32, #tpu.memory_space<vmem>>, %arg5: memref<512x8xbf16, #tpu.memory_space<vmem>>, %arg6: memref<512x8xbf16, #tpu.memory_space<vmem>>) attributes {dimension_semantics = [#tpu.dimension_semantics<parallel>, #tpu.dimension_semantics<parallel>], iteration_bounds = array<i64: 1, 1>, scalar_prefetch = 0 : i64, scratch_operands = 0 : i64, tpu.core_type = #tpu.core_type<tc>, window_params = [{transform_indices = @transform_0, window_bounds = array<i64: 512, 8>}, {transform_indices = @transform_1, window_bounds = array<i64: 8, 8>}, {transform_indices = @transform_2, window_bounds = array<i64: 1, 8>}, {transform_indices = @transform_3, window_bounds = array<i64: 512, 8>}, {transform_indices = @transform_4, window_bounds = array<i64: 512, 8>}]} {
    %c0 = arith.constant 0 : index
    %c0_0 = arith.constant 0 : index
    %0 = vector.load %arg2[%c0, %c0_0] : memref<512x8xbf16, #tpu.memory_space<vmem>>, vector<512x8xbf16>
    %c0_1 = arith.constant 0 : index
    %c0_2 = arith.constant 0 : index
    %1 = vector.load %arg3[%c0_1, %c0_2] : memref<8x8xbf16, #tpu.memory_space<vmem>>, vector<8x8xbf16>
    %cst = arith.constant dense<0.000000e+00> : vector<512x8xf32>
    %2 = tpu.matmul %0, %1, %cst {dimension_numbers = #tpu.dot_dimension_numbers<[1], [0], [0], [1], [0, 0, 1, 1], [], []>} : vector<512x8xbf16>, vector<8x8xbf16>, vector<512x8xf32> -> vector<512x8xf32>
    %c0_3 = arith.constant 0 : index
    %c0_4 = arith.constant 0 : index
    %3 = vector.load %arg4[%c0_3, %c0_4] : memref<1x8xf32, #tpu.memory_space<vmem>>, vector<1x8xf32>
    %4 = vector.broadcast %3 : vector<1x8xf32> to vector<512x8xf32>
    %5 = arith.addf %2, %4 : vector<512x8xf32>
    %c0_5 = arith.constant 0 : index
    %c0_6 = arith.constant 0 : index
    %6 = vector.load %arg5[%c0_5, %c0_6] : memref<512x8xbf16, #tpu.memory_space<vmem>>, vector<512x8xbf16>
    %7 = arith.extf %6 : vector<512x8xbf16> to vector<512x8xf32>
    %8 = arith.addf %5, %7 : vector<512x8xf32>
    %9 = arith.mulf %8, %8 : vector<512x8xf32>
    %10 = arith.mulf %8, %9 : vector<512x8xf32>
    %cst_7 = arith.constant 4.471500e-02 : f32
    %11 = vector.broadcast %cst_7 : f32 to vector<512x8xf32>
    %12 = arith.mulf %11, %10 : vector<512x8xf32>
    %13 = arith.addf %8, %12 : vector<512x8xf32>
    %cst_8 = arith.constant 0.797884583 : f32
    %14 = vector.broadcast %cst_8 : f32 to vector<512x8xf32>
    %15 = arith.mulf %14, %13 : vector<512x8xf32>
    %16 = math.tanh %15 : vector<512x8xf32>
    %cst_9 = arith.constant 1.000000e+00 : f32
    %17 = vector.broadcast %cst_9 : f32 to vector<512x8xf32>
    %18 = arith.addf %17, %16 : vector<512x8xf32>
    %cst_10 = arith.constant 5.000000e-01 : f32
    %19 = vector.broadcast %cst_10 : f32 to vector<512x8xf32>
    %20 = arith.mulf %19, %18 : vector<512x8xf32>
    %21 = arith.mulf %8, %20 : vector<512x8xf32>
    %22 = arith.truncf %21 : vector<512x8xf32> to vector<512x8xbf16>
    %c0_11 = arith.constant 0 : index
    %c0_12 = arith.constant 0 : index
    %23 = vector.load %arg6[%c0_11, %c0_12] : memref<512x8xbf16, #tpu.memory_space<vmem>>, vector<512x8xbf16>
    tpu.vector_store %arg6[%c0_11, %c0_12], %22 {strides = array<i32>} : memref<512x8xbf16, #tpu.memory_space<vmem>>, vector<512x8xbf16>,
    return
  }
  func.func @transform_0(%arg0: i32, %arg1: i32) -> (i32, i32) {
    %c0_i32 = arith.constant 0 : i32
    %c0_i32_0 = arith.constant 0 : i32
    return %arg0, %c0_i32 : i32, i32
  }
  func.func @transform_1(%arg0: i32, %arg1: i32) -> (i32, i32) {
    %c0_i32 = arith.constant 0 : i32
    %c0_i32_0 = arith.constant 0 : i32
    return %c0_i32, %arg1 : i32, i32
  }
  func.func @transform_2(%arg0: i32, %arg1: i32) -> (i32, i32) {
    %c0_i32 = arith.constant 0 : i32
    %c0_i32_0 = arith.constant 0 : i32
    return %c0_i32, %arg1 : i32, i32
  }
  func.func @transform_3(%arg0: i32, %arg1: i32) -> (i32, i32) {
    %c0_i32 = arith.constant 0 : i32
    return %arg0, %arg1 : i32, i32
  }
  func.func @transform_4(%arg0: i32, %arg1: i32) -> (i32, i32) {
    %c0_i32 = arith.constant 0 : i32
    return %arg0, %arg1 : i32, i32
  }
}

module attributes {stable_mosaic.version = 11 : i64} {
  func.func @kernel(%arg0: i32, %arg1: i32, %arg2: memref<512x8xbf16, #tpu.memory_space<vmem>>, %arg3: memref<8x8xbf16, #tpu.memory_space<vmem>>, %arg4: memref<1x8xf32, #tpu.memory_space<vmem>>, %arg5: memref<512x8xf32, #tpu.memory_space<vmem>>) attributes {dimension_semantics = [#tpu.dimension_semantics<parallel>, #tpu.dimension_semantics<parallel>], iteration_bounds = array<i64: 1, 1>, scalar_prefetch = 0 : i64, scratch_operands = 0 : i64, tpu.core_type = #tpu.core_type<tc>, window_params = [{transform_indices = @transform_0, window_bounds = array<i64: 512, 8>}, {transform_indices = @transform_1, window_bounds = array<i64: 8, 8>}, {transform_indices = @transform_2, window_bounds = array<i64: 1, 8>}, {transform_indices = @transform_3, window_bounds = array<i64: 512, 8>}]} {
    %c0 = arith.constant 0 : index
    %c0_0 = arith.constant 0 : index
    %0 = vector.load %arg2[%c0, %c0_0] : memref<512x8xbf16, #tpu.memory_space<vmem>>, vector<512x8xbf16>
    %c0_1 = arith.constant 0 : index
    %c0_2 = arith.constant 0 : index
    %1 = vector.load %arg3[%c0_1, %c0_2] : memref<8x8xbf16, #tpu.memory_space<vmem>>, vector<8x8xbf16>
    %cst = arith.constant dense<0.000000e+00> : vector<512x8xf32>
    %2 = tpu.matmul %0, %1, %cst {dimension_numbers = #tpu.dot_dimension_numbers<[1], [0], [0], [1], [0, 0, 1, 1], [], []>} : vector<512x8xbf16>, vector<8x8xbf16>, vector<512x8xf32> -> vector<512x8xf32>
    %c0_3 = arith.constant 0 : index
    %c0_4 = arith.constant 0 : index
    %3 = vector.load %arg4[%c0_3, %c0_4] : memref<1x8xf32, #tpu.memory_space<vmem>>, vector<1x8xf32>
    %4 = vector.broadcast %3 : vector<1x8xf32> to vector<512x8xf32>
    %5 = arith.addf %2, %4 : vector<512x8xf32>
    %c0_5 = arith.constant 0 : index
    %c0_6 = arith.constant 0 : index
    %6 = vector.load %arg5[%c0_5, %c0_6] : memref<512x8xf32, #tpu.memory_space<vmem>>, vector<512x8xf32>
    tpu.vector_store %arg5[%c0_5, %c0_6], %5 {strides = array<i32>} : memref<512x8xf32, #tpu.memory_space<vmem>>, vector<512x8xf32>,
    return
  }
  func.func @transform_0(%arg0: i32, %arg1: i32) -> (i32, i32) {
    %c0_i32 = arith.constant 0 : i32
    %c0_i32_0 = arith.constant 0 : i32
    return %arg0, %c0_i32 : i32, i32
  }
  func.func @transform_1(%arg0: i32, %arg1: i32) -> (i32, i32) {
    %c0_i32 = arith.constant 0 : i32
    %c0_i32_0 = arith.constant 0 : i32
    return %c0_i32, %arg1 : i32, i32
  }
  func.func @transform_2(%arg0: i32, %arg1: i32) -> (i32, i32) {
    %c0_i32 = arith.constant 0 : i32
    %c0_i32_0 = arith.constant 0 : i32
    return %c0_i32, %arg1 : i32, i32
  }
  func.func @transform_3(%arg0: i32, %arg1: i32) -> (i32, i32) {
    %c0_i32 = arith.constant 0 : i32
    return %arg0, %arg1 : i32, i32
  }
}

</mosaic_0001>

<llo_original>
// kernel: _lambda_.8
$region0: #{_lambda_.8}
  #allocation0 [shape = 'u32[]', space=smem, size = 0x4, offset = 0x4, fixed_abs, tag = 'smem constant byte address 0x4 - core index']
  #allocation1 [shape = 'u32[144,128]{1,0:T(1,128)}', space=vmem, size = 0x12000, scoped, tag = 'internal scratch']
  %s0 = inlined_call_operand.vmem [shape: bf16[512,8], index: 0, kind: input, shape index: {}]
  %s1 = inlined_call_operand.vmem [shape: bf16[8,8], index: 1, kind: input, shape index: {}]
  %s2 = inlined_call_operand.vmem [shape: f32[1,8], index: 2, kind: input, shape index: {}]
  %s3 = inlined_call_operand.vmem [shape: bf16[512,8], index: 3, kind: output, shape index: {}]
  %s4 = sld [smem:[#allocation0]]
  $region22: #{_lambda_.8} parent=0
    _
  %s6 = ssub.s32 1, %s4
  %s7 = scalar_select 0, %s6, %s4
  // Predicated region
  $region2: #{_lambda_.8} parent=0 // pred_check
    _
  $region3: #{_lambda_.8} parent=0 // pred_check_branch
    %9 = sbr.rel (0) target = $region5
  $region4: #{_lambda_.8} parent=0 // pred_region
    _
  $region5: #{_lambda_.8} parent=0 // pred_fallthru
    _
  // Predicated region
  $region6: #{_lambda_.8} parent=0 // pred_check
    _
  $region7: #{_lambda_.8} parent=0 // pred_check_branch
    %11 = sbr.rel (0) target = $region9
  $region8: #{_lambda_.8} parent=0 // pred_region
    _
  $region9: #{_lambda_.8} parent=0 // pred_fallthru
    _
  // Predicated region
  $region10: #{_lambda_.8} parent=0 // pred_check
    _
  $region11: #{_lambda_.8} parent=0 // pred_check_branch
    %13 = sbr.rel (0) target = $region13
  $region12: #{_lambda_.8} parent=0 // pred_region
    _
  $region13: #{_lambda_.8} parent=0 // pred_fallthru
    _
  %v15 = vld [vmem:[%s0] sm:$0xf]
  %v16 = vld [vmem:[%s0 + $0x4] sm:$0xf]
  %v17 = vld [vmem:[%s0 + $0x8] sm:$0xf]
  %v18 = vld [vmem:[%s0 + $0xc] sm:$0xf]
  %v19 = vld [vmem:[%s0 + $0x10] sm:$0xf]
  %v20 = vld [vmem:[%s0 + $0x14] sm:$0xf]
  %v21 = vld [vmem:[%s0 + $0x18] sm:$0xf]
  %v22 = vld [vmem:[%s0 + $0x1c] sm:$0xf]
  %v23 = vld [vmem:[%s0 + $0x20] sm:$0xf]
  %v24 = vld [vmem:[%s0 + $0x24] sm:$0xf]
  %v25 = vld [vmem:[%s0 + $0x28] sm:$0xf]
  %v26 = vld [vmem:[%s0 + $0x2c] sm:$0xf]
  %v27 = vld [vmem:[%s0 + $0x30] sm:$0xf]
  %v28 = vld [vmem:[%s0 + $0x34] sm:$0xf]
  %v29 = vld [vmem:[%s0 + $0x38] sm:$0xf]
  %v30 = vld [vmem:[%s0 + $0x3c] sm:$0xf]
  %v31 = vld [vmem:[%s0 + $0x40] sm:$0xf]
  %v32 = vld [vmem:[%s0 + $0x44] sm:$0xf]
  %v33 = vld [vmem:[%s0 + $0x48] sm:$0xf]
  %v34 = vld [vmem:[%s0 + $0x4c] sm:$0xf]
  %v35 = vld [vmem:[%s0 + $0x50] sm:$0xf]
  %v36 = vld [vmem:[%s0 + $0x54] sm:$0xf]
  %v37 = vld [vmem:[%s0 + $0x58] sm:$0xf]
  %v38 = vld [vmem:[%s0 + $0x5c] sm:$0xf]
  %v39 = vld [vmem:[%s0 + $0x60] sm:$0xf]
  %v40 = vld [vmem:[%s0 + $0x64] sm:$0xf]
  %v41 = vld [vmem:[%s0 + $0x68] sm:$0xf]
  %v42 = vld [vmem:[%s0 + $0x6c] sm:$0xf]
  %v43 = vld [vmem:[%s0 + $0x70] sm:$0xf]
  %v44 = vld [vmem:[%s0 + $0x74] sm:$0xf]
  %v45 = vld [vmem:[%s0 + $0x78] sm:$0xf]
  %v46 = vld [vmem:[%s0 + $0x7c] sm:$0xf]
  %v47 = vld [vmem:[%s0 + $0x80] sm:$0xf]
  %v48 = vld [vmem:[%s0 + $0x84] sm:$0xf]
  %v49 = vld [vmem:[%s0 + $0x88] sm:$0xf]
  %v50 = vld [vmem:[%s0 + $0x8c] sm:$0xf]
  %v51 = vld [vmem:[%s0 + $0x90] sm:$0xf]
  %v52 = vld [vmem:[%s0 + $0x94] sm:$0xf]
  %v53 = vld [vmem:[%s0 + $0x98] sm:$0xf]
  %v54 = vld [vmem:[%s0 + $0x9c] sm:$0xf]
  %v55 = vld [vmem:[%s0 + $0xa0] sm:$0xf]
  %v56 = vld [vmem:[%s0 + $0xa4] sm:$0xf]
  %v57 = vld [vmem:[%s0 + $0xa8] sm:$0xf]
  %v58 = vld [vmem:[%s0 + $0xac] sm:$0xf]
  %v59 = vld [vmem:[%s0 + $0xb0] sm:$0xf]
  %v60 = vld [vmem:[%s0 + $0xb4] sm:$0xf]
  %v61 = vld [vmem:[%s0 + $0xb8] sm:$0xf]
  %v62 = vld [vmem:[%s0 + $0xbc] sm:$0xf]
  %v63 = vld [vmem:[%s0 + $0xc0] sm:$0xf]
  %v64 = vld [vmem:[%s0 + $0xc4] sm:$0xf]
  %v65 = vld [vmem:[%s0 + $0xc8] sm:$0xf]
  %v66 = vld [vmem:[%s0 + $0xcc] sm:$0xf]
  %v67 = vld [vmem:[%s0 + $0xd0] sm:$0xf]
  %v68 = vld [vmem:[%s0 + $0xd4] sm:$0xf]
  %v69 = vld [vmem:[%s0 + $0xd8] sm:$0xf]
  %v70 = vld [vmem:[%s0 + $0xdc] sm:$0xf]
  %v71 = vld [vmem:[%s0 + $0xe0] sm:$0xf]
  %v72 = vld [vmem:[%s0 + $0xe4] sm:$0xf]
  %v73 = vld [vmem:[%s0 + $0xe8] sm:$0xf]
  %v74 = vld [vmem:[%s0 + $0xec] sm:$0xf]
  %v75 = vld [vmem:[%s0 + $0xf0] sm:$0xf]
  %v76 = vld [vmem:[%s0 + $0xf4] sm:$0xf]
  %v77 = vld [vmem:[%s0 + $0xf8] sm:$0xf]
  %v78 = vld [vmem:[%s0 + $0xfc] sm:$0xf]
  %v79 = vld [vmem:[%s1] sm:$0xf]
  %v80 = vld [vmem:[%s2] sm:$0x1]
  %v82 = vlaneseq
  %v83 = vshrl.u32 %v82, 7
  %v84 = vsub.s32 0, %v83
  %v85 = vrot.slane %v80, %v84
  %v151 = vunpack.c.l.b16 %v15
  %v152 = vunpack.c.l.b16 %v16
  %v153 = vunpack.c.l.b16 %v17
  %v154 = vunpack.c.l.b16 %v18
  %v155 = vunpack.c.l.b16 %v19
  %v156 = vunpack.c.l.b16 %v20
  %v157 = vunpack.c.l.b16 %v21
  %v158 = vunpack.c.l.b16 %v22
  %v159 = vunpack.c.l.b16 %v23
  %v160 = vunpack.c.l.b16 %v24
  %v161 = vunpack.c.l.b16 %v25
  %v162 = vunpack.c.l.b16 %v26
  %v163 = vunpack.c.l.b16 %v27
  %v164 = vunpack.c.l.b16 %v28
  %v165 = vunpack.c.l.b16 %v29
  %v166 = vunpack.c.l.b16 %v30
  %v167 = vunpack.c.l.b16 %v31
  %v168 = vunpack.c.l.b16 %v32
  %v169 = vunpack.c.l.b16 %v33
  %v170 = vunpack.c.l.b16 %v34
  %v171 = vunpack.c.l.b16 %v35
  %v172 = vunpack.c.l.b16 %v36
  %v173 = vunpack.c.l.b16 %v37
  %v174 = vunpack.c.l.b16 %v38
  %v175 = vunpack.c.l.b16 %v39
  %v176 = vunpack.c.l.b16 %v40
  %v177 = vunpack.c.l.b16 %v41
  %v178 = vunpack.c.l.b16 %v42
  %v179 = vunpack.c.l.b16 %v43
  %v180 = vunpack.c.l.b16 %v44
  %v181 = vunpack.c.l.b16 %v45
  %v182 = vunpack.c.l.b16 %v46
  %v183 = vunpack.c.l.b16 %v47
  %v184 = vunpack.c.l.b16 %v48
  %v185 = vunpack.c.l.b16 %v49
  %v186 = vunpack.c.l.b16 %v50
  %v187 = vunpack.c.l.b16 %v51
  %v188 = vunpack.c.l.b16 %v52
  %v189 = vunpack.c.l.b16 %v53
  %v190 = vunpack.c.l.b16 %v54
  %v191 = vunpack.c.l.b16 %v55
  %v192 = vunpack.c.l.b16 %v56
  %v193 = vunpack.c.l.b16 %v57
  %v194 = vunpack.c.l.b16 %v58
  %v195 = vunpack.c.l.b16 %v59
  %v196 = vunpack.c.l.b16 %v60
  %v197 = vunpack.c.l.b16 %v61
  %v198 = vunpack.c.l.b16 %v62
  %v199 = vunpack.c.l.b16 %v63
  %v200 = vunpack.c.l.b16 %v64
  %v201 = vunpack.c.l.b16 %v65
  %v202 = vunpack.c.l.b16 %v66
  %v203 = vunpack.c.l.b16 %v67
  %v204 = vunpack.c.l.b16 %v68
  %v205 = vunpack.c.l.b16 %v69
  %v206 = vunpack.c.l.b16 %v70
  %v207 = vunpack.c.l.b16 %v71
  %v208 = vunpack.c.l.b16 %v72
  %v209 = vunpack.c.l.b16 %v73
  %v210 = vunpack.c.l.b16 %v74
  %v211 = vunpack.c.l.b16 %v75
  %v212 = vunpack.c.l.b16 %v76
  %v213 = vunpack.c.l.b16 %v77
  %v214 = vunpack.c.l.b16 %v78
  %v215 = vpack.c.b16 %v152, %v151
  %v216 = vpack.c.b16 %v154, %v153
  %v217 = vpack.c.b16 %v156, %v155
  %v218 = vpack.c.b16 %v158, %v157
  %v219 = vpack.c.b16 %v160, %v159
  %v220 = vpack.c.b16 %v162, %v161
  %v221 = vpack.c.b16 %v164, %v163
  %v222 = vpack.c.b16 %v166, %v165
  %v223 = vpack.c.b16 %v168, %v167
  %v224 = vpack.c.b16 %v170, %v169
  %v225 = vpack.c.b16 %v172, %v171
  %v226 = vpack.c.b16 %v174, %v173
  %v227 = vpack.c.b16 %v176, %v175
  %v228 = vpack.c.b16 %v178, %v177
  %v229 = vpack.c.b16 %v180, %v179
  %v230 = vpack.c.b16 %v182, %v181
  %v231 = vpack.c.b16 %v184, %v183
  %v232 = vpack.c.b16 %v186, %v185
  %v233 = vpack.c.b16 %v188, %v187
  %v234 = vpack.c.b16 %v190, %v189
  %v235 = vpack.c.b16 %v192, %v191
  %v236 = vpack.c.b16 %v194, %v193
  %v237 = vpack.c.b16 %v196, %v195
  %v238 = vpack.c.b16 %v198, %v197
  %v239 = vpack.c.b16 %v200, %v199
  %v240 = vpack.c.b16 %v202, %v201
  %v241 = vpack.c.b16 %v204, %v203
  %v242 = vpack.c.b16 %v206, %v205
  %v243 = vpack.c.b16 %v208, %v207
  %v244 = vpack.c.b16 %v210, %v209
  %v245 = vpack.c.b16 %v212, %v211
  %v246 = vpack.c.b16 %v214, %v213
  %vm247 = vcmask 64512
  %v249 = vsel %vm247, %v215, 0
  %v252 = vsel %vm247, %v216, 0
  %v255 = vsel %vm247, %v217, 0
  %v258 = vsel %vm247, %v218, 0
  %v261 = vsel %vm247, %v219, 0
  %v264 = vsel %vm247, %v220, 0
  %v267 = vsel %vm247, %v221, 0
  %v270 = vsel %vm247, %v222, 0
  %v273 = vsel %vm247, %v223, 0
  %v276 = vsel %vm247, %v224, 0
  %v279 = vsel %vm247, %v225, 0
  %v282 = vsel %vm247, %v226, 0
  %v285 = vsel %vm247, %v227, 0
  %v288 = vsel %vm247, %v228, 0
  %v291 = vsel %vm247, %v229, 0
  %v294 = vsel %vm247, %v230, 0
  %v297 = vsel %vm247, %v231, 0
  %v300 = vsel %vm247, %v232, 0
  %v303 = vsel %vm247, %v233, 0
  %v306 = vsel %vm247, %v234, 0
  %v309 = vsel %vm247, %v235, 0
  %v312 = vsel %vm247, %v236, 0
  %v315 = vsel %vm247, %v237, 0
  %v318 = vsel %vm247, %v238, 0
  %v321 = vsel %vm247, %v239, 0
  %v324 = vsel %vm247, %v240, 0
  %v327 = vsel %vm247, %v241, 0
  %v330 = vsel %vm247, %v242, 0
  %v333 = vsel %vm247, %v243, 0
  %v336 = vsel %vm247, %v244, 0
  %v339 = vsel %vm247, %v245, 0
  %v342 = vsel %vm247, %v246, 0
  %vm344 = vcmask 1043456
  %v346 = vsel %vm344, %v79, 0
  %348 = vmatprep.subr.bf16.mxu0 0
  %349 = vmatpush1.bf16.msra.mxu0 %v346
  %350 = vmatprep.subr.bf16.mxu0 0
  %351 = vmatpush1.bf16.msra.mxu0 0
  %352 = vmatprep.subr.bf16.mxu0 0
  %353 = vmatpush1.bf16.msra.mxu0 0
  %354 = vmatprep.subr.bf16.mxu0 0
  %355 = vmatpush1.bf16.msra.mxu0 0
  %356 = vmatprep.subr.bf16.mxu0 0
  %357 = vmatpush1.bf16.msra.mxu0 0
  %358 = vmatprep.subr.bf16.mxu0 0
  %359 = vmatpush1.bf16.msra.mxu0 0
  %360 = vmatprep.subr.bf16.mxu0 0
  %361 = vmatpush1.bf16.msra.mxu0 0
  %362 = vmatprep.subr.bf16.mxu0 0
  %363 = vmatpush1.bf16.msra.mxu0 0
  %364 = vmatprep.subr.bf16.mxu0 0
  %365 = vmatpush1.bf16.msra.mxu0 0
  %366 = vmatprep.subr.bf16.mxu0 0
  %367 = vmatpush1.bf16.msra.mxu0 0
  %368 = vmatprep.subr.bf16.mxu0 0
  %369 = vmatpush1.bf16.msra.mxu0 0
  %370 = vmatprep.subr.bf16.mxu0 0
  %371 = vmatpush1.bf16.msra.mxu0 0
  %372 = vmatprep.subr.bf16.mxu0 0
  %373 = vmatpush1.bf16.msra.mxu0 0
  %374 = vmatprep.subr.bf16.mxu0 0
  %375 = vmatpush1.bf16.msra.mxu0 0
  %376 = vmatprep.subr.bf16.mxu0 0
  %377 = vmatpush1.bf16.msra.mxu0 0
  %378 = vmatprep.subr.bf16.mxu0 0
  %379 = vmatpush1.bf16.msra.mxu0 0
  %380 = vmatprep.mubr.bf16.mxu0 0
  %381 = vmatmul.mubr.bf16.gmra.mrb[0].mxu0 %v249
  %v382 = vpop.f32.mrb[0].mxu0
  %v383 = vadd.f32 %v85, %v382
  %v384 = vpop.f32.mrb[0].mxu0
  %v385 = vpop.f32.mrb[0].mxu0
  %v386 = vadd.f32 %v85, %v385
  %v387 = vpop.f32.mrb[0].mxu0
  %388 = vmatprep.mubr.bf16.mxu0 0
  %389 = vmatmul.mubr.bf16.gmra.mrb[0].mxu0 %v252
  %v390 = vpop.f32.mrb[0].mxu0
  %v391 = vadd.f32 %v85, %v390
  %v392 = vpop.f32.mrb[0].mxu0
  %v393 = vpop.f32.mrb[0].mxu0
  %v394 = vadd.f32 %v85, %v393
  %v395 = vpop.f32.mrb[0].mxu0
  %396 = vmatprep.mubr.bf16.mxu0 0
  %397 = vmatmul.mubr.bf16.gmra.mrb[0].mxu0 %v255
  %v398 = vpop.f32.mrb[0].mxu0
  %v399 = vadd.f32 %v85, %v398
  %v400 = vpop.f32.mrb[0].mxu0
  %v401 = vpop.f32.mrb[0].mxu0
  %v402 = vadd.f32 %v85, %v401
  %v403 = vpop.f32.mrb[0].mxu0
  %404 = vmatprep.mubr.bf16.mxu0 0
  %405 = vmatmul.mubr.bf16.gmra.mrb[0].mxu0 %v258
  %v406 = vpop.f32.mrb[0].mxu0
  %v407 = vadd.f32 %v85, %v406
  %v408 = vpop.f32.mrb[0].mxu0
  %v409 = vpop.f32.mrb[0].mxu0
  %v410 = vadd.f32 %v85, %v409
  %v411 = vpop.f32.mrb[0].mxu0
  %412 = vmatprep.mubr.bf16.mxu0 0
  %413 = vmatmul.mubr.bf16.gmra.mrb[0].mxu0 %v261
  %v414 = vpop.f32.mrb[0].mxu0
  %v415 = vadd.f32 %v85, %v414
  %v416 = vpop.f32.mrb[0].mxu0
  %v417 = vpop.f32.mrb[0].mxu0
  %v418 = vadd.f32 %v85, %v417
  %v419 = vpop.f32.mrb[0].mxu0
  %420 = vmatprep.mubr.bf16.mxu0 0
  %421 = vmatmul.mubr.bf16.gmra.mrb[0].mxu0 %v264
  %v422 = vpop.f32.mrb[0].mxu0
  %v423 = vadd.f32 %v85, %v422
  %v424 = vpop.f32.mrb[0].mxu0
  %v425 = vpop.f32.mrb[0].mxu0
  %v426 = vadd.f32 %v85, %v425
  %v427 = vpop.f32.mrb[0].mxu0
  %428 = vmatprep.mubr.bf16.mxu0 0
  %429 = vmatmul.mubr.bf16.gmra.mrb[0].mxu0 %v267
  %v430 = vpop.f32.mrb[0].mxu0
  %v431 = vadd.f32 %v85, %v430
  %v432 = vpop.f32.mrb[0].mxu0
  %v433 = vpop.f32.mrb[0].mxu0
  %v434 = vadd.f32 %v85, %v433
  %v435 = vpop.f32.mrb[0].mxu0
  %436 = vmatprep.mubr.bf16.mxu0 0
  %437 = vmatmul.mubr.bf16.gmra.mrb[0].mxu0 %v270
  %v438 = vpop.f32.mrb[0].mxu0
  %v439 = vadd.f32 %v85, %v438
  %v440 = vpop.f32.mrb[0].mxu0
  %v441 = vpop.f32.mrb[0].mxu0
  %v442 = vadd.f32 %v85, %v441
  %v443 = vpop.f32.mrb[0].mxu0
  %444 = vmatprep.mubr.bf16.mxu0 0
  %445 = vmatmul.mubr.bf16.gmra.mrb[0].mxu0 %v273
  %v446 = vpop.f32.mrb[0].mxu0
  %v447 = vadd.f32 %v85, %v446
  %v448 = vpop.f32.mrb[0].mxu0
  %v449 = vpop.f32.mrb[0].mxu0
  %v450 = vadd.f32 %v85, %v449
  %v451 = vpop.f32.mrb[0].mxu0
  %452 = vmatprep.mubr.bf16.mxu0 0
  %453 = vmatmul.mubr.bf16.gmra.mrb[0].mxu0 %v276
  %v454 = vpop.f32.mrb[0].mxu0
  %v455 = vadd.f32 %v85, %v454
  %v456 = vpop.f32.mrb[0].mxu0
  %v457 = vpop.f32.mrb[0].mxu0
  %v458 = vadd.f32 %v85, %v457
  %v459 = vpop.f32.mrb[0].mxu0
  %460 = vmatprep.mubr.bf16.mxu0 0
  %461 = vmatmul.mubr.bf16.gmra.mrb[0].mxu0 %v279
  %v462 = vpop.f32.mrb[0].mxu0
  %v463 = vadd.f32 %v85, %v462
  %v464 = vpop.f32.mrb[0].mxu0
  %v465 = vpop.f32.mrb[0].mxu0
  %v466 = vadd.f32 %v85, %v465
  %v467 = vpop.f32.mrb[0].mxu0
  %468 = vmatprep.mubr.bf16.mxu0 0
  %469 = vmatmul.mubr.bf16.gmra.mrb[0].mxu0 %v282
  %v470 = vpop.f32.mrb[0].mxu0
  %v471 = vadd.f32 %v85, %v470
  %v472 = vpop.f32.mrb[0].mxu0
  %v473 = vpop.f32.mrb[0].mxu0
  %v474 = vadd.f32 %v85, %v473
  %v475 = vpop.f32.mrb[0].mxu0
  %476 = vmatprep.mubr.bf16.mxu0 0
  %477 = vmatmul.mubr.bf16.gmra.mrb[0].mxu0 %v285
  %v478 = vpop.f32.mrb[0].mxu0
  %v479 = vadd.f32 %v85, %v478
  %v480 = vpop.f32.mrb[0].mxu0
  %v481 = vpop.f32.mrb[0].mxu0
  %v482 = vadd.f32 %v85, %v481
  %v483 = vpop.f32.mrb[0].mxu0
  %484 = vmatprep.mubr.bf16.mxu0 0
  %485 = vmatmul.mubr.bf16.gmra.mrb[0].mxu0 %v288
  %v486 = vpop.f32.mrb[0].mxu0
  %v487 = vadd.f32 %v85, %v486
  %v488 = vpop.f32.mrb[0].mxu0
  %v489 = vpop.f32.mrb[0].mxu0
  %v490 = vadd.f32 %v85, %v489
  %v491 = vpop.f32.mrb[0].mxu0
  %492 = vmatprep.mubr.bf16.mxu0 0
  %493 = vmatmul.mubr.bf16.gmra.mrb[0].mxu0 %v291
  %v494 = vpop.f32.mrb[0].mxu0
  %v495 = vadd.f32 %v85, %v494
  %v496 = vpop.f32.mrb[0].mxu0
  %v497 = vpop.f32.mrb[0].mxu0
  %v498 = vadd.f32 %v85, %v497
  %v499 = vpop.f32.mrb[0].mxu0
  %500 = vmatprep.mubr.bf16.mxu0 0
  %501 = vmatmul.mubr.bf16.gmra.mrb[0].mxu0 %v294
  %v502 = vpop.f32.mrb[0].mxu0
  %v503 = vadd.f32 %v85, %v502
  %v504 = vpop.f32.mrb[0].mxu0
  %v505 = vpop.f32.mrb[0].mxu0
  %v506 = vadd.f32 %v85, %v505
  %v507 = vpop.f32.mrb[0].mxu0
  %508 = vmatprep.mubr.bf16.mxu0 0
  %509 = vmatmul.mubr.bf16.gmra.mrb[0].mxu0 %v297
  %v510 = vpop.f32.mrb[0].mxu0
  %v511 = vadd.f32 %v85, %v510
  %v512 = vpop.f32.mrb[0].mxu0
  %v513 = vpop.f32.mrb[0].mxu0
  %v514 = vadd.f32 %v85, %v513
  %v515 = vpop.f32.mrb[0].mxu0
  %516 = vmatprep.mubr.bf16.mxu0 0
  %517 = vmatmul.mubr.bf16.gmra.mrb[0].mxu0 %v300
  %v518 = vpop.f32.mrb[0].mxu0
  %v519 = vadd.f32 %v85, %v518
  %v520 = vpop.f32.mrb[0].mxu0
  %v521 = vpop.f32.mrb[0].mxu0
  %v522 = vadd.f32 %v85, %v521
  %v523 = vpop.f32.mrb[0].mxu0
  %524 = vmatprep.mubr.bf16.mxu0 0
  %525 = vmatmul.mubr.bf16.gmra.mrb[0].mxu0 %v303
  %v526 = vpop.f32.mrb[0].mxu0
  %v527 = vadd.f32 %v85, %v526
  %v528 = vpop.f32.mrb[0].mxu0
  %v529 = vpop.f32.mrb[0].mxu0
  %v530 = vadd.f32 %v85, %v529
  %v531 = vpop.f32.mrb[0].mxu0
  %532 = vmatprep.mubr.bf16.mxu0 0
  %533 = vmatmul.mubr.bf16.gmra.mrb[0].mxu0 %v306
  %v534 = vpop.f32.mrb[0].mxu0
  %v535 = vadd.f32 %v85, %v534
  %v536 = vpop.f32.mrb[0].mxu0
  %v537 = vpop.f32.mrb[0].mxu0
  %v538 = vadd.f32 %v85, %v537
  %v539 = vpop.f32.mrb[0].mxu0
  %540 = vmatprep.mubr.bf16.mxu0 0
  %541 = vmatmul.mubr.bf16.gmra.mrb[0].mxu0 %v309
  %v542 = vpop.f32.mrb[0].mxu0
  %v543 = vadd.f32 %v85, %v542
  %v544 = vpop.f32.mrb[0].mxu0
  %v545 = vpop.f32.mrb[0].mxu0
  %v546 = vadd.f32 %v85, %v545
  %v547 = vpop.f32.mrb[0].mxu0
  %548 = vmatprep.mubr.bf16.mxu0 0
  %549 = vmatmul.mubr.bf16.gmra.mrb[0].mxu0 %v312
  %v550 = vpop.f32.mrb[0].mxu0
  %v551 = vadd.f32 %v85, %v550
  %v552 = vpop.f32.mrb[0].mxu0
  %v553 = vpop.f32.mrb[0].mxu0
  %v554 = vadd.f32 %v85, %v553
  %v555 = vpop.f32.mrb[0].mxu0
  %556 = vmatprep.mubr.bf16.mxu0 0
  %557 = vmatmul.mubr.bf16.gmra.mrb[0].mxu0 %v315
  %v558 = vpop.f32.mrb[0].mxu0
  %v559 = vadd.f32 %v85, %v558
  %v560 = vpop.f32.mrb[0].mxu0
  %v561 = vpop.f32.mrb[0].mxu0
  %v562 = vadd.f32 %v85, %v561
  %v563 = vpop.f32.mrb[0].mxu0
  %564 = vmatprep.mubr.bf16.mxu0 0
  %565 = vmatmul.mubr.bf16.gmra.mrb[0].mxu0 %v318
  %v566 = vpop.f32.mrb[0].mxu0
  %v567 = vadd.f32 %v85, %v566
  %v568 = vpop.f32.mrb[0].mxu0
  %v569 = vpop.f32.mrb[0].mxu0
  %v570 = vadd.f32 %v85, %v569
  %v571 = vpop.f32.mrb[0].mxu0
  %572 = vmatprep.mubr.bf16.mxu0 0
  %573 = vmatmul.mubr.bf16.gmra.mrb[0].mxu0 %v321
  %v574 = vpop.f32.mrb[0].mxu0
  %v575 = vadd.f32 %v85, %v574
  %v576 = vpop.f32.mrb[0].mxu0
  %v577 = vpop.f32.mrb[0].mxu0
  %v578 = vadd.f32 %v85, %v577
  %v579 = vpop.f32.mrb[0].mxu0
  %580 = vmatprep.mubr.bf16.mxu0 0
  %581 = vmatmul.mubr.bf16.gmra.mrb[0].mxu0 %v324
  %v582 = vpop.f32.mrb[0].mxu0
  %v583 = vadd.f32 %v85, %v582
  %v584 = vpop.f32.mrb[0].mxu0
  %v585 = vpop.f32.mrb[0].mxu0
  %v586 = vadd.f32 %v85, %v585
  %v587 = vpop.f32.mrb[0].mxu0
  %588 = vmatprep.mubr.bf16.mxu0 0
  %589 = vmatmul.mubr.bf16.gmra.mrb[0].mxu0 %v327
  %v590 = vpop.f32.mrb[0].mxu0
  %v591 = vadd.f32 %v85, %v590
  %v592 = vpop.f32.mrb[0].mxu0
  %v593 = vpop.f32.mrb[0].mxu0
  %v594 = vadd.f32 %v85, %v593
  %v595 = vpop.f32.mrb[0].mxu0
  %596 = vmatprep.mubr.bf16.mxu0 0
  %597 = vmatmul.mubr.bf16.gmra.mrb[0].mxu0 %v330
  %v598 = vpop.f32.mrb[0].mxu0
  %v599 = vadd.f32 %v85, %v598
  %v600 = vpop.f32.mrb[0].mxu0
  %v601 = vpop.f32.mrb[0].mxu0
  %v602 = vadd.f32 %v85, %v601
  %v603 = vpop.f32.mrb[0].mxu0
  %604 = vmatprep.mubr.bf16.mxu0 0
  %605 = vmatmul.mubr.bf16.gmra.mrb[0].mxu0 %v333
  %v606 = vpop.f32.mrb[0].mxu0
  %v607 = vadd.f32 %v85, %v606
  %v608 = vpop.f32.mrb[0].mxu0
  %v609 = vpop.f32.mrb[0].mxu0
  %v610 = vadd.f32 %v85, %v609
  %v611 = vpop.f32.mrb[0].mxu0
  %612 = vmatprep.mubr.bf16.mxu0 0
  %613 = vmatmul.mubr.bf16.gmra.mrb[0].mxu0 %v336
  %v614 = vpop.f32.mrb[0].mxu0
  %v615 = vadd.f32 %v85, %v614
  %v616 = vpop.f32.mrb[0].mxu0
  %v617 = vpop.f32.mrb[0].mxu0
  %v618 = vadd.f32 %v85, %v617
  %v619 = vpop.f32.mrb[0].mxu0
  %620 = vmatprep.mubr.bf16.mxu0 0
  %621 = vmatmul.mubr.bf16.gmra.mrb[0].mxu0 %v339
  %v622 = vpop.f32.mrb[0].mxu0
  %v623 = vadd.f32 %v85, %v622
  %v624 = vpop.f32.mrb[0].mxu0
  %v625 = vpop.f32.mrb[0].mxu0
  %v626 = vadd.f32 %v85, %v625
  %v627 = vpop.f32.mrb[0].mxu0
  %628 = vmatprep.mubr.bf16.mxu0 0
  %629 = vmatmul.mubr.bf16.gmra.mrb[0].mxu0 %v342
  %v630 = vpop.f32.mrb[0].mxu0
  %v631 = vadd.f32 %v85, %v630
  %v632 = vpop.f32.mrb[0].mxu0
  %v633 = vpop.f32.mrb[0].mxu0
  %v634 = vadd.f32 %v85, %v633
  %v635 = vpop.f32.mrb[0].mxu0
  %636 = vdwg.mxu0
  %v637 = vpack.c.bf16 %v386, %v383
  %v638 = vpack.c.bf16 %v394, %v391
  %v639 = vpack.c.bf16 %v402, %v399
  %v640 = vpack.c.bf16 %v410, %v407
  %v641 = vpack.c.bf16 %v418, %v415
  %v642 = vpack.c.bf16 %v426, %v423
  %v643 = vpack.c.bf16 %v434, %v431
  %v644 = vpack.c.bf16 %v442, %v439
  %v645 = vpack.c.bf16 %v450, %v447
  %v646 = vpack.c.bf16 %v458, %v455
  %v647 = vpack.c.bf16 %v466, %v463
  %v648 = vpack.c.bf16 %v474, %v471
  %v649 = vpack.c.bf16 %v482, %v479
  %v650 = vpack.c.bf16 %v490, %v487
  %v651 = vpack.c.bf16 %v498, %v495
  %v652 = vpack.c.bf16 %v506, %v503
  %v653 = vpack.c.bf16 %v514, %v511
  %v654 = vpack.c.bf16 %v522, %v519
  %v655 = vpack.c.bf16 %v530, %v527
  %v656 = vpack.c.bf16 %v538, %v535
  %v657 = vpack.c.bf16 %v546, %v543
  %v658 = vpack.c.bf16 %v554, %v551
  %v659 = vpack.c.bf16 %v562, %v559
  %v660 = vpack.c.bf16 %v570, %v567
  %v661 = vpack.c.bf16 %v578, %v575
  %v662 = vpack.c.bf16 %v586, %v583
  %v663 = vpack.c.bf16 %v594, %v591
  %v664 = vpack.c.bf16 %v602, %v599
  %v665 = vpack.c.bf16 %v610, %v607
  %v666 = vpack.c.bf16 %v618, %v615
  %v667 = vpack.c.bf16 %v626, %v623
  %v668 = vpack.c.bf16 %v634, %v631
  %v701 = vunpack.c.l.b16 %v637
  %v702 = vunpack.c.h.b16 %v637
  %v703 = vunpack.c.l.b16 %v638
  %v704 = vunpack.c.h.b16 %v638
  %v705 = vunpack.c.l.b16 %v639
  %v706 = vunpack.c.h.b16 %v639
  %v707 = vunpack.c.l.b16 %v640
  %v708 = vunpack.c.h.b16 %v640
  %v709 = vunpack.c.l.b16 %v641
  %v710 = vunpack.c.h.b16 %v641
  %v711 = vunpack.c.l.b16 %v642
  %v712 = vunpack.c.h.b16 %v642
  %v713 = vunpack.c.l.b16 %v643
  %v714 = vunpack.c.h.b16 %v643
  %v715 = vunpack.c.l.b16 %v644
  %v716 = vunpack.c.h.b16 %v644
  %v717 = vunpack.c.l.b16 %v645
  %v718 = vunpack.c.h.b16 %v645
  %v719 = vunpack.c.l.b16 %v646
  %v720 = vunpack.c.h.b16 %v646
  %v721 = vunpack.c.l.b16 %v647
  %v722 = vunpack.c.h.b16 %v647
  %v723 = vunpack.c.l.b16 %v648
  %v724 = vunpack.c.h.b16 %v648
  %v725 = vunpack.c.l.b16 %v649
  %v726 = vunpack.c.h.b16 %v649
  %v727 = vunpack.c.l.b16 %v650
  %v728 = vunpack.c.h.b16 %v650
  %v729 = vunpack.c.l.b16 %v651
  %v730 = vunpack.c.h.b16 %v651
  %v731 = vunpack.c.l.b16 %v652
  %v732 = vunpack.c.h.b16 %v652
  %v733 = vunpack.c.l.b16 %v653
  %v734 = vunpack.c.h.b16 %v653
  %v735 = vunpack.c.l.b16 %v654
  %v736 = vunpack.c.h.b16 %v654
  %v737 = vunpack.c.l.b16 %v655
  %v738 = vunpack.c.h.b16 %v655
  %v739 = vunpack.c.l.b16 %v656
  %v740 = vunpack.c.h.b16 %v656
  %v741 = vunpack.c.l.b16 %v657
  %v742 = vunpack.c.h.b16 %v657
  %v743 = vunpack.c.l.b16 %v658
  %v744 = vunpack.c.h.b16 %v658
  %v745 = vunpack.c.l.b16 %v659
  %v746 = vunpack.c.h.b16 %v659
  %v747 = vunpack.c.l.b16 %v660
  %v748 = vunpack.c.h.b16 %v660
  %v749 = vunpack.c.l.b16 %v661
  %v750 = vunpack.c.h.b16 %v661
  %v751 = vunpack.c.l.b16 %v662
  %v752 = vunpack.c.h.b16 %v662
  %v753 = vunpack.c.l.b16 %v663
  %v754 = vunpack.c.h.b16 %v663
  %v755 = vunpack.c.l.b16 %v664
  %v756 = vunpack.c.h.b16 %v664
  %v757 = vunpack.c.l.b16 %v665
  %v758 = vunpack.c.h.b16 %v665
  %v759 = vunpack.c.l.b16 %v666
  %v760 = vunpack.c.h.b16 %v666
  %v761 = vunpack.c.l.b16 %v667
  %v762 = vunpack.c.h.b16 %v667
  %v763 = vunpack.c.l.b16 %v668
  %v764 = vunpack.c.h.b16 %v668
  %v765 = vpack.c.b16 %v701, %v701
  %v766 = vpack.c.b16 %v702, %v702
  %v767 = vpack.c.b16 %v703, %v703
  %v768 = vpack.c.b16 %v704, %v704
  %v769 = vpack.c.b16 %v705, %v705
  %v770 = vpack.c.b16 %v706, %v706
  %v771 = vpack.c.b16 %v707, %v707
  %v772 = vpack.c.b16 %v708, %v708
  %v773 = vpack.c.b16 %v709, %v709
  %v774 = vpack.c.b16 %v710, %v710
  %v775 = vpack.c.b16 %v711, %v711
  %v776 = vpack.c.b16 %v712, %v712
  %v777 = vpack.c.b16 %v713, %v713
  %v778 = vpack.c.b16 %v714, %v714
  %v779 = vpack.c.b16 %v715, %v715
  %v780 = vpack.c.b16 %v716, %v716
  %v781 = vpack.c.b16 %v717, %v717
  %v782 = vpack.c.b16 %v718, %v718
  %v783 = vpack.c.b16 %v719, %v719
  %v784 = vpack.c.b16 %v720, %v720
  %v785 = vpack.c.b16 %v721, %v721
  %v786 = vpack.c.b16 %v722, %v722
  %v787 = vpack.c.b16 %v723, %v723
  %v788 = vpack.c.b16 %v724, %v724
  %v789 = vpack.c.b16 %v725, %v725
  %v790 = vpack.c.b16 %v726, %v726
  %v791 = vpack.c.b16 %v727, %v727
  %v792 = vpack.c.b16 %v728, %v728
  %v793 = vpack.c.b16 %v729, %v729
  %v794 = vpack.c.b16 %v730, %v730
  %v795 = vpack.c.b16 %v731, %v731
  %v796 = vpack.c.b16 %v732, %v732
  %v797 = vpack.c.b16 %v733, %v733
  %v798 = vpack.c.b16 %v734, %v734
  %v799 = vpack.c.b16 %v735, %v735
  %v800 = vpack.c.b16 %v736, %v736
  %v801 = vpack.c.b16 %v737, %v737
  %v802 = vpack.c.b16 %v738, %v738
  %v803 = vpack.c.b16 %v739, %v739
  %v804 = vpack.c.b16 %v740, %v740
  %v805 = vpack.c.b16 %v741, %v741
  %v806 = vpack.c.b16 %v742, %v742
  %v807 = vpack.c.b16 %v743, %v743
  %v808 = vpack.c.b16 %v744, %v744
  %v809 = vpack.c.b16 %v745, %v745
  %v810 = vpack.c.b16 %v746, %v746
  %v811 = vpack.c.b16 %v747, %v747
  %v812 = vpack.c.b16 %v748, %v748
  %v813 = vpack.c.b16 %v749, %v749
  %v814 = vpack.c.b16 %v750, %v750
  %v815 = vpack.c.b16 %v751, %v751
  %v816 = vpack.c.b16 %v752, %v752
  %v817 = vpack.c.b16 %v753, %v753
  %v818 = vpack.c.b16 %v754, %v754
  %v819 = vpack.c.b16 %v755, %v755
  %v820 = vpack.c.b16 %v756, %v756
  %v821 = vpack.c.b16 %v757, %v757
  %v822 = vpack.c.b16 %v758, %v758
  %v823 = vpack.c.b16 %v759, %v759
  %v824 = vpack.c.b16 %v760, %v760
  %v825 = vpack.c.b16 %v761, %v761
  %v826 = vpack.c.b16 %v762, %v762
  %v827 = vpack.c.b16 %v763, %v763
  %v828 = vpack.c.b16 %v764, %v764
  %vm893 = vcmask 60416
  %894 = vst.msk [vmem:[%s3] sm:$0xf] %vm893, %v765
  %895 = vst.msk [vmem:[%s3 + $0x4] sm:$0xf] %vm893, %v766
  %896 = vst.msk [vmem:[%s3 + $0x8] sm:$0xf] %vm893, %v767
  %897 = vst.msk [vmem:[%s3 + $0xc] sm:$0xf] %vm893, %v768
  %898 = vst.msk [vmem:[%s3 + $0x10] sm:$0xf] %vm893, %v769
  %899 = vst.msk [vmem:[%s3 + $0x14] sm:$0xf] %vm893, %v770
  %900 = vst.msk [vmem:[%s3 + $0x18] sm:$0xf] %vm893, %v771
  %901 = vst.msk [vmem:[%s3 + $0x1c] sm:$0xf] %vm893, %v772
  %902 = vst.msk [vmem:[%s3 + $0x20] sm:$0xf] %vm893, %v773
  %903 = vst.msk [vmem:[%s3 + $0x24] sm:$0xf] %vm893, %v774
  %904 = vst.msk [vmem:[%s3 + $0x28] sm:$0xf] %vm893, %v775
  %905 = vst.msk [vmem:[%s3 + $0x2c] sm:$0xf] %vm893, %v776
  %906 = vst.msk [vmem:[%s3 + $0x30] sm:$0xf] %vm893, %v777
  %907 = vst.msk [vmem:[%s3 + $0x34] sm:$0xf] %vm893, %v778
  %908 = vst.msk [vmem:[%s3 + $0x38] sm:$0xf] %vm893, %v779
  %909 = vst.msk [vmem:[%s3 + $0x3c] sm:$0xf] %vm893, %v780
  %910 = vst.msk [vmem:[%s3 + $0x40] sm:$0xf] %vm893, %v781
  %911 = vst.msk [vmem:[%s3 + $0x44] sm:$0xf] %vm893, %v782
  %912 = vst.msk [vmem:[%s3 + $0x48] sm:$0xf] %vm893, %v783
  %913 = vst.msk [vmem:[%s3 + $0x4c] sm:$0xf] %vm893, %v784
  %914 = vst.msk [vmem:[%s3 + $0x50] sm:$0xf] %vm893, %v785
  %915 = vst.msk [vmem:[%s3 + $0x54] sm:$0xf] %vm893, %v786
  %916 = vst.msk [vmem:[%s3 + $0x58] sm:$0xf] %vm893, %v787
  %917 = vst.msk [vmem:[%s3 + $0x5c] sm:$0xf] %vm893, %v788
  %918 = vst.msk [vmem:[%s3 + $0x60] sm:$0xf] %vm893, %v789
  %919 = vst.msk [vmem:[%s3 + $0x64] sm:$0xf] %vm893, %v790
  %920 = vst.msk [vmem:[%s3 + $0x68] sm:$0xf] %vm893, %v791
  %921 = vst.msk [vmem:[%s3 + $0x6c] sm:$0xf] %vm893, %v792
  %922 = vst.msk [vmem:[%s3 + $0x70] sm:$0xf] %vm893, %v793
  %923 = vst.msk [vmem:[%s3 + $0x74] sm:$0xf] %vm893, %v794
  %924 = vst.msk [vmem:[%s3 + $0x78] sm:$0xf] %vm893, %v795
  %925 = vst.msk [vmem:[%s3 + $0x7c] sm:$0xf] %vm893, %v796
  %926 = vst.msk [vmem:[%s3 + $0x80] sm:$0xf] %vm893, %v797
  %927 = vst.msk [vmem:[%s3 + $0x84] sm:$0xf] %vm893, %v798
  %928 = vst.msk [vmem:[%s3 + $0x88] sm:$0xf] %vm893, %v799
  %929 = vst.msk [vmem:[%s3 + $0x8c] sm:$0xf] %vm893, %v800
  %930 = vst.msk [vmem:[%s3 + $0x90] sm:$0xf] %vm893, %v801
  %931 = vst.msk [vmem:[%s3 + $0x94] sm:$0xf] %vm893, %v802
  %932 = vst.msk [vmem:[%s3 + $0x98] sm:$0xf] %vm893, %v803
  %933 = vst.msk [vmem:[%s3 + $0x9c] sm:$0xf] %vm893, %v804
  %934 = vst.msk [vmem:[%s3 + $0xa0] sm:$0xf] %vm893, %v805
  %935 = vst.msk [vmem:[%s3 + $0xa4] sm:$0xf] %vm893, %v806
  %936 = vst.msk [vmem:[%s3 + $0xa8] sm:$0xf] %vm893, %v807
  %937 = vst.msk [vmem:[%s3 + $0xac] sm:$0xf] %vm893, %v808
  %938 = vst.msk [vmem:[%s3 + $0xb0] sm:$0xf] %vm893, %v809
  %939 = vst.msk [vmem:[%s3 + $0xb4] sm:$0xf] %vm893, %v810
  %940 = vst.msk [vmem:[%s3 + $0xb8] sm:$0xf] %vm893, %v811
  %941 = vst.msk [vmem:[%s3 + $0xbc] sm:$0xf] %vm893, %v812
  %942 = vst.msk [vmem:[%s3 + $0xc0] sm:$0xf] %vm893, %v813
  %943 = vst.msk [vmem:[%s3 + $0xc4] sm:$0xf] %vm893, %v814
  %944 = vst.msk [vmem:[%s3 + $0xc8] sm:$0xf] %vm893, %v815
  %945 = vst.msk [vmem:[%s3 + $0xcc] sm:$0xf] %vm893, %v816
  %946 = vst.msk [vmem:[%s3 + $0xd0] sm:$0xf] %vm893, %v817
  %947 = vst.msk [vmem:[%s3 + $0xd4] sm:$0xf] %vm893, %v818
  %948 = vst.msk [vmem:[%s3 + $0xd8] sm:$0xf] %vm893, %v819
  %949 = vst.msk [vmem:[%s3 + $0xdc] sm:$0xf] %vm893, %v820
  %950 = vst.msk [vmem:[%s3 + $0xe0] sm:$0xf] %vm893, %v821
  %951 = vst.msk [vmem:[%s3 + $0xe4] sm:$0xf] %vm893, %v822
  %952 = vst.msk [vmem:[%s3 + $0xe8] sm:$0xf] %vm893, %v823
  %953 = vst.msk [vmem:[%s3 + $0xec] sm:$0xf] %vm893, %v824
  %954 = vst.msk [vmem:[%s3 + $0xf0] sm:$0xf] %vm893, %v825
  %955 = vst.msk [vmem:[%s3 + $0xf4] sm:$0xf] %vm893, %v826
  %956 = vst.msk [vmem:[%s3 + $0xf8] sm:$0xf] %vm893, %v827
  %957 = vst.msk [vmem:[%s3 + $0xfc] sm:$0xf] %vm893, %v828
  // Predicated region
  $region14: #{_lambda_.8} parent=0 // pred_check
    _
  $region15: #{_lambda_.8} parent=0 // pred_check_branch
    %959 = sbr.rel (0) target = $region17
  $region16: #{_lambda_.8} parent=0 // pred_region
    _
  $region17: #{_lambda_.8} parent=0 // pred_fallthru
    _
  // Predicated region
  $region18: #{_lambda_.8} parent=0 // pred_check
    _
  $region19: #{_lambda_.8} parent=0 // pred_check_branch
    %961 = sbr.rel (0) target = $region21
  $region20: #{_lambda_.8} parent=0 // pred_region
    _
  $region21: #{_lambda_.8} parent=0 // pred_fallthru
    _

// kernel: reverse.4
$region0: #{reverse.4}
  #allocation0 [shape = 's32[1]{0}', space=sflag, size = 0x4, scoped, tag = 'scoped memory for reverse.4']
  %s0 = inlined_call_operand.vmem [shape: f32[2,16,8,7], index: 0, kind: input, shape index: {}]
  %s1 = inlined_call_operand.vmem [shape: f32[2,16,8,7], index: 1, kind: output, shape index: {}]
  %s2 = scalar_lea.vmem %s0, 96
  %v3 = vld [vmem:[%s2] sm:$0xff]
  %4 = vst [vmem:[%s1] sm:$0xff] %v3
  %s5 = scalar_lea.vmem %s0, 80
  %v6 = vld [vmem:[%s5] sm:$0xff]
  %s7 = scalar_lea.vmem %s1, 16
  %8 = vst [vmem:[%s7] sm:$0xff] %v6
  %s9 = scalar_lea.vmem %s0, 64
  %v10 = vld [vmem:[%s9] sm:$0xff]
  %s11 = scalar_lea.vmem %s1, 32
  %12 = vst [vmem:[%s11] sm:$0xff] %v10
  %s13 = scalar_lea.vmem %s0, 48
  %v14 = vld [vmem:[%s13] sm:$0xff]
  %s15 = scalar_lea.vmem %s1, 48
  %16 = vst [vmem:[%s15] sm:$0xff] %v14
  %s17 = scalar_lea.vmem %s0, 32
  %v18 = vld [vmem:[%s17] sm:$0xff]
  %s19 = scalar_lea.vmem %s1, 64
  %20 = vst [vmem:[%s19] sm:$0xff] %v18
  %s21 = scalar_lea.vmem %s0, 16
  %v22 = vld [vmem:[%s21] sm:$0xff]
  %s23 = scalar_lea.vmem %s1, 80
  %24 = vst [vmem:[%s23] sm:$0xff] %v22
  %v25 = vld [vmem:[%s0] sm:$0xff]
  %s26 = scalar_lea.vmem %s1, 96
  %27 = vst [vmem:[%s26] sm:$0xff] %v25
  %s28 = scalar_lea.vmem %s0, 104
  %v29 = vld [vmem:[%s28] sm:$0xff]
  %s30 = scalar_lea.vmem %s1, 8
  %31 = vst [vmem:[%s30] sm:$0xff] %v29
  %s32 = scalar_lea.vmem %s0, 88
  %v33 = vld [vmem:[%s32] sm:$0xff]
  %s34 = scalar_lea.vmem %s1, 24
  %35 = vst [vmem:[%s34] sm:$0xff] %v33
  %s36 = scalar_lea.vmem %s0, 72
  %v37 = vld [vmem:[%s36] sm:$0xff]
  %s38 = scalar_lea.vmem %s1, 40
  %39 = vst [vmem:[%s38] sm:$0xff] %v37
  %s40 = scalar_lea.vmem %s0, 56
  %v41 = vld [vmem:[%s40] sm:$0xff]
  %s42 = scalar_lea.vmem %s1, 56
  %43 = vst [vmem:[%s42] sm:$0xff] %v41
  %s44 = scalar_lea.vmem %s0, 40
  %v45 = vld [vmem:[%s44] sm:$0xff]
  %s46 = scalar_lea.vmem %s1, 72
  %47 = vst [vmem:[%s46] sm:$0xff] %v45
  %s48 = scalar_lea.vmem %s0, 24
  %v49 = vld [vmem:[%s48] sm:$0xff]
  %s50 = scalar_lea.vmem %s1, 88
  %51 = vst [vmem:[%s50] sm:$0xff] %v49
  %s52 = scalar_lea.vmem %s0, 8
  %v53 = vld [vmem:[%s52] sm:$0xff]
  %s54 = scalar_lea.vmem %s1, 104
  %55 = vst [vmem:[%s54] sm:$0xff] %v53

// kernel: _lambda_.10
$region0: #{_lambda_.10}
  #allocation0 [shape = 'u32[]', space=smem, size = 0x4, offset = 0x4, fixed_abs, tag = 'smem constant byte address 0x4 - core index']
  #allocation1 [shape = 'u32[144,128]{1,0:T(1,128)}', space=vmem, size = 0x12000, scoped, tag = 'internal scratch']
  %s0 = inlined_call_operand.vmem [shape: bf16[16,512], index: 0, kind: input, shape index: {}]
  %s1 = inlined_call_operand.vmem [shape: bf16[512,256], index: 1, kind: input, shape index: {}]
  %s2 = inlined_call_operand.vmem [shape: bf16[16,256], index: 2, kind: output, shape index: {}]
  %s3 = sld [smem:[#allocation0]]
  $region119: #{_lambda_.10} parent=0
    _
  %s5 = ssub.s32 1, %s3
  %s6 = scalar_select 0, %s5, %s3
  $region1: #{_lambda_.10} parent=0
    #allocation2 [shape = 'u8[262144]{0}', space=vmem, size = 0x40000, scoped, tag = 'input window, operand 1']
    #allocation3 [shape = 'u8[8192]{0}', space=vmem, size = 0x2000, scoped, tag = 'output window, operand 0']
    loop: start=0, step=1, limit=4
    $region2: #{_lambda_.10} parent=1 // loop_pre_header
      _
    $region3: #{_lambda_.10} parent=1 // loop_header
      %s8 = sphi 0, %s12
      %p9 = scmp.ge.s32.totalorder %s8, 4
      %s15 = sphi 0, %s27
      %s16 = sphi 0, %s23
      %s17 = sphi 0, %s15
      %s18 = sphi 0, %s16
      %s19 = sphi 0, %s17
      %s20 = sphi 0, %s18
      %s30 = sphi 0, %s32
      %s33 = sphi 0, %s30
      %s34 = sphi 0, %s33
      %s50 = sphi 0, %s34
      %s56 = sphi 0, %s58
      %s59 = sphi 0, %s56
      %s60 = sphi 0, %s59
      %s76 = sphi 0, %s60
      %s84 = sphi 0, %s86
      %s87 = sphi 0, %s84
      %s88 = sphi 0, %s87
      %s104 = sphi 0, %s88
    $region4: #{_lambda_.10} parent=1 // loop_header_branch
      %11 = sbr.rel (%p9) target = $region8
    $region5: #{_lambda_.10} parent=1 // loop_body
      %s13 = ssub.s32 %s8, 1
      %s14 = ssub.s32 %s8, 2
      %s21 = sadd.s32 1, %s16
      %p22 = scmp.ge.s32.totalorder %s21, 2
      %s23 = scalar_select %p22, 0, %s21
      %s24 = sadd.s32 1, %s15
      %s25 = scalar_select %p22, %s24, %s15
      %p26 = scmp.ge.s32.totalorder %s25, 1
      %s27 = scalar_select %p26, 0, %s25
      %s28 = ssub.s32 %s15, %s27
      %p29 = scmp.eq.s32.totalorder %s28, 0
      %s31 = sadd.s32 %s30, 1
      %s32 = scalar_select %p29, %s30, %s31
      %p35 = pneg %p29
      %p36 = scmp.eq.s32.totalorder %s8, 1
      %p37 = por %p35, %p36
      %p38 = scmp.ne.s32.totalorder %s30, %s33
      %p39 = scmp.eq.s32.totalorder %s8, 0
      %p40 = por %p38, %p39
      %p41 = scmp.ne.s32.totalorder %s30, %s33
      %p42 = scmp.eq.s32.totalorder %s13, 1
      %p43 = por %p41, %p42
      %p44 = scmp.ne.s32.totalorder %s33, %s34
      %p45 = scmp.eq.s32.totalorder %s13, 0
      %p46 = por %p44, %p45
      %p47 = scmp.ne.s32.totalorder %s33, %s34
      %p48 = scmp.eq.s32.totalorder %s14, 1
      %p49 = por %p47, %p48
      %p51 = scmp.ne.s32.totalorder %s34, %s50
      %p52 = scmp.eq.s32.totalorder %s14, 0
      %p53 = por %p51, %p52
      %s54 = ssub.s32 %s16, %s23
      %p55 = scmp.eq.s32.totalorder %s54, 0
      %s57 = sadd.s32 %s56, 1
      %s58 = scalar_select %p55, %s56, %s57
      %p61 = pneg %p55
      %p62 = scmp.eq.s32.totalorder %s8, 1
      %p63 = por %p61, %p62
      %p64 = scmp.ne.s32.totalorder %s56, %s59
      %p65 = scmp.eq.s32.totalorder %s8, 0
      %p66 = por %p64, %p65
      %p67 = scmp.ne.s32.totalorder %s56, %s59
      %p68 = scmp.eq.s32.totalorder %s13, 1
      %p69 = por %p67, %p68
      %p70 = scmp.ne.s32.totalorder %s59, %s60
      %p71 = scmp.eq.s32.totalorder %s13, 0
      %p72 = por %p70, %p71
      %p73 = scmp.ne.s32.totalorder %s59, %s60
      %p74 = scmp.eq.s32.totalorder %s14, 1
      %p75 = por %p73, %p74
      %p77 = scmp.ne.s32.totalorder %s60, %s76
      %p78 = scmp.eq.s32.totalorder %s14, 0
      %p79 = por %p77, %p78
      %s80 = ssub.s32 %s15, %s27
      %s81 = ssub.s32 %s16, %s23
      %s82 = sor.u32 %s80, %s81
      %p83 = scmp.eq.s32.totalorder %s82, 0
      %s85 = sadd.s32 %s84, 1
      %s86 = scalar_select %p83, %s84, %s85
      %p89 = pneg %p83
      %p90 = scmp.eq.s32.totalorder %s8, 1
      %p91 = por %p89, %p90
      %p92 = scmp.ne.s32.totalorder %s84, %s87
      %p93 = scmp.eq.s32.totalorder %s8, 0
      %p94 = por %p92, %p93
      %p95 = scmp.ne.s32.totalorder %s84, %s87
      %p96 = scmp.eq.s32.totalorder %s13, 1
      %p97 = por %p95, %p96
      %p98 = scmp.ne.s32.totalorder %s87, %s88
      %p99 = scmp.eq.s32.totalorder %s13, 0
      %p100 = por %p98, %p99
      %p101 = scmp.ne.s32.totalorder %s87, %s88
      %p102 = scmp.eq.s32.totalorder %s14, 1
      %p103 = por %p101, %p102
      %p105 = scmp.ne.s32.totalorder %s88, %s104
      %p106 = scmp.eq.s32.totalorder %s14, 0
      %p107 = por %p105, %p106
      %p108 = scmp.le.s32.totalorder 1, %s8
      %p109 = scmp.lt.s32.totalorder %s8, 3
      %p110 = pnand %p108, %p109
      %p111 = pneg %p110
      // Predicated region
      $region9: #{_lambda_.10} parent=5 // pred_check
        _
      $region10: #{_lambda_.10} parent=5 // pred_check_branch
        %113 = sbr.rel (%p110) target = $region12
      $region11: #{_lambda_.10} parent=5 // pred_region
        %s114 = ssub.s32 %s8, 1
        // Predicated region
        $region13: #{_lambda_.10} parent=11 // pred_check
          %p115 = pneg %p46
        $region14: #{_lambda_.10} parent=11 // pred_check_branch
          %117 = sbr.rel (%p115) target = $region16
        $region15: #{_lambda_.10} parent=11 // pred_region
          %s118 = smul.u32 2, %s17
          %p119 = scmp.lt.s32.totalorder %s118, 1
          %s120 = scalar_select %p119, %s118, 1
          %s121 = smul.addr %s120, 4
          %s122 = smul.addr %s121, 4
          %s123 = scalar_lea.vmem %s0, %s122
          %s124 = smul.u32 2, %s17
        $region16: #{_lambda_.10} parent=11 // pred_fallthru
          _
      $region12: #{_lambda_.10} parent=5 // pred_fallthru
        _
      %p125 = scmp.lt.s32.totalorder %s8, 2
      // Predicated region
      $region17: #{_lambda_.10} parent=5 // pred_check
        %p126 = pneg %p125
      $region18: #{_lambda_.10} parent=5 // pred_check_branch
        %128 = sbr.rel (%p126) target = $region20
      $region19: #{_lambda_.10} parent=5 // pred_region
        // Predicated region
        $region21: #{_lambda_.10} parent=19 // pred_check
          %p129 = pneg %p66
        $region22: #{_lambda_.10} parent=19 // pred_check_branch
          %131 = sbr.rel (%p129) target = $region24
        $region23: #{_lambda_.10} parent=19 // pred_region
          %s132 = sand.u32 %s56, 1
          %s133 = sand.u32 %s56, 1
          %s134 = smul.addr %s133, 256
          %s135 = scalar_lea.vmem [#allocation2], %s134
          %s136 = smul.addr %s16, 4
          %s137 = scalar_lea.vmem %s1, %s136
          // Predicated region
          $region25: #{_lambda_.10} parent=23 // pred_check
            _
          $region26: #{_lambda_.10} parent=23 // pred_check_branch
            %139 = sbr.rel (0) target = $region28
          $region27: #{_lambda_.10} parent=23 // pred_region
            // Predicated region
            $region29: #{_lambda_.10} parent=27 // pred_check
              _
            $region30: #{_lambda_.10} parent=27 // pred_check_branch
              %141 = sbr.rel target = $region32
            $region31: #{_lambda_.10} parent=27 // pred_region
              // Predicated region
              $region44: #{_lambda_.10} parent=31 // pred_check
                _
              $region45: #{_lambda_.10} parent=31 // pred_check_branch
                %282 = sbr.rel (0) target = $region47
              $region46: #{_lambda_.10} parent=31 // pred_region
                loop: start=0, step=1, limit=1
                $region48: #{_lambda_.10} parent=46 // loop_pre_header
                  _
                $region49: #{_lambda_.10} parent=46 // loop_header
                  %s284 = sphi 0, %s288
                  %p285 = scmp.ge.s32.totalorder %s284, 1
                  %s289 = sphi %s137, %s137
                  %s290 = sphi %s135, %s135
                $region50: #{_lambda_.10} parent=46 // loop_header_branch
                  %287 = sbr.rel (%p285) target = $region54
                $region51: #{_lambda_.10} parent=46 // loop_body
                  _
                $region52: #{_lambda_.10} parent=46 // loop_footer
                  %s288 = sadd.s32 1, %s284
                $region53: #{_lambda_.10} parent=46 // loop_footer_branch
                  %283 = sbr.rel target = $region49
                $region54: #{_lambda_.10} parent=46 // loop_exit
                  _
                loop: start=0, step=1, limit=1
                $region55: #{_lambda_.10} parent=46 // loop_pre_header
                  _
                $region56: #{_lambda_.10} parent=46 // loop_header
                  %s293 = sphi 0, %s297
                  %p294 = scmp.ge.s32.totalorder %s293, 1
                  %s298 = sphi %s137, %s137
                  %s299 = sphi %s135, %s135
                $region57: #{_lambda_.10} parent=46 // loop_header_branch
                  %296 = sbr.rel (%p294) target = $region61
                $region58: #{_lambda_.10} parent=46 // loop_body
                  %v300 = vld [vmem:[%s298] sm:$0xf]
                  %301 = vst [vmem:[%s299] sm:$0xf] %v300
                  %v302 = vld [vmem:[%s298 + $0x8] sm:$0xf]
                  %303 = vst [vmem:[%s299 + $0x4] sm:$0xf] %v302
                  %v304 = vld [vmem:[%s298 + $0x10] sm:$0xf]
                  %305 = vst [vmem:[%s299 + $0x8] sm:$0xf] %v304
                  %v306 = vld [vmem:[%s298 + $0x18] sm:$0xf]
                  %307 = vst [vmem:[%s299 + $0xc] sm:$0xf] %v306
                  %v308 = vld [vmem:[%s298 + $0x20] sm:$0xf]
                  %309 = vst [vmem:[%s299 + $0x10] sm:$0xf] %v308
                  %v310 = vld [vmem:[%s298 + $0x28] sm:$0xf]
                  %311 = vst [vmem:[%s299 + $0x14] sm:$0xf] %v310
                  %v312 = vld [vmem:[%s298 + $0x30] sm:$0xf]
                  %313 = vst [vmem:[%s299 + $0x18] sm:$0xf] %v312
                  %v314 = vld [vmem:[%s298 + $0x38] sm:$0xf]
                  %315 = vst [vmem:[%s299 + $0x1c] sm:$0xf] %v314
                  %v316 = vld [vmem:[%s298 + $0x40] sm:$0xf]
                  %317 = vst [vmem:[%s299 + $0x20] sm:$0xf] %v316
                  %v318 = vld [vmem:[%s298 + $0x48] sm:$0xf]
                  %319 = vst [vmem:[%s299 + $0x24] sm:$0xf] %v318
                  %v320 = vld [vmem:[%s298 + $0x50] sm:$0xf]
                  %321 = vst [vmem:[%s299 + $0x28] sm:$0xf] %v320
                  %v322 = vld [vmem:[%s298 + $0x58] sm:$0xf]
                  %323 = vst [vmem:[%s299 + $0x2c] sm:$0xf] %v322
                  %v324 = vld [vmem:[%s298 + $0x60] sm:$0xf]
                  %325 = vst [vmem:[%s299 + $0x30] sm:$0xf] %v324
                  %v326 = vld [vmem:[%s298 + $0x68] sm:$0xf]
                  %327 = vst [vmem:[%s299 + $0x34] sm:$0xf] %v326
                  %v328 = vld [vmem:[%s298 + $0x70] sm:$0xf]
                  %329 = vst [vmem:[%s299 + $0x38] sm:$0xf] %v328
                  %v330 = vld [vmem:[%s298 + $0x78] sm:$0xf]
                  %331 = vst [vmem:[%s299 + $0x3c] sm:$0xf] %v330
                  %v332 = vld [vmem:[%s298 + $0x80] sm:$0xf]
                  %333 = vst [vmem:[%s299 + $0x40] sm:$0xf] %v332
                  %v334 = vld [vmem:[%s298 + $0x88] sm:$0xf]
                  %335 = vst [vmem:[%s299 + $0x44] sm:$0xf] %v334
                  %v336 = vld [vmem:[%s298 + $0x90] sm:$0xf]
                  %337 = vst [vmem:[%s299 + $0x48] sm:$0xf] %v336
                  %v338 = vld [vmem:[%s298 + $0x98] sm:$0xf]
                  %339 = vst [vmem:[%s299 + $0x4c] sm:$0xf] %v338
                  %v340 = vld [vmem:[%s298 + $0xa0] sm:$0xf]
                  %341 = vst [vmem:[%s299 + $0x50] sm:$0xf] %v340
                  %v342 = vld [vmem:[%s298 + $0xa8] sm:$0xf]
                  %343 = vst [vmem:[%s299 + $0x54] sm:$0xf] %v342
                  %v344 = vld [vmem:[%s298 + $0xb0] sm:$0xf]
                  %345 = vst [vmem:[%s299 + $0x58] sm:$0xf] %v344
                  %v346 = vld [vmem:[%s298 + $0xb8] sm:$0xf]
                  %347 = vst [vmem:[%s299 + $0x5c] sm:$0xf] %v346
                  %v348 = vld [vmem:[%s298 + $0xc0] sm:$0xf]
                  %349 = vst [vmem:[%s299 + $0x60] sm:$0xf] %v348
                  %v350 = vld [vmem:[%s298 + $0xc8] sm:$0xf]
                  %351 = vst [vmem:[%s299 + $0x64] sm:$0xf] %v350
                  %v352 = vld [vmem:[%s298 + $0xd0] sm:$0xf]
                  %353 = vst [vmem:[%s299 + $0x68] sm:$0xf] %v352
                  %v354 = vld [vmem:[%s298 + $0xd8] sm:$0xf]
                  %355 = vst [vmem:[%s299 + $0x6c] sm:$0xf] %v354
                  %v356 = vld [vmem:[%s298 + $0xe0] sm:$0xf]
                  %357 = vst [vmem:[%s299 + $0x70] sm:$0xf] %v356
                  %v358 = vld [vmem:[%s298 + $0xe8] sm:$0xf]
                  %359 = vst [vmem:[%s299 + $0x74] sm:$0xf] %v358
                  %v360 = vld [vmem:[%s298 + $0xf0] sm:$0xf]
                  %361 = vst [vmem:[%s299 + $0x78] sm:$0xf] %v360
                  %v362 = vld [vmem:[%s298 + $0xf8] sm:$0xf]
                  %363 = vst [vmem:[%s299 + $0x7c] sm:$0xf] %v362
                  %v364 = vld [vmem:[%s298 + $0x100] sm:$0xf]
                  %365 = vst [vmem:[%s299 + $0x80] sm:$0xf] %v364
                  %v366 = vld [vmem:[%s298 + $0x108] sm:$0xf]
                  %367 = vst [vmem:[%s299 + $0x84] sm:$0xf] %v366
                  %v368 = vld [vmem:[%s298 + $0x110] sm:$0xf]
                  %369 = vst [vmem:[%s299 + $0x88] sm:$0xf] %v368
                  %v370 = vld [vmem:[%s298 + $0x118] sm:$0xf]
                  %371 = vst [vmem:[%s299 + $0x8c] sm:$0xf] %v370
                  %v372 = vld [vmem:[%s298 + $0x120] sm:$0xf]
                  %373 = vst [vmem:[%s299 + $0x90] sm:$0xf] %v372
                  %v374 = vld [vmem:[%s298 + $0x128] sm:$0xf]
                  %375 = vst [vmem:[%s299 + $0x94] sm:$0xf] %v374
                  %v376 = vld [vmem:[%s298 + $0x130] sm:$0xf]
                  %377 = vst [vmem:[%s299 + $0x98] sm:$0xf] %v376
                  %v378 = vld [vmem:[%s298 + $0x138] sm:$0xf]
                  %379 = vst [vmem:[%s299 + $0x9c] sm:$0xf] %v378
                  %v380 = vld [vmem:[%s298 + $0x140] sm:$0xf]
                  %381 = vst [vmem:[%s299 + $0xa0] sm:$0xf] %v380
                  %v382 = vld [vmem:[%s298 + $0x148] sm:$0xf]
                  %383 = vst [vmem:[%s299 + $0xa4] sm:$0xf] %v382
                  %v384 = vld [vmem:[%s298 + $0x150] sm:$0xf]
                  %385 = vst [vmem:[%s299 + $0xa8] sm:$0xf] %v384
                  %v386 = vld [vmem:[%s298 + $0x158] sm:$0xf]
                  %387 = vst [vmem:[%s299 + $0xac] sm:$0xf] %v386
                  %v388 = vld [vmem:[%s298 + $0x160] sm:$0xf]
                  %389 = vst [vmem:[%s299 + $0xb0] sm:$0xf] %v388
                  %v390 = vld [vmem:[%s298 + $0x168] sm:$0xf]
                  %391 = vst [vmem:[%s299 + $0xb4] sm:$0xf] %v390
                  %v392 = vld [vmem:[%s298 + $0x170] sm:$0xf]
                  %393 = vst [vmem:[%s299 + $0xb8] sm:$0xf] %v392
                  %v394 = vld [vmem:[%s298 + $0x178] sm:$0xf]
                  %395 = vst [vmem:[%s299 + $0xbc] sm:$0xf] %v394
                  %v396 = vld [vmem:[%s298 + $0x180] sm:$0xf]
                  %397 = vst [vmem:[%s299 + $0xc0] sm:$0xf] %v396
                  %v398 = vld [vmem:[%s298 + $0x188] sm:$0xf]
                  %399 = vst [vmem:[%s299 + $0xc4] sm:$0xf] %v398
                  %v400 = vld [vmem:[%s298 + $0x190] sm:$0xf]
                  %401 = vst [vmem:[%s299 + $0xc8] sm:$0xf] %v400
                  %v402 = vld [vmem:[%s298 + $0x198] sm:$0xf]
                  %403 = vst [vmem:[%s299 + $0xcc] sm:$0xf] %v402
                  %v404 = vld [vmem:[%s298 + $0x1a0] sm:$0xf]
                  %405 = vst [vmem:[%s299 + $0xd0] sm:$0xf] %v404
                  %v406 = vld [vmem:[%s298 + $0x1a8] sm:$0xf]
                  %407 = vst [vmem:[%s299 + $0xd4] sm:$0xf] %v406
                  %v408 = vld [vmem:[%s298 + $0x1b0] sm:$0xf]
                  %409 = vst [vmem:[%s299 + $0xd8] sm:$0xf] %v408
                  %v410 = vld [vmem:[%s298 + $0x1b8] sm:$0xf]
                  %411 = vst [vmem:[%s299 + $0xdc] sm:$0xf] %v410
                  %v412 = vld [vmem:[%s298 + $0x1c0] sm:$0xf]
                  %413 = vst [vmem:[%s299 + $0xe0] sm:$0xf] %v412
                  %v414 = vld [vmem:[%s298 + $0x1c8] sm:$0xf]
                  %415 = vst [vmem:[%s299 + $0xe4] sm:$0xf] %v414
                  %v416 = vld [vmem:[%s298 + $0x1d0] sm:$0xf]
                  %417 = vst [vmem:[%s299 + $0xe8] sm:$0xf] %v416
                  %v418 = vld [vmem:[%s298 + $0x1d8] sm:$0xf]
                  %419 = vst [vmem:[%s299 + $0xec] sm:$0xf] %v418
                  %v420 = vld [vmem:[%s298 + $0x1e0] sm:$0xf]
                  %421 = vst [vmem:[%s299 + $0xf0] sm:$0xf] %v420
                  %v422 = vld [vmem:[%s298 + $0x1e8] sm:$0xf]
                  %423 = vst [vmem:[%s299 + $0xf4] sm:$0xf] %v422
                  %v424 = vld [vmem:[%s298 + $0x1f0] sm:$0xf]
                  %425 = vst [vmem:[%s299 + $0xf8] sm:$0xf] %v424
                  %v426 = vld [vmem:[%s298 + $0x1f8] sm:$0xf]
                  %427 = vst [vmem:[%s299 + $0xfc] sm:$0xf] %v426
                $region59: #{_lambda_.10} parent=46 // loop_footer
                  %s297 = sadd.s32 1, %s293
                $region60: #{_lambda_.10} parent=46 // loop_footer_branch
                  %292 = sbr.rel target = $region56
                $region61: #{_lambda_.10} parent=46 // loop_exit
                  _
              $region47: #{_lambda_.10} parent=31 // pred_fallthru
                _
            $region32: #{_lambda_.10} parent=27 // pred_fallthru
              _
            // Predicated region
            $region33: #{_lambda_.10} parent=27 // pred_check
              _
            $region34: #{_lambda_.10} parent=27 // pred_check_branch
              %143 = sbr.rel (0) target = $region36
            $region35: #{_lambda_.10} parent=27 // pred_region
              loop: start=0, step=1, limit=1
              $region37: #{_lambda_.10} parent=35 // loop_pre_header
                _
              $region38: #{_lambda_.10} parent=35 // loop_header
                %s146 = sphi 0, %s150
                %p147 = scmp.ge.s32.totalorder %s146, 1
                %s151 = sphi %s137, %s137
                %s152 = sphi %s135, %s135
              $region39: #{_lambda_.10} parent=35 // loop_header_branch
                %149 = sbr.rel (%p147) target = $region43
              $region40: #{_lambda_.10} parent=35 // loop_body
                %v153 = vld [vmem:[%s151] sm:$0xf]
                %154 = vst [vmem:[%s152] sm:$0xf] %v153
                %v155 = vld [vmem:[%s151 + $0x8] sm:$0xf]
                %156 = vst [vmem:[%s152 + $0x4] sm:$0xf] %v155
                %v157 = vld [vmem:[%s151 + $0x10] sm:$0xf]
                %158 = vst [vmem:[%s152 + $0x8] sm:$0xf] %v157
                %v159 = vld [vmem:[%s151 + $0x18] sm:$0xf]
                %160 = vst [vmem:[%s152 + $0xc] sm:$0xf] %v159
                %v161 = vld [vmem:[%s151 + $0x20] sm:$0xf]
                %162 = vst [vmem:[%s152 + $0x10] sm:$0xf] %v161
                %v163 = vld [vmem:[%s151 + $0x28] sm:$0xf]
                %164 = vst [vmem:[%s152 + $0x14] sm:$0xf] %v163
                %v165 = vld [vmem:[%s151 + $0x30] sm:$0xf]
                %166 = vst [vmem:[%s152 + $0x18] sm:$0xf] %v165
                %v167 = vld [vmem:[%s151 + $0x38] sm:$0xf]
                %168 = vst [vmem:[%s152 + $0x1c] sm:$0xf] %v167
                %v169 = vld [vmem:[%s151 + $0x40] sm:$0xf]
                %170 = vst [vmem:[%s152 + $0x20] sm:$0xf] %v169
                %v171 = vld [vmem:[%s151 + $0x48] sm:$0xf]
                %172 = vst [vmem:[%s152 + $0x24] sm:$0xf] %v171
                %v173 = vld [vmem:[%s151 + $0x50] sm:$0xf]
                %174 = vst [vmem:[%s152 + $0x28] sm:$0xf] %v173
                %v175 = vld [vmem:[%s151 + $0x58] sm:$0xf]
                %176 = vst [vmem:[%s152 + $0x2c] sm:$0xf] %v175
                %v177 = vld [vmem:[%s151 + $0x60] sm:$0xf]
                %178 = vst [vmem:[%s152 + $0x30] sm:$0xf] %v177
                %v179 = vld [vmem:[%s151 + $0x68] sm:$0xf]
                %180 = vst [vmem:[%s152 + $0x34] sm:$0xf] %v179
                %v181 = vld [vmem:[%s151 + $0x70] sm:$0xf]
                %182 = vst [vmem:[%s152 + $0x38] sm:$0xf] %v181
                %v183 = vld [vmem:[%s151 + $0x78] sm:$0xf]
                %184 = vst [vmem:[%s152 + $0x3c] sm:$0xf] %v183
                %v185 = vld [vmem:[%s151 + $0x80] sm:$0xf]
                %186 = vst [vmem:[%s152 + $0x40] sm:$0xf] %v185
                %v187 = vld [vmem:[%s151 + $0x88] sm:$0xf]
                %188 = vst [vmem:[%s152 + $0x44] sm:$0xf] %v187
                %v189 = vld [vmem:[%s151 + $0x90] sm:$0xf]
                %190 = vst [vmem:[%s152 + $0x48] sm:$0xf] %v189
                %v191 = vld [vmem:[%s151 + $0x98] sm:$0xf]
                %192 = vst [vmem:[%s152 + $0x4c] sm:$0xf] %v191
                %v193 = vld [vmem:[%s151 + $0xa0] sm:$0xf]
                %194 = vst [vmem:[%s152 + $0x50] sm:$0xf] %v193
                %v195 = vld [vmem:[%s151 + $0xa8] sm:$0xf]
                %196 = vst [vmem:[%s152 + $0x54] sm:$0xf] %v195
                %v197 = vld [vmem:[%s151 + $0xb0] sm:$0xf]
                %198 = vst [vmem:[%s152 + $0x58] sm:$0xf] %v197
                %v199 = vld [vmem:[%s151 + $0xb8] sm:$0xf]
                %200 = vst [vmem:[%s152 + $0x5c] sm:$0xf] %v199
                %v201 = vld [vmem:[%s151 + $0xc0] sm:$0xf]
                %202 = vst [vmem:[%s152 + $0x60] sm:$0xf] %v201
                %v203 = vld [vmem:[%s151 + $0xc8] sm:$0xf]
                %204 = vst [vmem:[%s152 + $0x64] sm:$0xf] %v203
                %v205 = vld [vmem:[%s151 + $0xd0] sm:$0xf]
                %206 = vst [vmem:[%s152 + $0x68] sm:$0xf] %v205
                %v207 = vld [vmem:[%s151 + $0xd8] sm:$0xf]
                %208 = vst [vmem:[%s152 + $0x6c] sm:$0xf] %v207
                %v209 = vld [vmem:[%s151 + $0xe0] sm:$0xf]
                %210 = vst [vmem:[%s152 + $0x70] sm:$0xf] %v209
                %v211 = vld [vmem:[%s151 + $0xe8] sm:$0xf]
                %212 = vst [vmem:[%s152 + $0x74] sm:$0xf] %v211
                %v213 = vld [vmem:[%s151 + $0xf0] sm:$0xf]
                %214 = vst [vmem:[%s152 + $0x78] sm:$0xf] %v213
                %v215 = vld [vmem:[%s151 + $0xf8] sm:$0xf]
                %216 = vst [vmem:[%s152 + $0x7c] sm:$0xf] %v215
                %v217 = vld [vmem:[%s151 + $0x100] sm:$0xf]
                %218 = vst [vmem:[%s152 + $0x80] sm:$0xf] %v217
                %v219 = vld [vmem:[%s151 + $0x108] sm:$0xf]
                %220 = vst [vmem:[%s152 + $0x84] sm:$0xf] %v219
                %v221 = vld [vmem:[%s151 + $0x110] sm:$0xf]
                %222 = vst [vmem:[%s152 + $0x88] sm:$0xf] %v221
                %v223 = vld [vmem:[%s151 + $0x118] sm:$0xf]
                %224 = vst [vmem:[%s152 + $0x8c] sm:$0xf] %v223
                %v225 = vld [vmem:[%s151 + $0x120] sm:$0xf]
                %226 = vst [vmem:[%s152 + $0x90] sm:$0xf] %v225
                %v227 = vld [vmem:[%s151 + $0x128] sm:$0xf]
                %228 = vst [vmem:[%s152 + $0x94] sm:$0xf] %v227
                %v229 = vld [vmem:[%s151 + $0x130] sm:$0xf]
                %230 = vst [vmem:[%s152 + $0x98] sm:$0xf] %v229
                %v231 = vld [vmem:[%s151 + $0x138] sm:$0xf]
                %232 = vst [vmem:[%s152 + $0x9c] sm:$0xf] %v231
                %v233 = vld [vmem:[%s151 + $0x140] sm:$0xf]
                %234 = vst [vmem:[%s152 + $0xa0] sm:$0xf] %v233
                %v235 = vld [vmem:[%s151 + $0x148] sm:$0xf]
                %236 = vst [vmem:[%s152 + $0xa4] sm:$0xf] %v235
                %v237 = vld [vmem:[%s151 + $0x150] sm:$0xf]
                %238 = vst [vmem:[%s152 + $0xa8] sm:$0xf] %v237
                %v239 = vld [vmem:[%s151 + $0x158] sm:$0xf]
                %240 = vst [vmem:[%s152 + $0xac] sm:$0xf] %v239
                %v241 = vld [vmem:[%s151 + $0x160] sm:$0xf]
                %242 = vst [vmem:[%s152 + $0xb0] sm:$0xf] %v241
                %v243 = vld [vmem:[%s151 + $0x168] sm:$0xf]
                %244 = vst [vmem:[%s152 + $0xb4] sm:$0xf] %v243
                %v245 = vld [vmem:[%s151 + $0x170] sm:$0xf]
                %246 = vst [vmem:[%s152 + $0xb8] sm:$0xf] %v245
                %v247 = vld [vmem:[%s151 + $0x178] sm:$0xf]
                %248 = vst [vmem:[%s152 + $0xbc] sm:$0xf] %v247
                %v249 = vld [vmem:[%s151 + $0x180] sm:$0xf]
                %250 = vst [vmem:[%s152 + $0xc0] sm:$0xf] %v249
                %v251 = vld [vmem:[%s151 + $0x188] sm:$0xf]
                %252 = vst [vmem:[%s152 + $0xc4] sm:$0xf] %v251
                %v253 = vld [vmem:[%s151 + $0x190] sm:$0xf]
                %254 = vst [vmem:[%s152 + $0xc8] sm:$0xf] %v253
                %v255 = vld [vmem:[%s151 + $0x198] sm:$0xf]
                %256 = vst [vmem:[%s152 + $0xcc] sm:$0xf] %v255
                %v257 = vld [vmem:[%s151 + $0x1a0] sm:$0xf]
                %258 = vst [vmem:[%s152 + $0xd0] sm:$0xf] %v257
                %v259 = vld [vmem:[%s151 + $0x1a8] sm:$0xf]
                %260 = vst [vmem:[%s152 + $0xd4] sm:$0xf] %v259
                %v261 = vld [vmem:[%s151 + $0x1b0] sm:$0xf]
                %262 = vst [vmem:[%s152 + $0xd8] sm:$0xf] %v261
                %v263 = vld [vmem:[%s151 + $0x1b8] sm:$0xf]
                %264 = vst [vmem:[%s152 + $0xdc] sm:$0xf] %v263
                %v265 = vld [vmem:[%s151 + $0x1c0] sm:$0xf]
                %266 = vst [vmem:[%s152 + $0xe0] sm:$0xf] %v265
                %v267 = vld [vmem:[%s151 + $0x1c8] sm:$0xf]
                %268 = vst [vmem:[%s152 + $0xe4] sm:$0xf] %v267
                %v269 = vld [vmem:[%s151 + $0x1d0] sm:$0xf]
                %270 = vst [vmem:[%s152 + $0xe8] sm:$0xf] %v269
                %v271 = vld [vmem:[%s151 + $0x1d8] sm:$0xf]
                %272 = vst [vmem:[%s152 + $0xec] sm:$0xf] %v271
                %v273 = vld [vmem:[%s151 + $0x1e0] sm:$0xf]
                %274 = vst [vmem:[%s152 + $0xf0] sm:$0xf] %v273
                %v275 = vld [vmem:[%s151 + $0x1e8] sm:$0xf]
                %276 = vst [vmem:[%s152 + $0xf4] sm:$0xf] %v275
                %v277 = vld [vmem:[%s151 + $0x1f0] sm:$0xf]
                %278 = vst [vmem:[%s152 + $0xf8] sm:$0xf] %v277
                %v279 = vld [vmem:[%s151 + $0x1f8] sm:$0xf]
                %280 = vst [vmem:[%s152 + $0xfc] sm:$0xf] %v279
              $region41: #{_lambda_.10} parent=35 // loop_footer
                %s150 = sadd.s32 1, %s146
              $region42: #{_lambda_.10} parent=35 // loop_footer_branch
                %145 = sbr.rel target = $region38
              $region43: #{_lambda_.10} parent=35 // loop_exit
                _
            $region36: #{_lambda_.10} parent=27 // pred_fallthru
              _
          $region28: #{_lambda_.10} parent=23 // pred_fallthru
            _
          %428 = vnop
        $region24: #{_lambda_.10} parent=19 // pred_fallthru
          _
      $region20: #{_lambda_.10} parent=5 // pred_fallthru
        _
      %p429 = scmp.le.s32.totalorder 1, %s8
      %p430 = scmp.lt.s32.totalorder %s8, 3
      %p431 = pnand %p429, %p430
      %p432 = pneg %p431
      // Predicated region
      $region62: #{_lambda_.10} parent=5 // pred_check
        _
      $region63: #{_lambda_.10} parent=5 // pred_check_branch
        %434 = sbr.rel (%p431) target = $region65
      $region64: #{_lambda_.10} parent=5 // pred_region
        %s435 = ssub.s32 %s8, 1
        %s436 = sand.u32 %s59, 1
        %s437 = sand.u32 %s59, 1
        %s438 = smul.addr %s437, 256
        %s439 = scalar_lea.vmem [#allocation2], %s438
        // Predicated region
        $region66: #{_lambda_.10} parent=64 // pred_check
          %p440 = pneg %p72
        $region67: #{_lambda_.10} parent=64 // pred_check_branch
          %442 = sbr.rel (%p440) target = $region69
        $region68: #{_lambda_.10} parent=64 // pred_region
          _
        $region69: #{_lambda_.10} parent=64 // pred_fallthru
          _
        %s443 = smul.u32 2, %s17
        %p444 = scmp.lt.s32.totalorder %s443, 1
        %s445 = scalar_select %p444, %s443, 1
        %s446 = smul.addr %s445, 4
        %s447 = smul.addr %s446, 4
        %s448 = scalar_lea.vmem %s0, %s447
        %p449 = pneg %p46
        %p450 = pneg %p43
        %s451 = sand.u32 %s59, 1
        %s452 = sand.u32 %s59, 1
        %s453 = smul.addr %s452, 256
        %s454 = scalar_lea.vmem [#allocation2], %s453
        %p455 = pneg %p72
        %p456 = pneg %p69
        %p457 = pneg %p100
        %p458 = pneg %p97
        %s459 = sand.u32 %s87, 1
        %s460 = sand.u32 %s87, 1
        %s461 = smul.addr %s460, 8
        %s462 = scalar_lea.vmem [#allocation3], %s461
        %s463 = smul.u32 2, %s17
        %p464 = scmp.lt.s32.totalorder %s463, 1
        %s465 = scalar_select %p464, %s463, 1
        %s466 = smul.addr %s465, 4
        %s467 = smul.addr %s466, 4
        %s468 = scalar_lea.vmem %s0, %s467
        %s469 = smul.u32 2, %s17
        %s470 = smul.u32 2, %s17
        %v472 = vld [vmem:[%s468] sm:$0xff]
        %v473 = vld [vmem:[%s468 + $0x8] sm:$0xff]
        %v474 = vld [vmem:[%s468 + $0x10] sm:$0xff]
        %v475 = vld [vmem:[%s468 + $0x18] sm:$0xff]
        %v476 = vld [vmem:[%s439] sm:$0xf]
        %v477 = vld [vmem:[%s439 + $0x4] sm:$0xf]
        %v478 = vld [vmem:[%s439 + $0x8] sm:$0xf]
        %v479 = vld [vmem:[%s439 + $0xc] sm:$0xf]
        %v480 = vld [vmem:[%s439 + $0x10] sm:$0xf]
        %v481 = vld [vmem:[%s439 + $0x14] sm:$0xf]
        %v482 = vld [vmem:[%s439 + $0x18] sm:$0xf]
        %v483 = vld [vmem:[%s439 + $0x1c] sm:$0xf]
        %v484 = vld [vmem:[%s439 + $0x20] sm:$0xf]
        %v485 = vld [vmem:[%s439 + $0x24] sm:$0xf]
        %v486 = vld [vmem:[%s439 + $0x28] sm:$0xf]
        %v487 = vld [vmem:[%s439 + $0x2c] sm:$0xf]
        %v488 = vld [vmem:[%s439 + $0x30] sm:$0xf]
        %v489 = vld [vmem:[%s439 + $0x34] sm:$0xf]
        %v490 = vld [vmem:[%s439 + $0x38] sm:$0xf]
        %v491 = vld [vmem:[%s439 + $0x3c] sm:$0xf]
        %v492 = vld [vmem:[%s439 + $0x40] sm:$0xf]
        %v493 = vld [vmem:[%s439 + $0x44] sm:$0xf]
        %v494 = vld [vmem:[%s439 + $0x48] sm:$0xf]
        %v495 = vld [vmem:[%s439 + $0x4c] sm:$0xf]
        %v496 = vld [vmem:[%s439 + $0x50] sm:$0xf]
        %v497 = vld [vmem:[%s439 + $0x54] sm:$0xf]
        %v498 = vld [vmem:[%s439 + $0x58] sm:$0xf]
        %v499 = vld [vmem:[%s439 + $0x5c] sm:$0xf]
        %v500 = vld [vmem:[%s439 + $0x60] sm:$0xf]
        %v501 = vld [vmem:[%s439 + $0x64] sm:$0xf]
        %v502 = vld [vmem:[%s439 + $0x68] sm:$0xf]
        %v503 = vld [vmem:[%s439 + $0x6c] sm:$0xf]
        %v504 = vld [vmem:[%s439 + $0x70] sm:$0xf]
        %v505 = vld [vmem:[%s439 + $0x74] sm:$0xf]
        %v506 = vld [vmem:[%s439 + $0x78] sm:$0xf]
        %v507 = vld [vmem:[%s439 + $0x7c] sm:$0xf]
        %v508 = vld [vmem:[%s439 + $0x80] sm:$0xf]
        %v509 = vld [vmem:[%s439 + $0x84] sm:$0xf]
        %v510 = vld [vmem:[%s439 + $0x88] sm:$0xf]
        %v511 = vld [vmem:[%s439 + $0x8c] sm:$0xf]
        %v512 = vld [vmem:[%s439 + $0x90] sm:$0xf]
        %v513 = vld [vmem:[%s439 + $0x94] sm:$0xf]
        %v514 = vld [vmem:[%s439 + $0x98] sm:$0xf]
        %v515 = vld [vmem:[%s439 + $0x9c] sm:$0xf]
        %v516 = vld [vmem:[%s439 + $0xa0] sm:$0xf]
        %v517 = vld [vmem:[%s439 + $0xa4] sm:$0xf]
        %v518 = vld [vmem:[%s439 + $0xa8] sm:$0xf]
        %v519 = vld [vmem:[%s439 + $0xac] sm:$0xf]
        %v520 = vld [vmem:[%s439 + $0xb0] sm:$0xf]
        %v521 = vld [vmem:[%s439 + $0xb4] sm:$0xf]
        %v522 = vld [vmem:[%s439 + $0xb8] sm:$0xf]
        %v523 = vld [vmem:[%s439 + $0xbc] sm:$0xf]
        %v524 = vld [vmem:[%s439 + $0xc0] sm:$0xf]
        %v525 = vld [vmem:[%s439 + $0xc4] sm:$0xf]
        %v526 = vld [vmem:[%s439 + $0xc8] sm:$0xf]
        %v527 = vld [vmem:[%s439 + $0xcc] sm:$0xf]
        %v528 = vld [vmem:[%s439 + $0xd0] sm:$0xf]
        %v529 = vld [vmem:[%s439 + $0xd4] sm:$0xf]
        %v530 = vld [vmem:[%s439 + $0xd8] sm:$0xf]
        %v531 = vld [vmem:[%s439 + $0xdc] sm:$0xf]
        %v532 = vld [vmem:[%s439 + $0xe0] sm:$0xf]
        %v533 = vld [vmem:[%s439 + $0xe4] sm:$0xf]
        %v534 = vld [vmem:[%s439 + $0xe8] sm:$0xf]
        %v535 = vld [vmem:[%s439 + $0xec] sm:$0xf]
        %v536 = vld [vmem:[%s439 + $0xf0] sm:$0xf]
        %v537 = vld [vmem:[%s439 + $0xf4] sm:$0xf]
        %v538 = vld [vmem:[%s439 + $0xf8] sm:$0xf]
        %v539 = vld [vmem:[%s439 + $0xfc] sm:$0xf]
        %v544 = vunpack.c.l.b16 %v472
        %v545 = vunpack.c.h.b16 %v472
        %v546 = vunpack.c.l.b16 %v473
        %v547 = vunpack.c.h.b16 %v473
        %v548 = vunpack.c.l.b16 %v474
        %v549 = vunpack.c.h.b16 %v474
        %v550 = vunpack.c.l.b16 %v475
        %v551 = vunpack.c.h.b16 %v475
        %v552 = vpack.c.b16 %v548, %v544
        %v553 = vpack.c.b16 %v549, %v545
        %v554 = vpack.c.b16 %v550, %v546
        %v555 = vpack.c.b16 %v551, %v547
        %v624 = vunpack.c.l.b16 %v476
        %v625 = vunpack.c.l.b16 %v477
        %v626 = vunpack.c.l.b16 %v478
        %v627 = vunpack.c.l.b16 %v479
        %v628 = vunpack.c.l.b16 %v480
        %v629 = vunpack.c.l.b16 %v481
        %v630 = vunpack.c.l.b16 %v482
        %v631 = vunpack.c.l.b16 %v483
        %v632 = vunpack.c.l.b16 %v484
        %v633 = vunpack.c.l.b16 %v485
        %v634 = vunpack.c.l.b16 %v486
        %v635 = vunpack.c.l.b16 %v487
        %v636 = vunpack.c.l.b16 %v488
        %v637 = vunpack.c.l.b16 %v489
        %v638 = vunpack.c.l.b16 %v490
        %v639 = vunpack.c.l.b16 %v491
        %v640 = vunpack.c.l.b16 %v492
        %v641 = vunpack.c.l.b16 %v493
        %v642 = vunpack.c.l.b16 %v494
        %v643 = vunpack.c.l.b16 %v495
        %v644 = vunpack.c.l.b16 %v496
        %v645 = vunpack.c.l.b16 %v497
        %v646 = vunpack.c.l.b16 %v498
        %v647 = vunpack.c.l.b16 %v499
        %v648 = vunpack.c.l.b16 %v500
        %v649 = vunpack.c.l.b16 %v501
        %v650 = vunpack.c.l.b16 %v502
        %v651 = vunpack.c.l.b16 %v503
        %v652 = vunpack.c.l.b16 %v504
        %v653 = vunpack.c.l.b16 %v505
        %v654 = vunpack.c.l.b16 %v506
        %v655 = vunpack.c.l.b16 %v507
        %v656 = vunpack.c.l.b16 %v508
        %v657 = vunpack.c.l.b16 %v509
        %v658 = vunpack.c.l.b16 %v510
        %v659 = vunpack.c.l.b16 %v511
        %v660 = vunpack.c.l.b16 %v512
        %v661 = vunpack.c.l.b16 %v513
        %v662 = vunpack.c.l.b16 %v514
        %v663 = vunpack.c.l.b16 %v515
        %v664 = vunpack.c.l.b16 %v516
        %v665 = vunpack.c.l.b16 %v517
        %v666 = vunpack.c.l.b16 %v518
        %v667 = vunpack.c.l.b16 %v519
        %v668 = vunpack.c.l.b16 %v520
        %v669 = vunpack.c.l.b16 %v521
        %v670 = vunpack.c.l.b16 %v522
        %v671 = vunpack.c.l.b16 %v523
        %v672 = vunpack.c.l.b16 %v524
        %v673 = vunpack.c.l.b16 %v525
        %v674 = vunpack.c.l.b16 %v526
        %v675 = vunpack.c.l.b16 %v527
        %v676 = vunpack.c.l.b16 %v528
        %v677 = vunpack.c.l.b16 %v529
        %v678 = vunpack.c.l.b16 %v530
        %v679 = vunpack.c.l.b16 %v531
        %v680 = vunpack.c.l.b16 %v532
        %v681 = vunpack.c.l.b16 %v533
        %v682 = vunpack.c.l.b16 %v534
        %v683 = vunpack.c.l.b16 %v535
        %v684 = vunpack.c.l.b16 %v536
        %v685 = vunpack.c.l.b16 %v537
        %v686 = vunpack.c.l.b16 %v538
        %v687 = vunpack.c.l.b16 %v539
        %v688 = vpack.c.b16 %v625, %v624
        %v689 = vpack.c.b16 %v627, %v626
        %v690 = vpack.c.b16 %v629, %v628
        %v691 = vpack.c.b16 %v631, %v630
        %v692 = vpack.c.b16 %v633, %v632
        %v693 = vpack.c.b16 %v635, %v634
        %v694 = vpack.c.b16 %v637, %v636
        %v695 = vpack.c.b16 %v639, %v638
        %v696 = vpack.c.b16 %v641, %v640
        %v697 = vpack.c.b16 %v643, %v642
        %v698 = vpack.c.b16 %v645, %v644
        %v699 = vpack.c.b16 %v647, %v646
        %v700 = vpack.c.b16 %v649, %v648
        %v701 = vpack.c.b16 %v651, %v650
        %v702 = vpack.c.b16 %v653, %v652
        %v703 = vpack.c.b16 %v655, %v654
        %v704 = vpack.c.b16 %v657, %v656
        %v705 = vpack.c.b16 %v659, %v658
        %v706 = vpack.c.b16 %v661, %v660
        %v707 = vpack.c.b16 %v663, %v662
        %v708 = vpack.c.b16 %v665, %v664
        %v709 = vpack.c.b16 %v667, %v666
        %v710 = vpack.c.b16 %v669, %v668
        %v711 = vpack.c.b16 %v671, %v670
        %v712 = vpack.c.b16 %v673, %v672
        %v713 = vpack.c.b16 %v675, %v674
        %v714 = vpack.c.b16 %v677, %v676
        %v715 = vpack.c.b16 %v679, %v678
        %v716 = vpack.c.b16 %v681, %v680
        %v717 = vpack.c.b16 %v683, %v682
        %v718 = vpack.c.b16 %v685, %v684
        %v719 = vpack.c.b16 %v687, %v686
        %752 = vmatprep.subr.bf16.mxu0 0
        %753 = vmatpush1.bf16.msra.mxu0 %v688
        %754 = vmatprep.subr.bf16.mxu0 0
        %755 = vmatpush1.bf16.msra.mxu0 %v689
        %756 = vmatprep.subr.bf16.mxu0 0
        %757 = vmatpush1.bf16.msra.mxu0 %v690
        %758 = vmatprep.subr.bf16.mxu0 0
        %759 = vmatpush1.bf16.msra.mxu0 %v691
        %760 = vmatprep.subr.bf16.mxu0 0
        %761 = vmatpush1.bf16.msra.mxu0 %v692
        %762 = vmatprep.subr.bf16.mxu0 0
        %763 = vmatpush1.bf16.msra.mxu0 %v693
        %764 = vmatprep.subr.bf16.mxu0 0
        %765 = vmatpush1.bf16.msra.mxu0 %v694
        %766 = vmatprep.subr.bf16.mxu0 0
        %767 = vmatpush1.bf16.msra.mxu0 %v695
        %768 = vmatprep.subr.bf16.mxu0 0
        %769 = vmatpush1.bf16.msra.mxu0 %v696
        %770 = vmatprep.subr.bf16.mxu0 0
        %771 = vmatpush1.bf16.msra.mxu0 %v697
        %772 = vmatprep.subr.bf16.mxu0 0
        %773 = vmatpush1.bf16.msra.mxu0 %v698
        %774 = vmatprep.subr.bf16.mxu0 0
        %775 = vmatpush1.bf16.msra.mxu0 %v699
        %776 = vmatprep.subr.bf16.mxu0 0
        %777 = vmatpush1.bf16.msra.mxu0 %v700
        %778 = vmatprep.subr.bf16.mxu0 0
        %779 = vmatpush1.bf16.msra.mxu0 %v701
        %780 = vmatprep.subr.bf16.mxu0 0
        %781 = vmatpush1.bf16.msra.mxu0 %v702
        %782 = vmatprep.subr.bf16.mxu0 0
        %783 = vmatpush1.bf16.msra.mxu0 %v703
        %784 = vmatprep.mubr.bf16.mxu0 %v553
        %785 = vmatmul.mubr.bf16.gmra.mrb[0].mxu0 %v552
        %v786 = vpop.f32.mrb[0].mxu0
        %v787 = vadd.f32 0.0, %v786
        %v788 = vpop.f32.mrb[0].mxu0
        %v789 = vpop.f32.mrb[0].mxu0
        %v790 = vadd.f32 0.0, %v789
        %v791 = vpop.f32.mrb[0].mxu0
        %792 = vdwg.mxu0
        %793 = vmatprep.subr.bf16.mxu0 0
        %794 = vmatpush1.bf16.msra.mxu0 %v704
        %795 = vmatprep.subr.bf16.mxu0 0
        %796 = vmatpush1.bf16.msra.mxu0 %v705
        %797 = vmatprep.subr.bf16.mxu0 0
        %798 = vmatpush1.bf16.msra.mxu0 %v706
        %799 = vmatprep.subr.bf16.mxu0 0
        %800 = vmatpush1.bf16.msra.mxu0 %v707
        %801 = vmatprep.subr.bf16.mxu0 0
        %802 = vmatpush1.bf16.msra.mxu0 %v708
        %803 = vmatprep.subr.bf16.mxu0 0
        %804 = vmatpush1.bf16.msra.mxu0 %v709
        %805 = vmatprep.subr.bf16.mxu0 0
        %806 = vmatpush1.bf16.msra.mxu0 %v710
        %807 = vmatprep.subr.bf16.mxu0 0
        %808 = vmatpush1.bf16.msra.mxu0 %v711
        %809 = vmatprep.subr.bf16.mxu0 0
        %810 = vmatpush1.bf16.msra.mxu0 %v712
        %811 = vmatprep.subr.bf16.mxu0 0
        %812 = vmatpush1.bf16.msra.mxu0 %v713
        %813 = vmatprep.subr.bf16.mxu0 0
        %814 = vmatpush1.bf16.msra.mxu0 %v714
        %815 = vmatprep.subr.bf16.mxu0 0
        %816 = vmatpush1.bf16.msra.mxu0 %v715
        %817 = vmatprep.subr.bf16.mxu0 0
        %818 = vmatpush1.bf16.msra.mxu0 %v716
        %819 = vmatprep.subr.bf16.mxu0 0
        %820 = vmatpush1.bf16.msra.mxu0 %v717
        %821 = vmatprep.subr.bf16.mxu0 0
        %822 = vmatpush1.bf16.msra.mxu0 %v718
        %823 = vmatprep.subr.bf16.mxu0 0
        %824 = vmatpush1.bf16.msra.mxu0 %v719
        %825 = vmatprep.mubr.bf16.mxu0 %v555
        %826 = vmatmul.mubr.bf16.gmra.mrb[0].mxu0 %v554
        %v827 = vpop.f32.mrb[0].mxu0
        %v828 = vadd.f32 %v787, %v827
        %v829 = vpop.f32.mrb[0].mxu0
        %v830 = vpop.f32.mrb[0].mxu0
        %v831 = vadd.f32 %v790, %v830
        %v832 = vpop.f32.mrb[0].mxu0
        %833 = vdwg.mxu0
        %v834 = vpack.c.bf16 %v831, %v828
        %v836 = vunpack.c.l.b16 %v834
        %v837 = vunpack.c.h.b16 %v834
        %v838 = vpack.c.b16 %v836, %v836
        %v839 = vpack.c.b16 %v837, %v837
        %842 = vst [vmem:[%s462] sm:$0xf] %v838
        %843 = vst [vmem:[%s462 + $0x4] sm:$0xf] %v839
        %s844 = sand.u32 %s87, 1
        %s845 = sand.u32 %s87, 1
        %s846 = smul.addr %s845, 8
        %s847 = scalar_lea.vmem [#allocation3], %s846
        // Predicated region
        $region70: #{_lambda_.10} parent=64 // pred_check
          %p848 = pneg %p97
        $region71: #{_lambda_.10} parent=64 // pred_check_branch
          %850 = sbr.rel (%p848) target = $region73
        $region72: #{_lambda_.10} parent=64 // pred_region
          %s851 = smul.u32 2, %s17
          %s852 = smul.addr %s851, 2
          %s853 = sadd.s32 %s18, %s852
          %s854 = smul.addr %s853, 4
          %s855 = scalar_lea.vmem %s2, %s854
          // Predicated region
          $region74: #{_lambda_.10} parent=72 // pred_check
            _
          $region75: #{_lambda_.10} parent=72 // pred_check_branch
            %857 = sbr.rel (0) target = $region77
          $region76: #{_lambda_.10} parent=72 // pred_region
            // Predicated region
            $region78: #{_lambda_.10} parent=76 // pred_check
              _
            $region79: #{_lambda_.10} parent=76 // pred_check_branch
              %859 = sbr.rel target = $region81
            $region80: #{_lambda_.10} parent=76 // pred_region
              // Predicated region
              $region93: #{_lambda_.10} parent=80 // pred_check
                _
              $region94: #{_lambda_.10} parent=80 // pred_check_branch
                %876 = sbr.rel (0) target = $region96
              $region95: #{_lambda_.10} parent=80 // pred_region
                loop: start=0, step=1, limit=1
                $region97: #{_lambda_.10} parent=95 // loop_pre_header
                  _
                $region98: #{_lambda_.10} parent=95 // loop_header
                  %s878 = sphi 0, %s882
                  %p879 = scmp.ge.s32.totalorder %s878, 1
                  %s883 = sphi %s847, %s847
                  %s884 = sphi %s855, %s855
                $region99: #{_lambda_.10} parent=95 // loop_header_branch
                  %881 = sbr.rel (%p879) target = $region103
                $region100: #{_lambda_.10} parent=95 // loop_body
                  _
                $region101: #{_lambda_.10} parent=95 // loop_footer
                  %s882 = sadd.s32 1, %s878
                $region102: #{_lambda_.10} parent=95 // loop_footer_branch
                  %877 = sbr.rel target = $region98
                $region103: #{_lambda_.10} parent=95 // loop_exit
                  _
                loop: start=0, step=1, limit=1
                $region104: #{_lambda_.10} parent=95 // loop_pre_header
                  _
                $region105: #{_lambda_.10} parent=95 // loop_header
                  %s887 = sphi 0, %s891
                  %p888 = scmp.ge.s32.totalorder %s887, 1
                  %s892 = sphi %s847, %s847
                  %s893 = sphi %s855, %s855
                $region106: #{_lambda_.10} parent=95 // loop_header_branch
                  %890 = sbr.rel (%p888) target = $region110
                $region107: #{_lambda_.10} parent=95 // loop_body
                  %v894 = vld [vmem:[%s892] sm:$0xf]
                  %895 = vst [vmem:[%s893] sm:$0xf] %v894
                  %v896 = vld [vmem:[%s892 + $0x4] sm:$0xf]
                  %897 = vst [vmem:[%s893 + $0x8] sm:$0xf] %v896
                $region108: #{_lambda_.10} parent=95 // loop_footer
                  %s891 = sadd.s32 1, %s887
                $region109: #{_lambda_.10} parent=95 // loop_footer_branch
                  %886 = sbr.rel target = $region105
                $region110: #{_lambda_.10} parent=95 // loop_exit
                  _
              $region96: #{_lambda_.10} parent=80 // pred_fallthru
                _
            $region81: #{_lambda_.10} parent=76 // pred_fallthru
              _
            // Predicated region
            $region82: #{_lambda_.10} parent=76 // pred_check
              _
            $region83: #{_lambda_.10} parent=76 // pred_check_branch
              %861 = sbr.rel (0) target = $region85
            $region84: #{_lambda_.10} parent=76 // pred_region
              loop: start=0, step=1, limit=1
              $region86: #{_lambda_.10} parent=84 // loop_pre_header
                _
              $region87: #{_lambda_.10} parent=84 // loop_header
                %s864 = sphi 0, %s868
                %p865 = scmp.ge.s32.totalorder %s864, 1
                %s869 = sphi %s847, %s847
                %s870 = sphi %s855, %s855
              $region88: #{_lambda_.10} parent=84 // loop_header_branch
                %867 = sbr.rel (%p865) target = $region92
              $region89: #{_lambda_.10} parent=84 // loop_body
                %v871 = vld [vmem:[%s869] sm:$0xf]
                %872 = vst [vmem:[%s870] sm:$0xf] %v871
                %v873 = vld [vmem:[%s869 + $0x4] sm:$0xf]
                %874 = vst [vmem:[%s870 + $0x8] sm:$0xf] %v873
              $region90: #{_lambda_.10} parent=84 // loop_footer
                %s868 = sadd.s32 1, %s864
              $region91: #{_lambda_.10} parent=84 // loop_footer_branch
                %863 = sbr.rel target = $region87
              $region92: #{_lambda_.10} parent=84 // loop_exit
                _
            $region85: #{_lambda_.10} parent=76 // pred_fallthru
              _
          $region77: #{_lambda_.10} parent=72 // pred_fallthru
            _
          %898 = vnop
        $region73: #{_lambda_.10} parent=64 // pred_fallthru
          _
      $region65: #{_lambda_.10} parent=5 // pred_fallthru
        _
      %p899 = scmp.le.s32.totalorder 2, %s8
      // Predicated region
      $region111: #{_lambda_.10} parent=5 // pred_check
        %p900 = pneg %p899
      $region112: #{_lambda_.10} parent=5 // pred_check_branch
        %902 = sbr.rel (%p900) target = $region114
      $region113: #{_lambda_.10} parent=5 // pred_region
        %s903 = ssub.s32 %s8, 2
        // Predicated region
        $region115: #{_lambda_.10} parent=113 // pred_check
          %p904 = pneg %p103
        $region116: #{_lambda_.10} parent=113 // pred_check_branch
          %906 = sbr.rel (%p904) target = $region118
        $region117: #{_lambda_.10} parent=113 // pred_region
          %s907 = sand.u32 %s88, 1
          %s908 = sand.u32 %s88, 1
          %s909 = smul.addr %s908, 8
          %s910 = scalar_lea.vmem [#allocation3], %s909
        $region118: #{_lambda_.10} parent=113 // pred_fallthru
          _
      $region114: #{_lambda_.10} parent=5 // pred_fallthru
        _
    $region6: #{_lambda_.10} parent=1 // loop_footer
      %s12 = sadd.s32 1, %s8
    $region7: #{_lambda_.10} parent=1 // loop_footer_branch
      %7 = sbr.rel target = $region3
    $region8: #{_lambda_.10} parent=1 // loop_exit
      _

// kernel: _lambda_.9
$region0: #{_lambda_.9}
  #allocation0 [shape = 'u32[]', space=smem, size = 0x4, offset = 0x4, fixed_abs, tag = 'smem constant byte address 0x4 - core index']
  #allocation1 [shape = 'u32[144,128]{1,0:T(1,128)}', space=vmem, size = 0x12000, scoped, tag = 'internal scratch']
  %s0 = inlined_call_operand.vmem [shape: bf16[16,256], index: 0, kind: input, shape index: {}]
  %s1 = inlined_call_operand.vmem [shape: bf16[256,512], index: 1, kind: input, shape index: {}]
  %s2 = inlined_call_operand.vmem [shape: f32[1,512], index: 2, kind: input, shape index: {}]
  %s3 = inlined_call_operand.vmem [shape: bf16[16,512], index: 3, kind: output, shape index: {}]
  %s4 = sld [smem:[#allocation0]]
  $region117: #{_lambda_.9} parent=0
    _
  %s6 = ssub.s32 1, %s4
  %s7 = scalar_select 0, %s6, %s4
  $region1: #{_lambda_.9} parent=0
    #allocation2 [shape = 'u8[262144]{0}', space=vmem, size = 0x40000, scoped, tag = 'input window, operand 1']
    #allocation3 [shape = 'u8[16384]{0}', space=vmem, size = 0x4000, scoped, tag = 'output window, operand 0']
    loop: start=0, step=1, limit=4
    $region2: #{_lambda_.9} parent=1 // loop_pre_header
      _
    $region3: #{_lambda_.9} parent=1 // loop_header
      %s9 = sphi 0, %s13
      %p10 = scmp.ge.s32.totalorder %s9, 4
      %s16 = sphi 0, %s28
      %s17 = sphi 0, %s24
      %s18 = sphi 0, %s16
      %s19 = sphi 0, %s17
      %s20 = sphi 0, %s18
      %s21 = sphi 0, %s19
      %s31 = sphi 0, %s33
      %s34 = sphi 0, %s31
      %s35 = sphi 0, %s34
      %s51 = sphi 0, %s35
      %s57 = sphi 0, %s59
      %s60 = sphi 0, %s57
      %s61 = sphi 0, %s60
      %s77 = sphi 0, %s61
      %s83 = sphi 0, %s85
      %s86 = sphi 0, %s83
      %s87 = sphi 0, %s86
      %s103 = sphi 0, %s87
      %s111 = sphi 0, %s113
      %s114 = sphi 0, %s111
      %s115 = sphi 0, %s114
      %s131 = sphi 0, %s115
    $region4: #{_lambda_.9} parent=1 // loop_header_branch
      %12 = sbr.rel (%p10) target = $region8
    $region5: #{_lambda_.9} parent=1 // loop_body
      %s14 = ssub.s32 %s9, 1
      %s15 = ssub.s32 %s9, 2
      %s22 = sadd.s32 1, %s17
      %p23 = scmp.ge.s32.totalorder %s22, 2
      %s24 = scalar_select %p23, 0, %s22
      %s25 = sadd.s32 1, %s16
      %s26 = scalar_select %p23, %s25, %s16
      %p27 = scmp.ge.s32.totalorder %s26, 1
      %s28 = scalar_select %p27, 0, %s26
      %s29 = ssub.s32 %s16, %s28
      %p30 = scmp.eq.s32.totalorder %s29, 0
      %s32 = sadd.s32 %s31, 1
      %s33 = scalar_select %p30, %s31, %s32
      %p36 = pneg %p30
      %p37 = scmp.eq.s32.totalorder %s9, 1
      %p38 = por %p36, %p37
      %p39 = scmp.ne.s32.totalorder %s31, %s34
      %p40 = scmp.eq.s32.totalorder %s9, 0
      %p41 = por %p39, %p40
      %p42 = scmp.ne.s32.totalorder %s31, %s34
      %p43 = scmp.eq.s32.totalorder %s14, 1
      %p44 = por %p42, %p43
      %p45 = scmp.ne.s32.totalorder %s34, %s35
      %p46 = scmp.eq.s32.totalorder %s14, 0
      %p47 = por %p45, %p46
      %p48 = scmp.ne.s32.totalorder %s34, %s35
      %p49 = scmp.eq.s32.totalorder %s15, 1
      %p50 = por %p48, %p49
      %p52 = scmp.ne.s32.totalorder %s35, %s51
      %p53 = scmp.eq.s32.totalorder %s15, 0
      %p54 = por %p52, %p53
      %s55 = ssub.s32 %s17, %s24
      %p56 = scmp.eq.s32.totalorder %s55, 0
      %s58 = sadd.s32 %s57, 1
      %s59 = scalar_select %p56, %s57, %s58
      %p62 = pneg %p56
      %p63 = scmp.eq.s32.totalorder %s9, 1
      %p64 = por %p62, %p63
      %p65 = scmp.ne.s32.totalorder %s57, %s60
      %p66 = scmp.eq.s32.totalorder %s9, 0
      %p67 = por %p65, %p66
      %p68 = scmp.ne.s32.totalorder %s57, %s60
      %p69 = scmp.eq.s32.totalorder %s14, 1
      %p70 = por %p68, %p69
      %p71 = scmp.ne.s32.totalorder %s60, %s61
      %p72 = scmp.eq.s32.totalorder %s14, 0
      %p73 = por %p71, %p72
      %p74 = scmp.ne.s32.totalorder %s60, %s61
      %p75 = scmp.eq.s32.totalorder %s15, 1
      %p76 = por %p74, %p75
      %p78 = scmp.ne.s32.totalorder %s61, %s77
      %p79 = scmp.eq.s32.totalorder %s15, 0
      %p80 = por %p78, %p79
      %s81 = ssub.s32 %s17, %s24
      %p82 = scmp.eq.s32.totalorder %s81, 0
      %s84 = sadd.s32 %s83, 1
      %s85 = scalar_select %p82, %s83, %s84
      %p88 = pneg %p82
      %p89 = scmp.eq.s32.totalorder %s9, 1
      %p90 = por %p88, %p89
      %p91 = scmp.ne.s32.totalorder %s83, %s86
      %p92 = scmp.eq.s32.totalorder %s9, 0
      %p93 = por %p91, %p92
      %p94 = scmp.ne.s32.totalorder %s83, %s86
      %p95 = scmp.eq.s32.totalorder %s14, 1
      %p96 = por %p94, %p95
      %p97 = scmp.ne.s32.totalorder %s86, %s87
      %p98 = scmp.eq.s32.totalorder %s14, 0
      %p99 = por %p97, %p98
      %p100 = scmp.ne.s32.totalorder %s86, %s87
      %p101 = scmp.eq.s32.totalorder %s15, 1
      %p102 = por %p100, %p101
      %p104 = scmp.ne.s32.totalorder %s87, %s103
      %p105 = scmp.eq.s32.totalorder %s15, 0
      %p106 = por %p104, %p105
      %s107 = ssub.s32 %s16, %s28
      %s108 = ssub.s32 %s17, %s24
      %s109 = sor.u32 %s107, %s108
      %p110 = scmp.eq.s32.totalorder %s109, 0
      %s112 = sadd.s32 %s111, 1
      %s113 = scalar_select %p110, %s111, %s112
      %p116 = pneg %p110
      %p117 = scmp.eq.s32.totalorder %s9, 1
      %p118 = por %p116, %p117
      %p119 = scmp.ne.s32.totalorder %s111, %s114
      %p120 = scmp.eq.s32.totalorder %s9, 0
      %p121 = por %p119, %p120
      %p122 = scmp.ne.s32.totalorder %s111, %s114
      %p123 = scmp.eq.s32.totalorder %s14, 1
      %p124 = por %p122, %p123
      %p125 = scmp.ne.s32.totalorder %s114, %s115
      %p126 = scmp.eq.s32.totalorder %s14, 0
      %p127 = por %p125, %p126
      %p128 = scmp.ne.s32.totalorder %s114, %s115
      %p129 = scmp.eq.s32.totalorder %s15, 1
      %p130 = por %p128, %p129
      %p132 = scmp.ne.s32.totalorder %s115, %s131
      %p133 = scmp.eq.s32.totalorder %s15, 0
      %p134 = por %p132, %p133
      %p135 = scmp.le.s32.totalorder 1, %s9
      %p136 = scmp.lt.s32.totalorder %s9, 3
      %p137 = pnand %p135, %p136
      %p138 = pneg %p137
      // Predicated region
      $region9: #{_lambda_.9} parent=5 // pred_check
        _
      $region10: #{_lambda_.9} parent=5 // pred_check_branch
        %140 = sbr.rel (%p137) target = $region12
      $region11: #{_lambda_.9} parent=5 // pred_region
        %s141 = ssub.s32 %s9, 1
        // Predicated region
        $region13: #{_lambda_.9} parent=11 // pred_check
          %p142 = pneg %p47
        $region14: #{_lambda_.9} parent=11 // pred_check_branch
          %144 = sbr.rel (%p142) target = $region16
        $region15: #{_lambda_.9} parent=11 // pred_region
          %s145 = smul.u32 2, %s18
          %p146 = scmp.lt.s32.totalorder %s145, 1
          %s147 = scalar_select %p146, %s145, 1
          %s148 = smul.addr %s147, 2
          %s149 = smul.addr %s148, 4
          %s150 = scalar_lea.vmem %s0, %s149
          %s151 = smul.u32 2, %s18
        $region16: #{_lambda_.9} parent=11 // pred_fallthru
          _
      $region12: #{_lambda_.9} parent=5 // pred_fallthru
        _
      %p152 = scmp.lt.s32.totalorder %s9, 2
      // Predicated region
      $region17: #{_lambda_.9} parent=5 // pred_check
        %p153 = pneg %p152
      $region18: #{_lambda_.9} parent=5 // pred_check_branch
        %155 = sbr.rel (%p153) target = $region20
      $region19: #{_lambda_.9} parent=5 // pred_region
        // Predicated region
        $region21: #{_lambda_.9} parent=19 // pred_check
          %p156 = pneg %p67
        $region22: #{_lambda_.9} parent=19 // pred_check_branch
          %158 = sbr.rel (%p156) target = $region24
        $region23: #{_lambda_.9} parent=19 // pred_region
          %s159 = sand.u32 %s57, 1
          %s160 = sand.u32 %s57, 1
          %s161 = smul.addr %s160, 256
          %s162 = scalar_lea.vmem [#allocation2], %s161
          %s163 = smul.u32 2, %s17
          %s164 = smul.addr %s163, 4
          %s165 = scalar_lea.vmem %s1, %s164
          // Predicated region
          $region25: #{_lambda_.9} parent=23 // pred_check
            _
          $region26: #{_lambda_.9} parent=23 // pred_check_branch
            %167 = sbr.rel (0) target = $region28
          $region27: #{_lambda_.9} parent=23 // pred_region
            // Predicated region
            $region29: #{_lambda_.9} parent=27 // pred_check
              _
            $region30: #{_lambda_.9} parent=27 // pred_check_branch
              %169 = sbr.rel (0) target = $region32
            $region31: #{_lambda_.9} parent=27 // pred_region
              // Predicated region
              $region44: #{_lambda_.9} parent=31 // pred_check
                _
              $region45: #{_lambda_.9} parent=31 // pred_check_branch
                %246 = sbr.rel (0) target = $region47
              $region46: #{_lambda_.9} parent=31 // pred_region
                loop: start=0, step=1, limit=1
                $region48: #{_lambda_.9} parent=46 // loop_pre_header
                  _
                $region49: #{_lambda_.9} parent=46 // loop_header
                  %s248 = sphi 0, %s252
                  %p249 = scmp.ge.s32.totalorder %s248, 1
                  %s253 = sphi %s165, %s165
                  %s254 = sphi %s162, %s162
                $region50: #{_lambda_.9} parent=46 // loop_header_branch
                  %251 = sbr.rel (%p249) target = $region54
                $region51: #{_lambda_.9} parent=46 // loop_body
                  %v255 = vld [vmem:[%s253] sm:$0xff]
                  %256 = vst [vmem:[%s254] sm:$0xff] %v255
                  %v257 = vld [vmem:[%s253 + $0x10] sm:$0xff]
                  %258 = vst [vmem:[%s254 + $0x8] sm:$0xff] %v257
                  %v259 = vld [vmem:[%s253 + $0x20] sm:$0xff]
                  %260 = vst [vmem:[%s254 + $0x10] sm:$0xff] %v259
                  %v261 = vld [vmem:[%s253 + $0x30] sm:$0xff]
                  %262 = vst [vmem:[%s254 + $0x18] sm:$0xff] %v261
                  %v263 = vld [vmem:[%s253 + $0x40] sm:$0xff]
                  %264 = vst [vmem:[%s254 + $0x20] sm:$0xff] %v263
                  %v265 = vld [vmem:[%s253 + $0x50] sm:$0xff]
                  %266 = vst [vmem:[%s254 + $0x28] sm:$0xff] %v265
                  %v267 = vld [vmem:[%s253 + $0x60] sm:$0xff]
                  %268 = vst [vmem:[%s254 + $0x30] sm:$0xff] %v267
                  %v269 = vld [vmem:[%s253 + $0x70] sm:$0xff]
                  %270 = vst [vmem:[%s254 + $0x38] sm:$0xff] %v269
                  %v271 = vld [vmem:[%s253 + $0x80] sm:$0xff]
                  %272 = vst [vmem:[%s254 + $0x40] sm:$0xff] %v271
                  %v273 = vld [vmem:[%s253 + $0x90] sm:$0xff]
                  %274 = vst [vmem:[%s254 + $0x48] sm:$0xff] %v273
                  %v275 = vld [vmem:[%s253 + $0xa0] sm:$0xff]
                  %276 = vst [vmem:[%s254 + $0x50] sm:$0xff] %v275
                  %v277 = vld [vmem:[%s253 + $0xb0] sm:$0xff]
                  %278 = vst [vmem:[%s254 + $0x58] sm:$0xff] %v277
                  %v279 = vld [vmem:[%s253 + $0xc0] sm:$0xff]
                  %280 = vst [vmem:[%s254 + $0x60] sm:$0xff] %v279
                  %v281 = vld [vmem:[%s253 + $0xd0] sm:$0xff]
                  %282 = vst [vmem:[%s254 + $0x68] sm:$0xff] %v281
                  %v283 = vld [vmem:[%s253 + $0xe0] sm:$0xff]
                  %284 = vst [vmem:[%s254 + $0x70] sm:$0xff] %v283
                  %v285 = vld [vmem:[%s253 + $0xf0] sm:$0xff]
                  %286 = vst [vmem:[%s254 + $0x78] sm:$0xff] %v285
                  %v287 = vld [vmem:[%s253 + $0x100] sm:$0xff]
                  %288 = vst [vmem:[%s254 + $0x80] sm:$0xff] %v287
                  %v289 = vld [vmem:[%s253 + $0x110] sm:$0xff]
                  %290 = vst [vmem:[%s254 + $0x88] sm:$0xff] %v289
                  %v291 = vld [vmem:[%s253 + $0x120] sm:$0xff]
                  %292 = vst [vmem:[%s254 + $0x90] sm:$0xff] %v291
                  %v293 = vld [vmem:[%s253 + $0x130] sm:$0xff]
                  %294 = vst [vmem:[%s254 + $0x98] sm:$0xff] %v293
                  %v295 = vld [vmem:[%s253 + $0x140] sm:$0xff]
                  %296 = vst [vmem:[%s254 + $0xa0] sm:$0xff] %v295
                  %v297 = vld [vmem:[%s253 + $0x150] sm:$0xff]
                  %298 = vst [vmem:[%s254 + $0xa8] sm:$0xff] %v297
                  %v299 = vld [vmem:[%s253 + $0x160] sm:$0xff]
                  %300 = vst [vmem:[%s254 + $0xb0] sm:$0xff] %v299
                  %v301 = vld [vmem:[%s253 + $0x170] sm:$0xff]
                  %302 = vst [vmem:[%s254 + $0xb8] sm:$0xff] %v301
                  %v303 = vld [vmem:[%s253 + $0x180] sm:$0xff]
                  %304 = vst [vmem:[%s254 + $0xc0] sm:$0xff] %v303
                  %v305 = vld [vmem:[%s253 + $0x190] sm:$0xff]
                  %306 = vst [vmem:[%s254 + $0xc8] sm:$0xff] %v305
                  %v307 = vld [vmem:[%s253 + $0x1a0] sm:$0xff]
                  %308 = vst [vmem:[%s254 + $0xd0] sm:$0xff] %v307
                  %v309 = vld [vmem:[%s253 + $0x1b0] sm:$0xff]
                  %310 = vst [vmem:[%s254 + $0xd8] sm:$0xff] %v309
                  %v311 = vld [vmem:[%s253 + $0x1c0] sm:$0xff]
                  %312 = vst [vmem:[%s254 + $0xe0] sm:$0xff] %v311
                  %v313 = vld [vmem:[%s253 + $0x1d0] sm:$0xff]
                  %314 = vst [vmem:[%s254 + $0xe8] sm:$0xff] %v313
                  %v315 = vld [vmem:[%s253 + $0x1e0] sm:$0xff]
                  %316 = vst [vmem:[%s254 + $0xf0] sm:$0xff] %v315
                  %v317 = vld [vmem:[%s253 + $0x1f0] sm:$0xff]
                  %318 = vst [vmem:[%s254 + $0xf8] sm:$0xff] %v317
                $region52: #{_lambda_.9} parent=46 // loop_footer
                  %s252 = sadd.s32 1, %s248
                $region53: #{_lambda_.9} parent=46 // loop_footer_branch
                  %247 = sbr.rel target = $region49
                $region54: #{_lambda_.9} parent=46 // loop_exit
                  _
              $region47: #{_lambda_.9} parent=31 // pred_fallthru
                _
              // Predicated region
              $region55: #{_lambda_.9} parent=31 // pred_check
                _
              $region56: #{_lambda_.9} parent=31 // pred_check_branch
                %320 = sbr.rel target = $region58
              $region57: #{_lambda_.9} parent=31 // pred_region
                _
              $region58: #{_lambda_.9} parent=31 // pred_fallthru
                _
            $region32: #{_lambda_.9} parent=27 // pred_fallthru
              _
            // Predicated region
            $region33: #{_lambda_.9} parent=27 // pred_check
              _
            $region34: #{_lambda_.9} parent=27 // pred_check_branch
              %171 = sbr.rel target = $region36
            $region35: #{_lambda_.9} parent=27 // pred_region
              loop: start=0, step=1, limit=1
              $region37: #{_lambda_.9} parent=35 // loop_pre_header
                _
              $region38: #{_lambda_.9} parent=35 // loop_header
                %s174 = sphi 0, %s178
                %p175 = scmp.ge.s32.totalorder %s174, 1
                %s179 = sphi %s165, %s165
                %s180 = sphi %s162, %s162
              $region39: #{_lambda_.9} parent=35 // loop_header_branch
                %177 = sbr.rel (%p175) target = $region43
              $region40: #{_lambda_.9} parent=35 // loop_body
                %v181 = vld [vmem:[%s179] sm:$0xff]
                %182 = vst [vmem:[%s180] sm:$0xff] %v181
                %v183 = vld [vmem:[%s179 + $0x10] sm:$0xff]
                %184 = vst [vmem:[%s180 + $0x8] sm:$0xff] %v183
                %v185 = vld [vmem:[%s179 + $0x20] sm:$0xff]
                %186 = vst [vmem:[%s180 + $0x10] sm:$0xff] %v185
                %v187 = vld [vmem:[%s179 + $0x30] sm:$0xff]
                %188 = vst [vmem:[%s180 + $0x18] sm:$0xff] %v187
                %v189 = vld [vmem:[%s179 + $0x40] sm:$0xff]
                %190 = vst [vmem:[%s180 + $0x20] sm:$0xff] %v189
                %v191 = vld [vmem:[%s179 + $0x50] sm:$0xff]
                %192 = vst [vmem:[%s180 + $0x28] sm:$0xff] %v191
                %v193 = vld [vmem:[%s179 + $0x60] sm:$0xff]
                %194 = vst [vmem:[%s180 + $0x30] sm:$0xff] %v193
                %v195 = vld [vmem:[%s179 + $0x70] sm:$0xff]
                %196 = vst [vmem:[%s180 + $0x38] sm:$0xff] %v195
                %v197 = vld [vmem:[%s179 + $0x80] sm:$0xff]
                %198 = vst [vmem:[%s180 + $0x40] sm:$0xff] %v197
                %v199 = vld [vmem:[%s179 + $0x90] sm:$0xff]
                %200 = vst [vmem:[%s180 + $0x48] sm:$0xff] %v199
                %v201 = vld [vmem:[%s179 + $0xa0] sm:$0xff]
                %202 = vst [vmem:[%s180 + $0x50] sm:$0xff] %v201
                %v203 = vld [vmem:[%s179 + $0xb0] sm:$0xff]
                %204 = vst [vmem:[%s180 + $0x58] sm:$0xff] %v203
                %v205 = vld [vmem:[%s179 + $0xc0] sm:$0xff]
                %206 = vst [vmem:[%s180 + $0x60] sm:$0xff] %v205
                %v207 = vld [vmem:[%s179 + $0xd0] sm:$0xff]
                %208 = vst [vmem:[%s180 + $0x68] sm:$0xff] %v207
                %v209 = vld [vmem:[%s179 + $0xe0] sm:$0xff]
                %210 = vst [vmem:[%s180 + $0x70] sm:$0xff] %v209
                %v211 = vld [vmem:[%s179 + $0xf0] sm:$0xff]
                %212 = vst [vmem:[%s180 + $0x78] sm:$0xff] %v211
                %v213 = vld [vmem:[%s179 + $0x100] sm:$0xff]
                %214 = vst [vmem:[%s180 + $0x80] sm:$0xff] %v213
                %v215 = vld [vmem:[%s179 + $0x110] sm:$0xff]
                %216 = vst [vmem:[%s180 + $0x88] sm:$0xff] %v215
                %v217 = vld [vmem:[%s179 + $0x120] sm:$0xff]
                %218 = vst [vmem:[%s180 + $0x90] sm:$0xff] %v217
                %v219 = vld [vmem:[%s179 + $0x130] sm:$0xff]
                %220 = vst [vmem:[%s180 + $0x98] sm:$0xff] %v219
                %v221 = vld [vmem:[%s179 + $0x140] sm:$0xff]
                %222 = vst [vmem:[%s180 + $0xa0] sm:$0xff] %v221
                %v223 = vld [vmem:[%s179 + $0x150] sm:$0xff]
                %224 = vst [vmem:[%s180 + $0xa8] sm:$0xff] %v223
                %v225 = vld [vmem:[%s179 + $0x160] sm:$0xff]
                %226 = vst [vmem:[%s180 + $0xb0] sm:$0xff] %v225
                %v227 = vld [vmem:[%s179 + $0x170] sm:$0xff]
                %228 = vst [vmem:[%s180 + $0xb8] sm:$0xff] %v227
                %v229 = vld [vmem:[%s179 + $0x180] sm:$0xff]
                %230 = vst [vmem:[%s180 + $0xc0] sm:$0xff] %v229
                %v231 = vld [vmem:[%s179 + $0x190] sm:$0xff]
                %232 = vst [vmem:[%s180 + $0xc8] sm:$0xff] %v231
                %v233 = vld [vmem:[%s179 + $0x1a0] sm:$0xff]
                %234 = vst [vmem:[%s180 + $0xd0] sm:$0xff] %v233
                %v235 = vld [vmem:[%s179 + $0x1b0] sm:$0xff]
                %236 = vst [vmem:[%s180 + $0xd8] sm:$0xff] %v235
                %v237 = vld [vmem:[%s179 + $0x1c0] sm:$0xff]
                %238 = vst [vmem:[%s180 + $0xe0] sm:$0xff] %v237
                %v239 = vld [vmem:[%s179 + $0x1d0] sm:$0xff]
                %240 = vst [vmem:[%s180 + $0xe8] sm:$0xff] %v239
                %v241 = vld [vmem:[%s179 + $0x1e0] sm:$0xff]
                %242 = vst [vmem:[%s180 + $0xf0] sm:$0xff] %v241
                %v243 = vld [vmem:[%s179 + $0x1f0] sm:$0xff]
                %244 = vst [vmem:[%s180 + $0xf8] sm:$0xff] %v243
              $region41: #{_lambda_.9} parent=35 // loop_footer
                %s178 = sadd.s32 1, %s174
              $region42: #{_lambda_.9} parent=35 // loop_footer_branch
                %173 = sbr.rel target = $region38
              $region43: #{_lambda_.9} parent=35 // loop_exit
                _
            $region36: #{_lambda_.9} parent=27 // pred_fallthru
              _
          $region28: #{_lambda_.9} parent=23 // pred_fallthru
            _
          %321 = vnop
        $region24: #{_lambda_.9} parent=19 // pred_fallthru
          _
        // Predicated region
        $region59: #{_lambda_.9} parent=19 // pred_check
          %p322 = pneg %p93
        $region60: #{_lambda_.9} parent=19 // pred_check_branch
          %324 = sbr.rel (%p322) target = $region62
        $region61: #{_lambda_.9} parent=19 // pred_region
          %s325 = smul.u32 2, %s17
          %p326 = scmp.lt.s32.totalorder %s325, 3
          %s327 = scalar_select %p326, %s325, 3
          %s328 = scalar_lea.vmem %s2, %s327
          %s329 = smul.u32 2, %s17
        $region62: #{_lambda_.9} parent=19 // pred_fallthru
          _
      $region20: #{_lambda_.9} parent=5 // pred_fallthru
        _
      %p330 = scmp.le.s32.totalorder 1, %s9
      %p331 = scmp.lt.s32.totalorder %s9, 3
      %p332 = pnand %p330, %p331
      %p333 = pneg %p332
      // Predicated region
      $region63: #{_lambda_.9} parent=5 // pred_check
        _
      $region64: #{_lambda_.9} parent=5 // pred_check_branch
        %335 = sbr.rel (%p332) target = $region66
      $region65: #{_lambda_.9} parent=5 // pred_region
        %s336 = ssub.s32 %s9, 1
        %s337 = sand.u32 %s60, 1
        %s338 = sand.u32 %s60, 1
        %s339 = smul.addr %s338, 256
        %s340 = scalar_lea.vmem [#allocation2], %s339
        // Predicated region
        $region67: #{_lambda_.9} parent=65 // pred_check
          %p341 = pneg %p73
        $region68: #{_lambda_.9} parent=65 // pred_check_branch
          %343 = sbr.rel (%p341) target = $region70
        $region69: #{_lambda_.9} parent=65 // pred_region
          _
        $region70: #{_lambda_.9} parent=65 // pred_fallthru
          _
        %s344 = smul.u32 2, %s18
        %p345 = scmp.lt.s32.totalorder %s344, 1
        %s346 = scalar_select %p345, %s344, 1
        %s347 = smul.addr %s346, 2
        %s348 = smul.addr %s347, 4
        %s349 = scalar_lea.vmem %s0, %s348
        %p350 = pneg %p47
        %p351 = pneg %p44
        %s352 = sand.u32 %s60, 1
        %s353 = sand.u32 %s60, 1
        %s354 = smul.addr %s353, 256
        %s355 = scalar_lea.vmem [#allocation2], %s354
        %p356 = pneg %p73
        %p357 = pneg %p70
        %s358 = smul.u32 2, %s19
        %p359 = scmp.lt.s32.totalorder %s358, 3
        %s360 = scalar_select %p359, %s358, 3
        %s361 = scalar_lea.vmem %s2, %s360
        %p362 = pneg %p99
        %p363 = pneg %p96
        %p364 = pneg %p127
        %p365 = pneg %p124
        %s366 = sand.u32 %s114, 1
        %s367 = sand.u32 %s114, 1
        %s368 = smul.addr %s367, 16
        %s369 = scalar_lea.vmem [#allocation3], %s368
        %s370 = smul.u32 2, %s18
        %p371 = scmp.lt.s32.totalorder %s370, 1
        %s372 = scalar_select %p371, %s370, 1
        %s373 = smul.addr %s372, 2
        %s374 = smul.addr %s373, 4
        %s375 = scalar_lea.vmem %s0, %s374
        %s376 = smul.u32 2, %s18
        %s377 = smul.u32 2, %s19
        %s378 = smul.u32 2, %s19
        %p379 = scmp.lt.s32.totalorder %s378, 3
        %s380 = scalar_select %p379, %s378, 3
        %s381 = scalar_lea.vmem %s2, %s380
        %s382 = smul.u32 2, %s19
        %s383 = smul.u32 2, %s18
        %s384 = smul.u32 2, %s19
        %v385 = vld [vmem:[%s375] sm:$0xff]
        %v386 = vld [vmem:[%s375 + $0x8] sm:$0xff]
        %v387 = vld [vmem:[%s340] sm:$0xff]
        %v388 = vld [vmem:[%s340 + $0x8] sm:$0xff]
        %v389 = vld [vmem:[%s340 + $0x10] sm:$0xff]
        %v390 = vld [vmem:[%s340 + $0x18] sm:$0xff]
        %v391 = vld [vmem:[%s340 + $0x20] sm:$0xff]
        %v392 = vld [vmem:[%s340 + $0x28] sm:$0xff]
        %v393 = vld [vmem:[%s340 + $0x30] sm:$0xff]
        %v394 = vld [vmem:[%s340 + $0x38] sm:$0xff]
        %v395 = vld [vmem:[%s340 + $0x40] sm:$0xff]
        %v396 = vld [vmem:[%s340 + $0x48] sm:$0xff]
        %v397 = vld [vmem:[%s340 + $0x50] sm:$0xff]
        %v398 = vld [vmem:[%s340 + $0x58] sm:$0xff]
        %v399 = vld [vmem:[%s340 + $0x60] sm:$0xff]
        %v400 = vld [vmem:[%s340 + $0x68] sm:$0xff]
        %v401 = vld [vmem:[%s340 + $0x70] sm:$0xff]
        %v402 = vld [vmem:[%s340 + $0x78] sm:$0xff]
        %v403 = vld [vmem:[%s340 + $0x80] sm:$0xff]
        %v404 = vld [vmem:[%s340 + $0x88] sm:$0xff]
        %v405 = vld [vmem:[%s340 + $0x90] sm:$0xff]
        %v406 = vld [vmem:[%s340 + $0x98] sm:$0xff]
        %v407 = vld [vmem:[%s340 + $0xa0] sm:$0xff]
        %v408 = vld [vmem:[%s340 + $0xa8] sm:$0xff]
        %v409 = vld [vmem:[%s340 + $0xb0] sm:$0xff]
        %v410 = vld [vmem:[%s340 + $0xb8] sm:$0xff]
        %v411 = vld [vmem:[%s340 + $0xc0] sm:$0xff]
        %v412 = vld [vmem:[%s340 + $0xc8] sm:$0xff]
        %v413 = vld [vmem:[%s340 + $0xd0] sm:$0xff]
        %v414 = vld [vmem:[%s340 + $0xd8] sm:$0xff]
        %v415 = vld [vmem:[%s340 + $0xe0] sm:$0xff]
        %v416 = vld [vmem:[%s340 + $0xe8] sm:$0xff]
        %v417 = vld [vmem:[%s340 + $0xf0] sm:$0xff]
        %v418 = vld [vmem:[%s340 + $0xf8] sm:$0xff]
        %v419 = vld [vmem:[%s381] sm:$0x3]
        %v421 = vlaneseq
        %v422 = vshrl.u32 %v421, 7
        %v423 = vsub.s32 0, %v422
        %v424 = vrot.slane %v419, %v423
        %v425 = vlaneseq
        %v426 = vshrl.u32 %v425, 7
        %v427 = vsub.s32 1, %v426
        %v428 = vrot.slane %v419, %v427
        %v433 = vunpack.c.l.b16 %v385
        %v434 = vunpack.c.h.b16 %v385
        %v435 = vunpack.c.l.b16 %v386
        %v436 = vunpack.c.h.b16 %v386
        %v437 = vpack.c.b16 %v435, %v433
        %v438 = vpack.c.b16 %v436, %v434
        %v473 = vunpack.c.l.b16 %v387
        %v474 = vunpack.c.h.b16 %v387
        %v475 = vunpack.c.l.b16 %v388
        %v476 = vunpack.c.h.b16 %v388
        %v477 = vunpack.c.l.b16 %v389
        %v478 = vunpack.c.h.b16 %v389
        %v479 = vunpack.c.l.b16 %v390
        %v480 = vunpack.c.h.b16 %v390
        %v481 = vunpack.c.l.b16 %v391
        %v482 = vunpack.c.h.b16 %v391
        %v483 = vunpack.c.l.b16 %v392
        %v484 = vunpack.c.h.b16 %v392
        %v485 = vunpack.c.l.b16 %v393
        %v486 = vunpack.c.h.b16 %v393
        %v487 = vunpack.c.l.b16 %v394
        %v488 = vunpack.c.h.b16 %v394
        %v489 = vunpack.c.l.b16 %v395
        %v490 = vunpack.c.h.b16 %v395
        %v491 = vunpack.c.l.b16 %v396
        %v492 = vunpack.c.h.b16 %v396
        %v493 = vunpack.c.l.b16 %v397
        %v494 = vunpack.c.h.b16 %v397
        %v495 = vunpack.c.l.b16 %v398
        %v496 = vunpack.c.h.b16 %v398
        %v497 = vunpack.c.l.b16 %v399
        %v498 = vunpack.c.h.b16 %v399
        %v499 = vunpack.c.l.b16 %v400
        %v500 = vunpack.c.h.b16 %v400
        %v501 = vunpack.c.l.b16 %v401
        %v502 = vunpack.c.h.b16 %v401
        %v503 = vunpack.c.l.b16 %v402
        %v504 = vunpack.c.h.b16 %v402
        %v505 = vunpack.c.l.b16 %v403
        %v506 = vunpack.c.h.b16 %v403
        %v507 = vunpack.c.l.b16 %v404
        %v508 = vunpack.c.h.b16 %v404
        %v509 = vunpack.c.l.b16 %v405
        %v510 = vunpack.c.h.b16 %v405
        %v511 = vunpack.c.l.b16 %v406
        %v512 = vunpack.c.h.b16 %v406
        %v513 = vunpack.c.l.b16 %v407
        %v514 = vunpack.c.h.b16 %v407
        %v515 = vunpack.c.l.b16 %v408
        %v516 = vunpack.c.h.b16 %v408
        %v517 = vunpack.c.l.b16 %v409
        %v518 = vunpack.c.h.b16 %v409
        %v519 = vunpack.c.l.b16 %v410
        %v520 = vunpack.c.h.b16 %v410
        %v521 = vunpack.c.l.b16 %v411
        %v522 = vunpack.c.h.b16 %v411
        %v523 = vunpack.c.l.b16 %v412
        %v524 = vunpack.c.h.b16 %v412
        %v525 = vunpack.c.l.b16 %v413
        %v526 = vunpack.c.h.b16 %v413
        %v527 = vunpack.c.l.b16 %v414
        %v528 = vunpack.c.h.b16 %v414
        %v529 = vunpack.c.l.b16 %v415
        %v530 = vunpack.c.h.b16 %v415
        %v531 = vunpack.c.l.b16 %v416
        %v532 = vunpack.c.h.b16 %v416
        %v533 = vunpack.c.l.b16 %v417
        %v534 = vunpack.c.h.b16 %v417
        %v535 = vunpack.c.l.b16 %v418
        %v536 = vunpack.c.h.b16 %v418
        %v537 = vpack.c.b16 %v475, %v473
        %v538 = vpack.c.b16 %v476, %v474
        %v539 = vpack.c.b16 %v479, %v477
        %v540 = vpack.c.b16 %v480, %v478
        %v541 = vpack.c.b16 %v483, %v481
        %v542 = vpack.c.b16 %v484, %v482
        %v543 = vpack.c.b16 %v487, %v485
        %v544 = vpack.c.b16 %v488, %v486
        %v545 = vpack.c.b16 %v491, %v489
        %v546 = vpack.c.b16 %v492, %v490
        %v547 = vpack.c.b16 %v495, %v493
        %v548 = vpack.c.b16 %v496, %v494
        %v549 = vpack.c.b16 %v499, %v497
        %v550 = vpack.c.b16 %v500, %v498
        %v551 = vpack.c.b16 %v503, %v501
        %v552 = vpack.c.b16 %v504, %v502
        %v553 = vpack.c.b16 %v507, %v505
        %v554 = vpack.c.b16 %v508, %v506
        %v555 = vpack.c.b16 %v511, %v509
        %v556 = vpack.c.b16 %v512, %v510
        %v557 = vpack.c.b16 %v515, %v513
        %v558 = vpack.c.b16 %v516, %v514
        %v559 = vpack.c.b16 %v519, %v517
        %v560 = vpack.c.b16 %v520, %v518
        %v561 = vpack.c.b16 %v523, %v521
        %v562 = vpack.c.b16 %v524, %v522
        %v563 = vpack.c.b16 %v527, %v525
        %v564 = vpack.c.b16 %v528, %v526
        %v565 = vpack.c.b16 %v531, %v529
        %v566 = vpack.c.b16 %v532, %v530
        %v567 = vpack.c.b16 %v535, %v533
        %v568 = vpack.c.b16 %v536, %v534
        %601 = vmatprep.subr.bf16.mxu0 %v538
        %602 = vmatpush1.bf16.msra.mxu0 %v537
        %603 = vmatprep.subr.bf16.mxu0 %v540
        %604 = vmatpush1.bf16.msra.mxu0 %v539
        %605 = vmatprep.subr.bf16.mxu0 %v542
        %606 = vmatpush1.bf16.msra.mxu0 %v541
        %607 = vmatprep.subr.bf16.mxu0 %v544
        %608 = vmatpush1.bf16.msra.mxu0 %v543
        %609 = vmatprep.subr.bf16.mxu0 %v546
        %610 = vmatpush1.bf16.msra.mxu0 %v545
        %611 = vmatprep.subr.bf16.mxu0 %v548
        %612 = vmatpush1.bf16.msra.mxu0 %v547
        %613 = vmatprep.subr.bf16.mxu0 %v550
        %614 = vmatpush1.bf16.msra.mxu0 %v549
        %615 = vmatprep.subr.bf16.mxu0 %v552
        %616 = vmatpush1.bf16.msra.mxu0 %v551
        %617 = vmatprep.subr.bf16.mxu0 %v554
        %618 = vmatpush1.bf16.msra.mxu0 %v553
        %619 = vmatprep.subr.bf16.mxu0 %v556
        %620 = vmatpush1.bf16.msra.mxu0 %v555
        %621 = vmatprep.subr.bf16.mxu0 %v558
        %622 = vmatpush1.bf16.msra.mxu0 %v557
        %623 = vmatprep.subr.bf16.mxu0 %v560
        %624 = vmatpush1.bf16.msra.mxu0 %v559
        %625 = vmatprep.subr.bf16.mxu0 %v562
        %626 = vmatpush1.bf16.msra.mxu0 %v561
        %627 = vmatprep.subr.bf16.mxu0 %v564
        %628 = vmatpush1.bf16.msra.mxu0 %v563
        %629 = vmatprep.subr.bf16.mxu0 %v566
        %630 = vmatpush1.bf16.msra.mxu0 %v565
        %631 = vmatprep.subr.bf16.mxu0 %v568
        %632 = vmatpush1.bf16.msra.mxu0 %v567
        %633 = vmatprep.mubr.bf16.mxu0 %v438
        %634 = vmatmul.mubr.bf16.gmra.mrb[0].mxu0 %v437
        %v635 = vpop.f32.mrb[0].mxu0
        %v636 = vadd.f32 %v424, %v635
        %v637 = vpop.f32.mrb[0].mxu0
        %v638 = vadd.f32 %v428, %v637
        %v639 = vpop.f32.mrb[0].mxu0
        %v640 = vadd.f32 %v424, %v639
        %v641 = vpop.f32.mrb[0].mxu0
        %v642 = vadd.f32 %v428, %v641
        %643 = vdwg.mxu0
        %v644 = vmul.f32 %v636, %v636
        %v645 = vmul.f32 %v638, %v638
        %v646 = vmul.f32 %v640, %v640
        %v647 = vmul.f32 %v642, %v642
        %v648 = vmul.f32 %v636, %v644
        %v649 = vmul.f32 %v638, %v645
        %v650 = vmul.f32 %v640, %v646
        %v651 = vmul.f32 %v642, %v647
        %v652 = vmul.f32 %v648, 0.044715
        %v653 = vmul.f32 %v649, 0.044715
        %v654 = vmul.f32 %v650, 0.044715
        %v655 = vmul.f32 %v651, 0.044715
        %v656 = vadd.f32 %v636, %v652
        %v657 = vadd.f32 %v638, %v653
        %v658 = vadd.f32 %v640, %v654
        %v659 = vadd.f32 %v642, %v655
        %v660 = vmul.f32 %v656, 0.7978846
        %v661 = vmul.f32 %v657, 0.7978846
        %v662 = vmul.f32 %v658, 0.7978846
        %v663 = vmul.f32 %v659, 0.7978846
        %v664 = vtanh.pop %v660
        %v665 = vtanh.pop %v661
        %v666 = vtanh.pop %v662
        %v667 = vtanh.pop %v663
        %v668 = vadd.f32 %v664, 1.0
        %v669 = vadd.f32 %v665, 1.0
        %v670 = vadd.f32 %v666, 1.0
        %v671 = vadd.f32 %v667, 1.0
        %v672 = vmul.f32 %v668, 0.5
        %v673 = vmul.f32 %v669, 0.5
        %v674 = vmul.f32 %v670, 0.5
        %v675 = vmul.f32 %v671, 0.5
        %v676 = vmul.f32 %v636, %v672
        %v677 = vmul.f32 %v638, %v673
        %v678 = vmul.f32 %v640, %v674
        %v679 = vmul.f32 %v642, %v675
        %v680 = vpack.c.bf16 %v678, %v676
        %v681 = vpack.c.bf16 %v679, %v677
        %v684 = vunpack.c.l.b16 %v680
        %v685 = vunpack.c.l.b16 %v681
        %v686 = vunpack.c.h.b16 %v680
        %v687 = vunpack.c.h.b16 %v681
        %v688 = vpack.c.b16 %v685, %v684
        %v689 = vpack.c.b16 %v687, %v686
        %692 = vst [vmem:[%s369] sm:$0xff] %v688
        %693 = vst [vmem:[%s369 + $0x8] sm:$0xff] %v689
        %s694 = sand.u32 %s114, 1
        %s695 = sand.u32 %s114, 1
        %s696 = smul.addr %s695, 16
        %s697 = scalar_lea.vmem [#allocation3], %s696
        // Predicated region
        $region71: #{_lambda_.9} parent=65 // pred_check
          %p698 = pneg %p124
        $region72: #{_lambda_.9} parent=65 // pred_check_branch
          %700 = sbr.rel (%p698) target = $region74
        $region73: #{_lambda_.9} parent=65 // pred_region
          %s701 = smul.u32 2, %s18
          %s702 = smul.u32 2, %s19
          %s703 = smul.addr %s701, 4
          %s704 = sadd.s32 %s702, %s703
          %s705 = smul.addr %s704, 4
          %s706 = scalar_lea.vmem %s3, %s705
          // Predicated region
          $region75: #{_lambda_.9} parent=73 // pred_check
            _
          $region76: #{_lambda_.9} parent=73 // pred_check_branch
            %708 = sbr.rel (0) target = $region78
          $region77: #{_lambda_.9} parent=73 // pred_region
            // Predicated region
            $region79: #{_lambda_.9} parent=77 // pred_check
              _
            $region80: #{_lambda_.9} parent=77 // pred_check_branch
              %710 = sbr.rel (0) target = $region82
            $region81: #{_lambda_.9} parent=77 // pred_region
              // Predicated region
              $region94: #{_lambda_.9} parent=81 // pred_check
                _
              $region95: #{_lambda_.9} parent=81 // pred_check_branch
                %727 = sbr.rel (0) target = $region97
              $region96: #{_lambda_.9} parent=81 // pred_region
                loop: start=0, step=1, limit=1
                $region98: #{_lambda_.9} parent=96 // loop_pre_header
                  _
                $region99: #{_lambda_.9} parent=96 // loop_header
                  %s729 = sphi 0, %s733
                  %p730 = scmp.ge.s32.totalorder %s729, 1
                  %s734 = sphi %s697, %s697
                  %s735 = sphi %s706, %s706
                $region100: #{_lambda_.9} parent=96 // loop_header_branch
                  %732 = sbr.rel (%p730) target = $region104
                $region101: #{_lambda_.9} parent=96 // loop_body
                  %v736 = vld [vmem:[%s734] sm:$0xff]
                  %737 = vst [vmem:[%s735] sm:$0xff] %v736
                  %v738 = vld [vmem:[%s734 + $0x8] sm:$0xff]
                  %739 = vst [vmem:[%s735 + $0x10] sm:$0xff] %v738
                $region102: #{_lambda_.9} parent=96 // loop_footer
                  %s733 = sadd.s32 1, %s729
                $region103: #{_lambda_.9} parent=96 // loop_footer_branch
                  %728 = sbr.rel target = $region99
                $region104: #{_lambda_.9} parent=96 // loop_exit
                  _
              $region97: #{_lambda_.9} parent=81 // pred_fallthru
                _
              // Predicated region
              $region105: #{_lambda_.9} parent=81 // pred_check
                _
              $region106: #{_lambda_.9} parent=81 // pred_check_branch
                %741 = sbr.rel target = $region108
              $region107: #{_lambda_.9} parent=81 // pred_region
                _
              $region108: #{_lambda_.9} parent=81 // pred_fallthru
                _
            $region82: #{_lambda_.9} parent=77 // pred_fallthru
              _
            // Predicated region
            $region83: #{_lambda_.9} parent=77 // pred_check
              _
            $region84: #{_lambda_.9} parent=77 // pred_check_branch
              %712 = sbr.rel target = $region86
            $region85: #{_lambda_.9} parent=77 // pred_region
              loop: start=0, step=1, limit=1
              $region87: #{_lambda_.9} parent=85 // loop_pre_header
                _
              $region88: #{_lambda_.9} parent=85 // loop_header
                %s715 = sphi 0, %s719
                %p716 = scmp.ge.s32.totalorder %s715, 1
                %s720 = sphi %s697, %s697
                %s721 = sphi %s706, %s706
              $region89: #{_lambda_.9} parent=85 // loop_header_branch
                %718 = sbr.rel (%p716) target = $region93
              $region90: #{_lambda_.9} parent=85 // loop_body
                %v722 = vld [vmem:[%s720] sm:$0xff]
                %723 = vst [vmem:[%s721] sm:$0xff] %v722
                %v724 = vld [vmem:[%s720 + $0x8] sm:$0xff]
                %725 = vst [vmem:[%s721 + $0x10] sm:$0xff] %v724
              $region91: #{_lambda_.9} parent=85 // loop_footer
                %s719 = sadd.s32 1, %s715
              $region92: #{_lambda_.9} parent=85 // loop_footer_branch
                %714 = sbr.rel target = $region88
              $region93: #{_lambda_.9} parent=85 // loop_exit
                _
            $region86: #{_lambda_.9} parent=77 // pred_fallthru
              _
          $region78: #{_lambda_.9} parent=73 // pred_fallthru
            _
          %742 = vnop
        $region74: #{_lambda_.9} parent=65 // pred_fallthru
          _
      $region66: #{_lambda_.9} parent=5 // pred_fallthru
        _
      %p743 = scmp.le.s32.totalorder 2, %s9
      // Predicated region
      $region109: #{_lambda_.9} parent=5 // pred_check
        %p744 = pneg %p743
      $region110: #{_lambda_.9} parent=5 // pred_check_branch
        %746 = sbr.rel (%p744) target = $region112
      $region111: #{_lambda_.9} parent=5 // pred_region
        %s747 = ssub.s32 %s9, 2
        // Predicated region
        $region113: #{_lambda_.9} parent=111 // pred_check
          %p748 = pneg %p130
        $region114: #{_lambda_.9} parent=111 // pred_check_branch
          %750 = sbr.rel (%p748) target = $region116
        $region115: #{_lambda_.9} parent=111 // pred_region
          %s751 = sand.u32 %s115, 1
          %s752 = sand.u32 %s115, 1
          %s753 = smul.addr %s752, 16
          %s754 = scalar_lea.vmem [#allocation3], %s753
        $region116: #{_lambda_.9} parent=111 // pred_fallthru
          _
      $region112: #{_lambda_.9} parent=5 // pred_fallthru
        _
    $region6: #{_lambda_.9} parent=1 // loop_footer
      %s13 = sadd.s32 1, %s9
    $region7: #{_lambda_.9} parent=1 // loop_footer_branch
      %8 = sbr.rel target = $region3
    $region8: #{_lambda_.9} parent=1 // loop_exit
      _

// kernel: _lambda_.15
$region0: #{_lambda_.15}
  #allocation0 [shape = 'u32[]', space=smem, size = 0x4, offset = 0x4, fixed_abs, tag = 'smem constant byte address 0x4 - core index']
  #allocation1 [shape = 'u32[144,128]{1,0:T(1,128)}', space=vmem, size = 0x12000, scoped, tag = 'internal scratch']
  %s0 = inlined_call_operand.vmem [shape: bf16[512,8], index: 0, kind: input, shape index: {}]
  %s1 = inlined_call_operand.vmem [shape: bf16[8,8], index: 1, kind: input, shape index: {}]
  %s2 = inlined_call_operand.vmem [shape: f32[1,8], index: 2, kind: input, shape index: {}]
  %s3 = inlined_call_operand.vmem [shape: f32[512,8], index: 3, kind: output, shape index: {}]
  %s4 = sld [smem:[#allocation0]]
  $region22: #{_lambda_.15} parent=0
    _
  %s6 = ssub.s32 1, %s4
  %s7 = scalar_select 0, %s6, %s4
  // Predicated region
  $region2: #{_lambda_.15} parent=0 // pred_check
    _
  $region3: #{_lambda_.15} parent=0 // pred_check_branch
    %9 = sbr.rel (0) target = $region5
  $region4: #{_lambda_.15} parent=0 // pred_region
    _
  $region5: #{_lambda_.15} parent=0 // pred_fallthru
    _
  // Predicated region
  $region6: #{_lambda_.15} parent=0 // pred_check
    _
  $region7: #{_lambda_.15} parent=0 // pred_check_branch
    %11 = sbr.rel (0) target = $region9
  $region8: #{_lambda_.15} parent=0 // pred_region
    _
  $region9: #{_lambda_.15} parent=0 // pred_fallthru
    _
  // Predicated region
  $region10: #{_lambda_.15} parent=0 // pred_check
    _
  $region11: #{_lambda_.15} parent=0 // pred_check_branch
    %13 = sbr.rel (0) target = $region13
  $region12: #{_lambda_.15} parent=0 // pred_region
    _
  $region13: #{_lambda_.15} parent=0 // pred_fallthru
    _
  %v15 = vld [vmem:[%s0] sm:$0xf]
  %v16 = vld [vmem:[%s0 + $0x4] sm:$0xf]
  %v17 = vld [vmem:[%s0 + $0x8] sm:$0xf]
  %v18 = vld [vmem:[%s0 + $0xc] sm:$0xf]
  %v19 = vld [vmem:[%s0 + $0x10] sm:$0xf]
  %v20 = vld [vmem:[%s0 + $0x14] sm:$0xf]
  %v21 = vld [vmem:[%s0 + $0x18] sm:$0xf]
  %v22 = vld [vmem:[%s0 + $0x1c] sm:$0xf]
  %v23 = vld [vmem:[%s0 + $0x20] sm:$0xf]
  %v24 = vld [vmem:[%s0 + $0x24] sm:$0xf]
  %v25 = vld [vmem:[%s0 + $0x28] sm:$0xf]
  %v26 = vld [vmem:[%s0 + $0x2c] sm:$0xf]
  %v27 = vld [vmem:[%s0 + $0x30] sm:$0xf]
  %v28 = vld [vmem:[%s0 + $0x34] sm:$0xf]
  %v29 = vld [vmem:[%s0 + $0x38] sm:$0xf]
  %v30 = vld [vmem:[%s0 + $0x3c] sm:$0xf]
  %v31 = vld [vmem:[%s0 + $0x40] sm:$0xf]
  %v32 = vld [vmem:[%s0 + $0x44] sm:$0xf]
  %v33 = vld [vmem:[%s0 + $0x48] sm:$0xf]
  %v34 = vld [vmem:[%s0 + $0x4c] sm:$0xf]
  %v35 = vld [vmem:[%s0 + $0x50] sm:$0xf]
  %v36 = vld [vmem:[%s0 + $0x54] sm:$0xf]
  %v37 = vld [vmem:[%s0 + $0x58] sm:$0xf]
  %v38 = vld [vmem:[%s0 + $0x5c] sm:$0xf]
  %v39 = vld [vmem:[%s0 + $0x60] sm:$0xf]
  %v40 = vld [vmem:[%s0 + $0x64] sm:$0xf]
  %v41 = vld [vmem:[%s0 + $0x68] sm:$0xf]
  %v42 = vld [vmem:[%s0 + $0x6c] sm:$0xf]
  %v43 = vld [vmem:[%s0 + $0x70] sm:$0xf]
  %v44 = vld [vmem:[%s0 + $0x74] sm:$0xf]
  %v45 = vld [vmem:[%s0 + $0x78] sm:$0xf]
  %v46 = vld [vmem:[%s0 + $0x7c] sm:$0xf]
  %v47 = vld [vmem:[%s0 + $0x80] sm:$0xf]
  %v48 = vld [vmem:[%s0 + $0x84] sm:$0xf]
  %v49 = vld [vmem:[%s0 + $0x88] sm:$0xf]
  %v50 = vld [vmem:[%s0 + $0x8c] sm:$0xf]
  %v51 = vld [vmem:[%s0 + $0x90] sm:$0xf]
  %v52 = vld [vmem:[%s0 + $0x94] sm:$0xf]
  %v53 = vld [vmem:[%s0 + $0x98] sm:$0xf]
  %v54 = vld [vmem:[%s0 + $0x9c] sm:$0xf]
  %v55 = vld [vmem:[%s0 + $0xa0] sm:$0xf]
  %v56 = vld [vmem:[%s0 + $0xa4] sm:$0xf]
  %v57 = vld [vmem:[%s0 + $0xa8] sm:$0xf]
  %v58 = vld [vmem:[%s0 + $0xac] sm:$0xf]
  %v59 = vld [vmem:[%s0 + $0xb0] sm:$0xf]
  %v60 = vld [vmem:[%s0 + $0xb4] sm:$0xf]
  %v61 = vld [vmem:[%s0 + $0xb8] sm:$0xf]
  %v62 = vld [vmem:[%s0 + $0xbc] sm:$0xf]
  %v63 = vld [vmem:[%s0 + $0xc0] sm:$0xf]
  %v64 = vld [vmem:[%s0 + $0xc4] sm:$0xf]
  %v65 = vld [vmem:[%s0 + $0xc8] sm:$0xf]
  %v66 = vld [vmem:[%s0 + $0xcc] sm:$0xf]
  %v67 = vld [vmem:[%s0 + $0xd0] sm:$0xf]
  %v68 = vld [vmem:[%s0 + $0xd4] sm:$0xf]
  %v69 = vld [vmem:[%s0 + $0xd8] sm:$0xf]
  %v70 = vld [vmem:[%s0 + $0xdc] sm:$0xf]
  %v71 = vld [vmem:[%s0 + $0xe0] sm:$0xf]
  %v72 = vld [vmem:[%s0 + $0xe4] sm:$0xf]
  %v73 = vld [vmem:[%s0 + $0xe8] sm:$0xf]
  %v74 = vld [vmem:[%s0 + $0xec] sm:$0xf]
  %v75 = vld [vmem:[%s0 + $0xf0] sm:$0xf]
  %v76 = vld [vmem:[%s0 + $0xf4] sm:$0xf]
  %v77 = vld [vmem:[%s0 + $0xf8] sm:$0xf]
  %v78 = vld [vmem:[%s0 + $0xfc] sm:$0xf]
  %v79 = vld [vmem:[%s1] sm:$0xf]
  %v80 = vld [vmem:[%s2] sm:$0x1]
  %v82 = vlaneseq
  %v83 = vshrl.u32 %v82, 7
  %v84 = vsub.s32 0, %v83
  %v85 = vrot.slane %v80, %v84
  %v151 = vunpack.c.l.b16 %v15
  %v152 = vunpack.c.l.b16 %v16
  %v153 = vunpack.c.l.b16 %v17
  %v154 = vunpack.c.l.b16 %v18
  %v155 = vunpack.c.l.b16 %v19
  %v156 = vunpack.c.l.b16 %v20
  %v157 = vunpack.c.l.b16 %v21
  %v158 = vunpack.c.l.b16 %v22
  %v159 = vunpack.c.l.b16 %v23
  %v160 = vunpack.c.l.b16 %v24
  %v161 = vunpack.c.l.b16 %v25
  %v162 = vunpack.c.l.b16 %v26
  %v163 = vunpack.c.l.b16 %v27
  %v164 = vunpack.c.l.b16 %v28
  %v165 = vunpack.c.l.b16 %v29
  %v166 = vunpack.c.l.b16 %v30
  %v167 = vunpack.c.l.b16 %v31
  %v168 = vunpack.c.l.b16 %v32
  %v169 = vunpack.c.l.b16 %v33
  %v170 = vunpack.c.l.b16 %v34
  %v171 = vunpack.c.l.b16 %v35
  %v172 = vunpack.c.l.b16 %v36
  %v173 = vunpack.c.l.b16 %v37
  %v174 = vunpack.c.l.b16 %v38
  %v175 = vunpack.c.l.b16 %v39
  %v176 = vunpack.c.l.b16 %v40
  %v177 = vunpack.c.l.b16 %v41
  %v178 = vunpack.c.l.b16 %v42
  %v179 = vunpack.c.l.b16 %v43
  %v180 = vunpack.c.l.b16 %v44
  %v181 = vunpack.c.l.b16 %v45
  %v182 = vunpack.c.l.b16 %v46
  %v183 = vunpack.c.l.b16 %v47
  %v184 = vunpack.c.l.b16 %v48
  %v185 = vunpack.c.l.b16 %v49
  %v186 = vunpack.c.l.b16 %v50
  %v187 = vunpack.c.l.b16 %v51
  %v188 = vunpack.c.l.b16 %v52
  %v189 = vunpack.c.l.b16 %v53
  %v190 = vunpack.c.l.b16 %v54
  %v191 = vunpack.c.l.b16 %v55
  %v192 = vunpack.c.l.b16 %v56
  %v193 = vunpack.c.l.b16 %v57
  %v194 = vunpack.c.l.b16 %v58
  %v195 = vunpack.c.l.b16 %v59
  %v196 = vunpack.c.l.b16 %v60
  %v197 = vunpack.c.l.b16 %v61
  %v198 = vunpack.c.l.b16 %v62
  %v199 = vunpack.c.l.b16 %v63
  %v200 = vunpack.c.l.b16 %v64
  %v201 = vunpack.c.l.b16 %v65
  %v202 = vunpack.c.l.b16 %v66
  %v203 = vunpack.c.l.b16 %v67
  %v204 = vunpack.c.l.b16 %v68
  %v205 = vunpack.c.l.b16 %v69
  %v206 = vunpack.c.l.b16 %v70
  %v207 = vunpack.c.l.b16 %v71
  %v208 = vunpack.c.l.b16 %v72
  %v209 = vunpack.c.l.b16 %v73
  %v210 = vunpack.c.l.b16 %v74
  %v211 = vunpack.c.l.b16 %v75
  %v212 = vunpack.c.l.b16 %v76
  %v213 = vunpack.c.l.b16 %v77
  %v214 = vunpack.c.l.b16 %v78
  %v215 = vpack.c.b16 %v152, %v151
  %v216 = vpack.c.b16 %v154, %v153
  %v217 = vpack.c.b16 %v156, %v155
  %v218 = vpack.c.b16 %v158, %v157
  %v219 = vpack.c.b16 %v160, %v159
  %v220 = vpack.c.b16 %v162, %v161
  %v221 = vpack.c.b16 %v164, %v163
  %v222 = vpack.c.b16 %v166, %v165
  %v223 = vpack.c.b16 %v168, %v167
  %v224 = vpack.c.b16 %v170, %v169
  %v225 = vpack.c.b16 %v172, %v171
  %v226 = vpack.c.b16 %v174, %v173
  %v227 = vpack.c.b16 %v176, %v175
  %v228 = vpack.c.b16 %v178, %v177
  %v229 = vpack.c.b16 %v180, %v179
  %v230 = vpack.c.b16 %v182, %v181
  %v231 = vpack.c.b16 %v184, %v183
  %v232 = vpack.c.b16 %v186, %v185
  %v233 = vpack.c.b16 %v188, %v187
  %v234 = vpack.c.b16 %v190, %v189
  %v235 = vpack.c.b16 %v192, %v191
  %v236 = vpack.c.b16 %v194, %v193
  %v237 = vpack.c.b16 %v196, %v195
  %v238 = vpack.c.b16 %v198, %v197
  %v239 = vpack.c.b16 %v200, %v199
  %v240 = vpack.c.b16 %v202, %v201
  %v241 = vpack.c.b16 %v204, %v203
  %v242 = vpack.c.b16 %v206, %v205
  %v243 = vpack.c.b16 %v208, %v207
  %v244 = vpack.c.b16 %v210, %v209
  %v245 = vpack.c.b16 %v212, %v211
  %v246 = vpack.c.b16 %v214, %v213
  %vm247 = vcmask 64512
  %v249 = vsel %vm247, %v215, 0
  %v252 = vsel %vm247, %v216, 0
  %v255 = vsel %vm247, %v217, 0
  %v258 = vsel %vm247, %v218, 0
  %v261 = vsel %vm247, %v219, 0
  %v264 = vsel %vm247, %v220, 0
  %v267 = vsel %vm247, %v221, 0
  %v270 = vsel %vm247, %v222, 0
  %v273 = vsel %vm247, %v223, 0
  %v276 = vsel %vm247, %v224, 0
  %v279 = vsel %vm247, %v225, 0
  %v282 = vsel %vm247, %v226, 0
  %v285 = vsel %vm247, %v227, 0
  %v288 = vsel %vm247, %v228, 0
  %v291 = vsel %vm247, %v229, 0
  %v294 = vsel %vm247, %v230, 0
  %v297 = vsel %vm247, %v231, 0
  %v300 = vsel %vm247, %v232, 0
  %v303 = vsel %vm247, %v233, 0
  %v306 = vsel %vm247, %v234, 0
  %v309 = vsel %vm247, %v235, 0
  %v312 = vsel %vm247, %v236, 0
  %v315 = vsel %vm247, %v237, 0
  %v318 = vsel %vm247, %v238, 0
  %v321 = vsel %vm247, %v239, 0
  %v324 = vsel %vm247, %v240, 0
  %v327 = vsel %vm247, %v241, 0
  %v330 = vsel %vm247, %v242, 0
  %v333 = vsel %vm247, %v243, 0
  %v336 = vsel %vm247, %v244, 0
  %v339 = vsel %vm247, %v245, 0
  %v342 = vsel %vm247, %v246, 0
  %vm344 = vcmask 1043456
  %v346 = vsel %vm344, %v79, 0
  %348 = vmatprep.subr.bf16.mxu0 0
  %349 = vmatpush1.bf16.msra.mxu0 %v346
  %350 = vmatprep.subr.bf16.mxu0 0
  %351 = vmatpush1.bf16.msra.mxu0 0
  %352 = vmatprep.subr.bf16.mxu0 0
  %353 = vmatpush1.bf16.msra.mxu0 0
  %354 = vmatprep.subr.bf16.mxu0 0
  %355 = vmatpush1.bf16.msra.mxu0 0
  %356 = vmatprep.subr.bf16.mxu0 0
  %357 = vmatpush1.bf16.msra.mxu0 0
  %358 = vmatprep.subr.bf16.mxu0 0
  %359 = vmatpush1.bf16.msra.mxu0 0
  %360 = vmatprep.subr.bf16.mxu0 0
  %361 = vmatpush1.bf16.msra.mxu0 0
  %362 = vmatprep.subr.bf16.mxu0 0
  %363 = vmatpush1.bf16.msra.mxu0 0
  %364 = vmatprep.subr.bf16.mxu0 0
  %365 = vmatpush1.bf16.msra.mxu0 0
  %366 = vmatprep.subr.bf16.mxu0 0
  %367 = vmatpush1.bf16.msra.mxu0 0
  %368 = vmatprep.subr.bf16.mxu0 0
  %369 = vmatpush1.bf16.msra.mxu0 0
  %370 = vmatprep.subr.bf16.mxu0 0
  %371 = vmatpush1.bf16.msra.mxu0 0
  %372 = vmatprep.subr.bf16.mxu0 0
  %373 = vmatpush1.bf16.msra.mxu0 0
  %374 = vmatprep.subr.bf16.mxu0 0
  %375 = vmatpush1.bf16.msra.mxu0 0
  %376 = vmatprep.subr.bf16.mxu0 0
  %377 = vmatpush1.bf16.msra.mxu0 0
  %378 = vmatprep.subr.bf16.mxu0 0
  %379 = vmatpush1.bf16.msra.mxu0 0
  %380 = vmatprep.mubr.bf16.mxu0 0
  %381 = vmatmul.mubr.bf16.gmra.mrb[0].mxu0 %v249
  %v382 = vpop.f32.mrb[0].mxu0
  %v383 = vadd.f32 %v85, %v382
  %v384 = vpop.f32.mrb[0].mxu0
  %v385 = vpop.f32.mrb[0].mxu0
  %v386 = vadd.f32 %v85, %v385
  %v387 = vpop.f32.mrb[0].mxu0
  %388 = vmatprep.mubr.bf16.mxu0 0
  %389 = vmatmul.mubr.bf16.gmra.mrb[0].mxu0 %v252
  %v390 = vpop.f32.mrb[0].mxu0
  %v391 = vadd.f32 %v85, %v390
  %v392 = vpop.f32.mrb[0].mxu0
  %v393 = vpop.f32.mrb[0].mxu0
  %v394 = vadd.f32 %v85, %v393
  %v395 = vpop.f32.mrb[0].mxu0
  %396 = vmatprep.mubr.bf16.mxu0 0
  %397 = vmatmul.mubr.bf16.gmra.mrb[0].mxu0 %v255
  %v398 = vpop.f32.mrb[0].mxu0
  %v399 = vadd.f32 %v85, %v398
  %v400 = vpop.f32.mrb[0].mxu0
  %v401 = vpop.f32.mrb[0].mxu0
  %v402 = vadd.f32 %v85, %v401
  %v403 = vpop.f32.mrb[0].mxu0
  %404 = vmatprep.mubr.bf16.mxu0 0
  %405 = vmatmul.mubr.bf16.gmra.mrb[0].mxu0 %v258
  %v406 = vpop.f32.mrb[0].mxu0
  %v407 = vadd.f32 %v85, %v406
  %v408 = vpop.f32.mrb[0].mxu0
  %v409 = vpop.f32.mrb[0].mxu0
  %v410 = vadd.f32 %v85, %v409
  %v411 = vpop.f32.mrb[0].mxu0
  %412 = vmatprep.mubr.bf16.mxu0 0
  %413 = vmatmul.mubr.bf16.gmra.mrb[0].mxu0 %v261
  %v414 = vpop.f32.mrb[0].mxu0
  %v415 = vadd.f32 %v85, %v414
  %v416 = vpop.f32.mrb[0].mxu0
  %v417 = vpop.f32.mrb[0].mxu0
  %v418 = vadd.f32 %v85, %v417
  %v419 = vpop.f32.mrb[0].mxu0
  %420 = vmatprep.mubr.bf16.mxu0 0
  %421 = vmatmul.mubr.bf16.gmra.mrb[0].mxu0 %v264
  %v422 = vpop.f32.mrb[0].mxu0
  %v423 = vadd.f32 %v85, %v422
  %v424 = vpop.f32.mrb[0].mxu0
  %v425 = vpop.f32.mrb[0].mxu0
  %v426 = vadd.f32 %v85, %v425
  %v427 = vpop.f32.mrb[0].mxu0
  %428 = vmatprep.mubr.bf16.mxu0 0
  %429 = vmatmul.mubr.bf16.gmra.mrb[0].mxu0 %v267
  %v430 = vpop.f32.mrb[0].mxu0
  %v431 = vadd.f32 %v85, %v430
  %v432 = vpop.f32.mrb[0].mxu0
  %v433 = vpop.f32.mrb[0].mxu0
  %v434 = vadd.f32 %v85, %v433
  %v435 = vpop.f32.mrb[0].mxu0
  %436 = vmatprep.mubr.bf16.mxu0 0
  %437 = vmatmul.mubr.bf16.gmra.mrb[0].mxu0 %v270
  %v438 = vpop.f32.mrb[0].mxu0
  %v439 = vadd.f32 %v85, %v438
  %v440 = vpop.f32.mrb[0].mxu0
  %v441 = vpop.f32.mrb[0].mxu0
  %v442 = vadd.f32 %v85, %v441
  %v443 = vpop.f32.mrb[0].mxu0
  %444 = vmatprep.mubr.bf16.mxu0 0
  %445 = vmatmul.mubr.bf16.gmra.mrb[0].mxu0 %v273
  %v446 = vpop.f32.mrb[0].mxu0
  %v447 = vadd.f32 %v85, %v446
  %v448 = vpop.f32.mrb[0].mxu0
  %v449 = vpop.f32.mrb[0].mxu0
  %v450 = vadd.f32 %v85, %v449
  %v451 = vpop.f32.mrb[0].mxu0
  %452 = vmatprep.mubr.bf16.mxu0 0
  %453 = vmatmul.mubr.bf16.gmra.mrb[0].mxu0 %v276
  %v454 = vpop.f32.mrb[0].mxu0
  %v455 = vadd.f32 %v85, %v454
  %v456 = vpop.f32.mrb[0].mxu0
  %v457 = vpop.f32.mrb[0].mxu0
  %v458 = vadd.f32 %v85, %v457
  %v459 = vpop.f32.mrb[0].mxu0
  %460 = vmatprep.mubr.bf16.mxu0 0
  %461 = vmatmul.mubr.bf16.gmra.mrb[0].mxu0 %v279
  %v462 = vpop.f32.mrb[0].mxu0
  %v463 = vadd.f32 %v85, %v462
  %v464 = vpop.f32.mrb[0].mxu0
  %v465 = vpop.f32.mrb[0].mxu0
  %v466 = vadd.f32 %v85, %v465
  %v467 = vpop.f32.mrb[0].mxu0
  %468 = vmatprep.mubr.bf16.mxu0 0
  %469 = vmatmul.mubr.bf16.gmra.mrb[0].mxu0 %v282
  %v470 = vpop.f32.mrb[0].mxu0
  %v471 = vadd.f32 %v85, %v470
  %v472 = vpop.f32.mrb[0].mxu0
  %v473 = vpop.f32.mrb[0].mxu0
  %v474 = vadd.f32 %v85, %v473
  %v475 = vpop.f32.mrb[0].mxu0
  %476 = vmatprep.mubr.bf16.mxu0 0
  %477 = vmatmul.mubr.bf16.gmra.mrb[0].mxu0 %v285
  %v478 = vpop.f32.mrb[0].mxu0
  %v479 = vadd.f32 %v85, %v478
  %v480 = vpop.f32.mrb[0].mxu0
  %v481 = vpop.f32.mrb[0].mxu0
  %v482 = vadd.f32 %v85, %v481
  %v483 = vpop.f32.mrb[0].mxu0
  %484 = vmatprep.mubr.bf16.mxu0 0
  %485 = vmatmul.mubr.bf16.gmra.mrb[0].mxu0 %v288
  %v486 = vpop.f32.mrb[0].mxu0
  %v487 = vadd.f32 %v85, %v486
  %v488 = vpop.f32.mrb[0].mxu0
  %v489 = vpop.f32.mrb[0].mxu0
  %v490 = vadd.f32 %v85, %v489
  %v491 = vpop.f32.mrb[0].mxu0
  %492 = vmatprep.mubr.bf16.mxu0 0
  %493 = vmatmul.mubr.bf16.gmra.mrb[0].mxu0 %v291
  %v494 = vpop.f32.mrb[0].mxu0
  %v495 = vadd.f32 %v85, %v494
  %v496 = vpop.f32.mrb[0].mxu0
  %v497 = vpop.f32.mrb[0].mxu0
  %v498 = vadd.f32 %v85, %v497
  %v499 = vpop.f32.mrb[0].mxu0
  %500 = vmatprep.mubr.bf16.mxu0 0
  %501 = vmatmul.mubr.bf16.gmra.mrb[0].mxu0 %v294
  %v502 = vpop.f32.mrb[0].mxu0
  %v503 = vadd.f32 %v85, %v502
  %v504 = vpop.f32.mrb[0].mxu0
  %v505 = vpop.f32.mrb[0].mxu0
  %v506 = vadd.f32 %v85, %v505
  %v507 = vpop.f32.mrb[0].mxu0
  %508 = vmatprep.mubr.bf16.mxu0 0
  %509 = vmatmul.mubr.bf16.gmra.mrb[0].mxu0 %v297
  %v510 = vpop.f32.mrb[0].mxu0
  %v511 = vadd.f32 %v85, %v510
  %v512 = vpop.f32.mrb[0].mxu0
  %v513 = vpop.f32.mrb[0].mxu0
  %v514 = vadd.f32 %v85, %v513
  %v515 = vpop.f32.mrb[0].mxu0
  %516 = vmatprep.mubr.bf16.mxu0 0
  %517 = vmatmul.mubr.bf16.gmra.mrb[0].mxu0 %v300
  %v518 = vpop.f32.mrb[0].mxu0
  %v519 = vadd.f32 %v85, %v518
  %v520 = vpop.f32.mrb[0].mxu0
  %v521 = vpop.f32.mrb[0].mxu0
  %v522 = vadd.f32 %v85, %v521
  %v523 = vpop.f32.mrb[0].mxu0
  %524 = vmatprep.mubr.bf16.mxu0 0
  %525 = vmatmul.mubr.bf16.gmra.mrb[0].mxu0 %v303
  %v526 = vpop.f32.mrb[0].mxu0
  %v527 = vadd.f32 %v85, %v526
  %v528 = vpop.f32.mrb[0].mxu0
  %v529 = vpop.f32.mrb[0].mxu0
  %v530 = vadd.f32 %v85, %v529
  %v531 = vpop.f32.mrb[0].mxu0
  %532 = vmatprep.mubr.bf16.mxu0 0
  %533 = vmatmul.mubr.bf16.gmra.mrb[0].mxu0 %v306
  %v534 = vpop.f32.mrb[0].mxu0
  %v535 = vadd.f32 %v85, %v534
  %v536 = vpop.f32.mrb[0].mxu0
  %v537 = vpop.f32.mrb[0].mxu0
  %v538 = vadd.f32 %v85, %v537
  %v539 = vpop.f32.mrb[0].mxu0
  %540 = vmatprep.mubr.bf16.mxu0 0
  %541 = vmatmul.mubr.bf16.gmra.mrb[0].mxu0 %v309
  %v542 = vpop.f32.mrb[0].mxu0
  %v543 = vadd.f32 %v85, %v542
  %v544 = vpop.f32.mrb[0].mxu0
  %v545 = vpop.f32.mrb[0].mxu0
  %v546 = vadd.f32 %v85, %v545
  %v547 = vpop.f32.mrb[0].mxu0
  %548 = vmatprep.mubr.bf16.mxu0 0
  %549 = vmatmul.mubr.bf16.gmra.mrb[0].mxu0 %v312
  %v550 = vpop.f32.mrb[0].mxu0
  %v551 = vadd.f32 %v85, %v550
  %v552 = vpop.f32.mrb[0].mxu0
  %v553 = vpop.f32.mrb[0].mxu0
  %v554 = vadd.f32 %v85, %v553
  %v555 = vpop.f32.mrb[0].mxu0
  %556 = vmatprep.mubr.bf16.mxu0 0
  %557 = vmatmul.mubr.bf16.gmra.mrb[0].mxu0 %v315
  %v558 = vpop.f32.mrb[0].mxu0
  %v559 = vadd.f32 %v85, %v558
  %v560 = vpop.f32.mrb[0].mxu0
  %v561 = vpop.f32.mrb[0].mxu0
  %v562 = vadd.f32 %v85, %v561
  %v563 = vpop.f32.mrb[0].mxu0
  %564 = vmatprep.mubr.bf16.mxu0 0
  %565 = vmatmul.mubr.bf16.gmra.mrb[0].mxu0 %v318
  %v566 = vpop.f32.mrb[0].mxu0
  %v567 = vadd.f32 %v85, %v566
  %v568 = vpop.f32.mrb[0].mxu0
  %v569 = vpop.f32.mrb[0].mxu0
  %v570 = vadd.f32 %v85, %v569
  %v571 = vpop.f32.mrb[0].mxu0
  %572 = vmatprep.mubr.bf16.mxu0 0
  %573 = vmatmul.mubr.bf16.gmra.mrb[0].mxu0 %v321
  %v574 = vpop.f32.mrb[0].mxu0
  %v575 = vadd.f32 %v85, %v574
  %v576 = vpop.f32.mrb[0].mxu0
  %v577 = vpop.f32.mrb[0].mxu0
  %v578 = vadd.f32 %v85, %v577
  %v579 = vpop.f32.mrb[0].mxu0
  %580 = vmatprep.mubr.bf16.mxu0 0
  %581 = vmatmul.mubr.bf16.gmra.mrb[0].mxu0 %v324
  %v582 = vpop.f32.mrb[0].mxu0
  %v583 = vadd.f32 %v85, %v582
  %v584 = vpop.f32.mrb[0].mxu0
  %v585 = vpop.f32.mrb[0].mxu0
  %v586 = vadd.f32 %v85, %v585
  %v587 = vpop.f32.mrb[0].mxu0
  %588 = vmatprep.mubr.bf16.mxu0 0
  %589 = vmatmul.mubr.bf16.gmra.mrb[0].mxu0 %v327
  %v590 = vpop.f32.mrb[0].mxu0
  %v591 = vadd.f32 %v85, %v590
  %v592 = vpop.f32.mrb[0].mxu0
  %v593 = vpop.f32.mrb[0].mxu0
  %v594 = vadd.f32 %v85, %v593
  %v595 = vpop.f32.mrb[0].mxu0
  %596 = vmatprep.mubr.bf16.mxu0 0
  %597 = vmatmul.mubr.bf16.gmra.mrb[0].mxu0 %v330
  %v598 = vpop.f32.mrb[0].mxu0
  %v599 = vadd.f32 %v85, %v598
  %v600 = vpop.f32.mrb[0].mxu0
  %v601 = vpop.f32.mrb[0].mxu0
  %v602 = vadd.f32 %v85, %v601
  %v603 = vpop.f32.mrb[0].mxu0
  %604 = vmatprep.mubr.bf16.mxu0 0
  %605 = vmatmul.mubr.bf16.gmra.mrb[0].mxu0 %v333
  %v606 = vpop.f32.mrb[0].mxu0
  %v607 = vadd.f32 %v85, %v606
  %v608 = vpop.f32.mrb[0].mxu0
  %v609 = vpop.f32.mrb[0].mxu0
  %v610 = vadd.f32 %v85, %v609
  %v611 = vpop.f32.mrb[0].mxu0
  %612 = vmatprep.mubr.bf16.mxu0 0
  %613 = vmatmul.mubr.bf16.gmra.mrb[0].mxu0 %v336
  %v614 = vpop.f32.mrb[0].mxu0
  %v615 = vadd.f32 %v85, %v614
  %v616 = vpop.f32.mrb[0].mxu0
  %v617 = vpop.f32.mrb[0].mxu0
  %v618 = vadd.f32 %v85, %v617
  %v619 = vpop.f32.mrb[0].mxu0
  %620 = vmatprep.mubr.bf16.mxu0 0
  %621 = vmatmul.mubr.bf16.gmra.mrb[0].mxu0 %v339
  %v622 = vpop.f32.mrb[0].mxu0
  %v623 = vadd.f32 %v85, %v622
  %v624 = vpop.f32.mrb[0].mxu0
  %v625 = vpop.f32.mrb[0].mxu0
  %v626 = vadd.f32 %v85, %v625
  %v627 = vpop.f32.mrb[0].mxu0
  %628 = vmatprep.mubr.bf16.mxu0 0
  %629 = vmatmul.mubr.bf16.gmra.mrb[0].mxu0 %v342
  %v630 = vpop.f32.mrb[0].mxu0
  %v631 = vadd.f32 %v85, %v630
  %v632 = vpop.f32.mrb[0].mxu0
  %v633 = vpop.f32.mrb[0].mxu0
  %v634 = vadd.f32 %v85, %v633
  %v635 = vpop.f32.mrb[0].mxu0
  %636 = vdwg.mxu0
  %637 = vst.msk [vmem:[%s3] sm:$0xff] %vm247, %v383
  %638 = vst.msk [vmem:[%s3 + $0x8] sm:$0xff] %vm247, %v386
  %639 = vst.msk [vmem:[%s3 + $0x10] sm:$0xff] %vm247, %v391
  %640 = vst.msk [vmem:[%s3 + $0x18] sm:$0xff] %vm247, %v394
  %641 = vst.msk [vmem:[%s3 + $0x20] sm:$0xff] %vm247, %v399
  %642 = vst.msk [vmem:[%s3 + $0x28] sm:$0xff] %vm247, %v402
  %643 = vst.msk [vmem:[%s3 + $0x30] sm:$0xff] %vm247, %v407
  %644 = vst.msk [vmem:[%s3 + $0x38] sm:$0xff] %vm247, %v410
  %645 = vst.msk [vmem:[%s3 + $0x40] sm:$0xff] %vm247, %v415
  %646 = vst.msk [vmem:[%s3 + $0x48] sm:$0xff] %vm247, %v418
  %647 = vst.msk [vmem:[%s3 + $0x50] sm:$0xff] %vm247, %v423
  %648 = vst.msk [vmem:[%s3 + $0x58] sm:$0xff] %vm247, %v426
  %649 = vst.msk [vmem:[%s3 + $0x60] sm:$0xff] %vm247, %v431
  %650 = vst.msk [vmem:[%s3 + $0x68] sm:$0xff] %vm247, %v434
  %651 = vst.msk [vmem:[%s3 + $0x70] sm:$0xff] %vm247, %v439
  %652 = vst.msk [vmem:[%s3 + $0x78] sm:$0xff] %vm247, %v442
  %653 = vst.msk [vmem:[%s3 + $0x80] sm:$0xff] %vm247, %v447
  %654 = vst.msk [vmem:[%s3 + $0x88] sm:$0xff] %vm247, %v450
  %655 = vst.msk [vmem:[%s3 + $0x90] sm:$0xff] %vm247, %v455
  %656 = vst.msk [vmem:[%s3 + $0x98] sm:$0xff] %vm247, %v458
  %657 = vst.msk [vmem:[%s3 + $0xa0] sm:$0xff] %vm247, %v463
  %658 = vst.msk [vmem:[%s3 + $0xa8] sm:$0xff] %vm247, %v466
  %659 = vst.msk [vmem:[%s3 + $0xb0] sm:$0xff] %vm247, %v471
  %660 = vst.msk [vmem:[%s3 + $0xb8] sm:$0xff] %vm247, %v474
  %661 = vst.msk [vmem:[%s3 + $0xc0] sm:$0xff] %vm247, %v479
  %662 = vst.msk [vmem:[%s3 + $0xc8] sm:$0xff] %vm247, %v482
  %663 = vst.msk [vmem:[%s3 + $0xd0] sm:$0xff] %vm247, %v487
  %664 = vst.msk [vmem:[%s3 + $0xd8] sm:$0xff] %vm247, %v490
  %665 = vst.msk [vmem:[%s3 + $0xe0] sm:$0xff] %vm247, %v495
  %666 = vst.msk [vmem:[%s3 + $0xe8] sm:$0xff] %vm247, %v498
  %667 = vst.msk [vmem:[%s3 + $0xf0] sm:$0xff] %vm247, %v503
  %668 = vst.msk [vmem:[%s3 + $0xf8] sm:$0xff] %vm247, %v506
  %669 = vst.msk [vmem:[%s3 + $0x100] sm:$0xff] %vm247, %v511
  %670 = vst.msk [vmem:[%s3 + $0x108] sm:$0xff] %vm247, %v514
  %671 = vst.msk [vmem:[%s3 + $0x110] sm:$0xff] %vm247, %v519
  %672 = vst.msk [vmem:[%s3 + $0x118] sm:$0xff] %vm247, %v522
  %673 = vst.msk [vmem:[%s3 + $0x120] sm:$0xff] %vm247, %v527
  %674 = vst.msk [vmem:[%s3 + $0x128] sm:$0xff] %vm247, %v530
  %675 = vst.msk [vmem:[%s3 + $0x130] sm:$0xff] %vm247, %v535
  %676 = vst.msk [vmem:[%s3 + $0x138] sm:$0xff] %vm247, %v538
  %677 = vst.msk [vmem:[%s3 + $0x140] sm:$0xff] %vm247, %v543
  %678 = vst.msk [vmem:[%s3 + $0x148] sm:$0xff] %vm247, %v546
  %679 = vst.msk [vmem:[%s3 + $0x150] sm:$0xff] %vm247, %v551
  %680 = vst.msk [vmem:[%s3 + $0x158] sm:$0xff] %vm247, %v554
  %681 = vst.msk [vmem:[%s3 + $0x160] sm:$0xff] %vm247, %v559
  %682 = vst.msk [vmem:[%s3 + $0x168] sm:$0xff] %vm247, %v562
  %683 = vst.msk [vmem:[%s3 + $0x170] sm:$0xff] %vm247, %v567
  %684 = vst.msk [vmem:[%s3 + $0x178] sm:$0xff] %vm247, %v570
  %685 = vst.msk [vmem:[%s3 + $0x180] sm:$0xff] %vm247, %v575
  %686 = vst.msk [vmem:[%s3 + $0x188] sm:$0xff] %vm247, %v578
  %687 = vst.msk [vmem:[%s3 + $0x190] sm:$0xff] %vm247, %v583
  %688 = vst.msk [vmem:[%s3 + $0x198] sm:$0xff] %vm247, %v586
  %689 = vst.msk [vmem:[%s3 + $0x1a0] sm:$0xff] %vm247, %v591
  %690 = vst.msk [vmem:[%s3 + $0x1a8] sm:$0xff] %vm247, %v594
  %691 = vst.msk [vmem:[%s3 + $0x1b0] sm:$0xff] %vm247, %v599
  %692 = vst.msk [vmem:[%s3 + $0x1b8] sm:$0xff] %vm247, %v602
  %693 = vst.msk [vmem:[%s3 + $0x1c0] sm:$0xff] %vm247, %v607
  %694 = vst.msk [vmem:[%s3 + $0x1c8] sm:$0xff] %vm247, %v610
  %695 = vst.msk [vmem:[%s3 + $0x1d0] sm:$0xff] %vm247, %v615
  %696 = vst.msk [vmem:[%s3 + $0x1d8] sm:$0xff] %vm247, %v618
  %697 = vst.msk [vmem:[%s3 + $0x1e0] sm:$0xff] %vm247, %v623
  %698 = vst.msk [vmem:[%s3 + $0x1e8] sm:$0xff] %vm247, %v626
  %699 = vst.msk [vmem:[%s3 + $0x1f0] sm:$0xff] %vm247, %v631
  %700 = vst.msk [vmem:[%s3 + $0x1f8] sm:$0xff] %vm247, %v634
  // Predicated region
  $region14: #{_lambda_.15} parent=0 // pred_check
    _
  $region15: #{_lambda_.15} parent=0 // pred_check_branch
    %702 = sbr.rel (0) target = $region17
  $region16: #{_lambda_.15} parent=0 // pred_region
    _
  $region17: #{_lambda_.15} parent=0 // pred_fallthru
    _
  // Predicated region
  $region18: #{_lambda_.15} parent=0 // pred_check
    _
  $region19: #{_lambda_.15} parent=0 // pred_check_branch
    %704 = sbr.rel (0) target = $region21
  $region20: #{_lambda_.15} parent=0 // pred_region
    _
  $region21: #{_lambda_.15} parent=0 // pred_fallthru
    _

// kernel: _lambda_.11
$region0: #{_lambda_.11}
  #allocation0 [shape = 'u32[]', space=smem, size = 0x4, offset = 0x4, fixed_abs, tag = 'smem constant byte address 0x4 - core index']
  #allocation1 [shape = 'u32[144,128]{1,0:T(1,128)}', space=vmem, size = 0x12000, scoped, tag = 'internal scratch']
  %s0 = inlined_call_operand.vmem [shape: bf16[512,8], index: 0, kind: input, shape index: {}]
  %s1 = inlined_call_operand.vmem [shape: bf16[8,8], index: 1, kind: input, shape index: {}]
  %s2 = inlined_call_operand.vmem [shape: f32[1,8], index: 2, kind: input, shape index: {}]
  %s3 = inlined_call_operand.vmem [shape: bf16[512,8], index: 3, kind: input, shape index: {}]
  %s4 = inlined_call_operand.vmem [shape: bf16[512,8], index: 4, kind: output, shape index: {}]
  %s5 = sld [smem:[#allocation0]]
  $region26: #{_lambda_.11} parent=0
    _
  %s7 = ssub.s32 1, %s5
  %s8 = scalar_select 0, %s7, %s5
  // Predicated region
  $region2: #{_lambda_.11} parent=0 // pred_check
    _
  $region3: #{_lambda_.11} parent=0 // pred_check_branch
    %10 = sbr.rel (0) target = $region5
  $region4: #{_lambda_.11} parent=0 // pred_region
    _
  $region5: #{_lambda_.11} parent=0 // pred_fallthru
    _
  // Predicated region
  $region6: #{_lambda_.11} parent=0 // pred_check
    _
  $region7: #{_lambda_.11} parent=0 // pred_check_branch
    %12 = sbr.rel (0) target = $region9
  $region8: #{_lambda_.11} parent=0 // pred_region
    _
  $region9: #{_lambda_.11} parent=0 // pred_fallthru
    _
  // Predicated region
  $region10: #{_lambda_.11} parent=0 // pred_check
    _
  $region11: #{_lambda_.11} parent=0 // pred_check_branch
    %14 = sbr.rel (0) target = $region13
  $region12: #{_lambda_.11} parent=0 // pred_region
    _
  $region13: #{_lambda_.11} parent=0 // pred_fallthru
    _
  // Predicated region
  $region14: #{_lambda_.11} parent=0 // pred_check
    _
  $region15: #{_lambda_.11} parent=0 // pred_check_branch
    %16 = sbr.rel (0) target = $region17
  $region16: #{_lambda_.11} parent=0 // pred_region
    _
  $region17: #{_lambda_.11} parent=0 // pred_fallthru
    _
  %v18 = vld [vmem:[%s0] sm:$0xf]
  %v19 = vld [vmem:[%s0 + $0x4] sm:$0xf]
  %v20 = vld [vmem:[%s0 + $0x8] sm:$0xf]
  %v21 = vld [vmem:[%s0 + $0xc] sm:$0xf]
  %v22 = vld [vmem:[%s0 + $0x10] sm:$0xf]
  %v23 = vld [vmem:[%s0 + $0x14] sm:$0xf]
  %v24 = vld [vmem:[%s0 + $0x18] sm:$0xf]
  %v25 = vld [vmem:[%s0 + $0x1c] sm:$0xf]
  %v26 = vld [vmem:[%s0 + $0x20] sm:$0xf]
  %v27 = vld [vmem:[%s0 + $0x24] sm:$0xf]
  %v28 = vld [vmem:[%s0 + $0x28] sm:$0xf]
  %v29 = vld [vmem:[%s0 + $0x2c] sm:$0xf]
  %v30 = vld [vmem:[%s0 + $0x30] sm:$0xf]
  %v31 = vld [vmem:[%s0 + $0x34] sm:$0xf]
  %v32 = vld [vmem:[%s0 + $0x38] sm:$0xf]
  %v33 = vld [vmem:[%s0 + $0x3c] sm:$0xf]
  %v34 = vld [vmem:[%s0 + $0x40] sm:$0xf]
  %v35 = vld [vmem:[%s0 + $0x44] sm:$0xf]
  %v36 = vld [vmem:[%s0 + $0x48] sm:$0xf]
  %v37 = vld [vmem:[%s0 + $0x4c] sm:$0xf]
  %v38 = vld [vmem:[%s0 + $0x50] sm:$0xf]
  %v39 = vld [vmem:[%s0 + $0x54] sm:$0xf]
  %v40 = vld [vmem:[%s0 + $0x58] sm:$0xf]
  %v41 = vld [vmem:[%s0 + $0x5c] sm:$0xf]
  %v42 = vld [vmem:[%s0 + $0x60] sm:$0xf]
  %v43 = vld [vmem:[%s0 + $0x64] sm:$0xf]
  %v44 = vld [vmem:[%s0 + $0x68] sm:$0xf]
  %v45 = vld [vmem:[%s0 + $0x6c] sm:$0xf]
  %v46 = vld [vmem:[%s0 + $0x70] sm:$0xf]
  %v47 = vld [vmem:[%s0 + $0x74] sm:$0xf]
  %v48 = vld [vmem:[%s0 + $0x78] sm:$0xf]
  %v49 = vld [vmem:[%s0 + $0x7c] sm:$0xf]
  %v50 = vld [vmem:[%s0 + $0x80] sm:$0xf]
  %v51 = vld [vmem:[%s0 + $0x84] sm:$0xf]
  %v52 = vld [vmem:[%s0 + $0x88] sm:$0xf]
  %v53 = vld [vmem:[%s0 + $0x8c] sm:$0xf]
  %v54 = vld [vmem:[%s0 + $0x90] sm:$0xf]
  %v55 = vld [vmem:[%s0 + $0x94] sm:$0xf]
  %v56 = vld [vmem:[%s0 + $0x98] sm:$0xf]
  %v57 = vld [vmem:[%s0 + $0x9c] sm:$0xf]
  %v58 = vld [vmem:[%s0 + $0xa0] sm:$0xf]
  %v59 = vld [vmem:[%s0 + $0xa4] sm:$0xf]
  %v60 = vld [vmem:[%s0 + $0xa8] sm:$0xf]
  %v61 = vld [vmem:[%s0 + $0xac] sm:$0xf]
  %v62 = vld [vmem:[%s0 + $0xb0] sm:$0xf]
  %v63 = vld [vmem:[%s0 + $0xb4] sm:$0xf]
  %v64 = vld [vmem:[%s0 + $0xb8] sm:$0xf]
  %v65 = vld [vmem:[%s0 + $0xbc] sm:$0xf]
  %v66 = vld [vmem:[%s0 + $0xc0] sm:$0xf]
  %v67 = vld [vmem:[%s0 + $0xc4] sm:$0xf]
  %v68 = vld [vmem:[%s0 + $0xc8] sm:$0xf]
  %v69 = vld [vmem:[%s0 + $0xcc] sm:$0xf]
  %v70 = vld [vmem:[%s0 + $0xd0] sm:$0xf]
  %v71 = vld [vmem:[%s0 + $0xd4] sm:$0xf]
  %v72 = vld [vmem:[%s0 + $0xd8] sm:$0xf]
  %v73 = vld [vmem:[%s0 + $0xdc] sm:$0xf]
  %v74 = vld [vmem:[%s0 + $0xe0] sm:$0xf]
  %v75 = vld [vmem:[%s0 + $0xe4] sm:$0xf]
  %v76 = vld [vmem:[%s0 + $0xe8] sm:$0xf]
  %v77 = vld [vmem:[%s0 + $0xec] sm:$0xf]
  %v78 = vld [vmem:[%s0 + $0xf0] sm:$0xf]
  %v79 = vld [vmem:[%s0 + $0xf4] sm:$0xf]
  %v80 = vld [vmem:[%s0 + $0xf8] sm:$0xf]
  %v81 = vld [vmem:[%s0 + $0xfc] sm:$0xf]
  %v82 = vld [vmem:[%s1] sm:$0xf]
  %v83 = vld [vmem:[%s2] sm:$0x1]
  %v85 = vlaneseq
  %v86 = vshrl.u32 %v85, 7
  %v87 = vsub.s32 0, %v86
  %v88 = vrot.slane %v83, %v87
  %v154 = vunpack.c.l.b16 %v18
  %v155 = vunpack.c.l.b16 %v19
  %v156 = vunpack.c.l.b16 %v20
  %v157 = vunpack.c.l.b16 %v21
  %v158 = vunpack.c.l.b16 %v22
  %v159 = vunpack.c.l.b16 %v23
  %v160 = vunpack.c.l.b16 %v24
  %v161 = vunpack.c.l.b16 %v25
  %v162 = vunpack.c.l.b16 %v26
  %v163 = vunpack.c.l.b16 %v27
  %v164 = vunpack.c.l.b16 %v28
  %v165 = vunpack.c.l.b16 %v29
  %v166 = vunpack.c.l.b16 %v30
  %v167 = vunpack.c.l.b16 %v31
  %v168 = vunpack.c.l.b16 %v32
  %v169 = vunpack.c.l.b16 %v33
  %v170 = vunpack.c.l.b16 %v34
  %v171 = vunpack.c.l.b16 %v35
  %v172 = vunpack.c.l.b16 %v36
  %v173 = vunpack.c.l.b16 %v37
  %v174 = vunpack.c.l.b16 %v38
  %v175 = vunpack.c.l.b16 %v39
  %v176 = vunpack.c.l.b16 %v40
  %v177 = vunpack.c.l.b16 %v41
  %v178 = vunpack.c.l.b16 %v42
  %v179 = vunpack.c.l.b16 %v43
  %v180 = vunpack.c.l.b16 %v44
  %v181 = vunpack.c.l.b16 %v45
  %v182 = vunpack.c.l.b16 %v46
  %v183 = vunpack.c.l.b16 %v47
  %v184 = vunpack.c.l.b16 %v48
  %v185 = vunpack.c.l.b16 %v49
  %v186 = vunpack.c.l.b16 %v50
  %v187 = vunpack.c.l.b16 %v51
  %v188 = vunpack.c.l.b16 %v52
  %v189 = vunpack.c.l.b16 %v53
  %v190 = vunpack.c.l.b16 %v54
  %v191 = vunpack.c.l.b16 %v55
  %v192 = vunpack.c.l.b16 %v56
  %v193 = vunpack.c.l.b16 %v57
  %v194 = vunpack.c.l.b16 %v58
  %v195 = vunpack.c.l.b16 %v59
  %v196 = vunpack.c.l.b16 %v60
  %v197 = vunpack.c.l.b16 %v61
  %v198 = vunpack.c.l.b16 %v62
  %v199 = vunpack.c.l.b16 %v63
  %v200 = vunpack.c.l.b16 %v64
  %v201 = vunpack.c.l.b16 %v65
  %v202 = vunpack.c.l.b16 %v66
  %v203 = vunpack.c.l.b16 %v67
  %v204 = vunpack.c.l.b16 %v68
  %v205 = vunpack.c.l.b16 %v69
  %v206 = vunpack.c.l.b16 %v70
  %v207 = vunpack.c.l.b16 %v71
  %v208 = vunpack.c.l.b16 %v72
  %v209 = vunpack.c.l.b16 %v73
  %v210 = vunpack.c.l.b16 %v74
  %v211 = vunpack.c.l.b16 %v75
  %v212 = vunpack.c.l.b16 %v76
  %v213 = vunpack.c.l.b16 %v77
  %v214 = vunpack.c.l.b16 %v78
  %v215 = vunpack.c.l.b16 %v79
  %v216 = vunpack.c.l.b16 %v80
  %v217 = vunpack.c.l.b16 %v81
  %v218 = vpack.c.b16 %v155, %v154
  %v219 = vpack.c.b16 %v157, %v156
  %v220 = vpack.c.b16 %v159, %v158
  %v221 = vpack.c.b16 %v161, %v160
  %v222 = vpack.c.b16 %v163, %v162
  %v223 = vpack.c.b16 %v165, %v164
  %v224 = vpack.c.b16 %v167, %v166
  %v225 = vpack.c.b16 %v169, %v168
  %v226 = vpack.c.b16 %v171, %v170
  %v227 = vpack.c.b16 %v173, %v172
  %v228 = vpack.c.b16 %v175, %v174
  %v229 = vpack.c.b16 %v177, %v176
  %v230 = vpack.c.b16 %v179, %v178
  %v231 = vpack.c.b16 %v181, %v180
  %v232 = vpack.c.b16 %v183, %v182
  %v233 = vpack.c.b16 %v185, %v184
  %v234 = vpack.c.b16 %v187, %v186
  %v235 = vpack.c.b16 %v189, %v188
  %v236 = vpack.c.b16 %v191, %v190
  %v237 = vpack.c.b16 %v193, %v192
  %v238 = vpack.c.b16 %v195, %v194
  %v239 = vpack.c.b16 %v197, %v196
  %v240 = vpack.c.b16 %v199, %v198
  %v241 = vpack.c.b16 %v201, %v200
  %v242 = vpack.c.b16 %v203, %v202
  %v243 = vpack.c.b16 %v205, %v204
  %v244 = vpack.c.b16 %v207, %v206
  %v245 = vpack.c.b16 %v209, %v208
  %v246 = vpack.c.b16 %v211, %v210
  %v247 = vpack.c.b16 %v213, %v212
  %v248 = vpack.c.b16 %v215, %v214
  %v249 = vpack.c.b16 %v217, %v216
  %vm250 = vcmask 64512
  %v252 = vsel %vm250, %v218, 0
  %v255 = vsel %vm250, %v219, 0
  %v258 = vsel %vm250, %v220, 0
  %v261 = vsel %vm250, %v221, 0
  %v264 = vsel %vm250, %v222, 0
  %v267 = vsel %vm250, %v223, 0
  %v270 = vsel %vm250, %v224, 0
  %v273 = vsel %vm250, %v225, 0
  %v276 = vsel %vm250, %v226, 0
  %v279 = vsel %vm250, %v227, 0
  %v282 = vsel %vm250, %v228, 0
  %v285 = vsel %vm250, %v229, 0
  %v288 = vsel %vm250, %v230, 0
  %v291 = vsel %vm250, %v231, 0
  %v294 = vsel %vm250, %v232, 0
  %v297 = vsel %vm250, %v233, 0
  %v300 = vsel %vm250, %v234, 0
  %v303 = vsel %vm250, %v235, 0
  %v306 = vsel %vm250, %v236, 0
  %v309 = vsel %vm250, %v237, 0
  %v312 = vsel %vm250, %v238, 0
  %v315 = vsel %vm250, %v239, 0
  %v318 = vsel %vm250, %v240, 0
  %v321 = vsel %vm250, %v241, 0
  %v324 = vsel %vm250, %v242, 0
  %v327 = vsel %vm250, %v243, 0
  %v330 = vsel %vm250, %v244, 0
  %v333 = vsel %vm250, %v245, 0
  %v336 = vsel %vm250, %v246, 0
  %v339 = vsel %vm250, %v247, 0
  %v342 = vsel %vm250, %v248, 0
  %v345 = vsel %vm250, %v249, 0
  %vm347 = vcmask 1043456
  %v349 = vsel %vm347, %v82, 0
  %351 = vmatprep.subr.bf16.mxu0 0
  %352 = vmatpush1.bf16.msra.mxu0 %v349
  %353 = vmatprep.subr.bf16.mxu0 0
  %354 = vmatpush1.bf16.msra.mxu0 0
  %355 = vmatprep.subr.bf16.mxu0 0
  %356 = vmatpush1.bf16.msra.mxu0 0
  %357 = vmatprep.subr.bf16.mxu0 0
  %358 = vmatpush1.bf16.msra.mxu0 0
  %359 = vmatprep.subr.bf16.mxu0 0
  %360 = vmatpush1.bf16.msra.mxu0 0
  %361 = vmatprep.subr.bf16.mxu0 0
  %362 = vmatpush1.bf16.msra.mxu0 0
  %363 = vmatprep.subr.bf16.mxu0 0
  %364 = vmatpush1.bf16.msra.mxu0 0
  %365 = vmatprep.subr.bf16.mxu0 0
  %366 = vmatpush1.bf16.msra.mxu0 0
  %367 = vmatprep.subr.bf16.mxu0 0
  %368 = vmatpush1.bf16.msra.mxu0 0
  %369 = vmatprep.subr.bf16.mxu0 0
  %370 = vmatpush1.bf16.msra.mxu0 0
  %371 = vmatprep.subr.bf16.mxu0 0
  %372 = vmatpush1.bf16.msra.mxu0 0
  %373 = vmatprep.subr.bf16.mxu0 0
  %374 = vmatpush1.bf16.msra.mxu0 0
  %375 = vmatprep.subr.bf16.mxu0 0
  %376 = vmatpush1.bf16.msra.mxu0 0
  %377 = vmatprep.subr.bf16.mxu0 0
  %378 = vmatpush1.bf16.msra.mxu0 0
  %379 = vmatprep.subr.bf16.mxu0 0
  %380 = vmatpush1.bf16.msra.mxu0 0
  %381 = vmatprep.subr.bf16.mxu0 0
  %382 = vmatpush1.bf16.msra.mxu0 0
  %383 = vmatprep.mubr.bf16.mxu0 0
  %384 = vmatmul.mubr.bf16.gmra.mrb[0].mxu0 %v252
  %v385 = vpop.f32.mrb[0].mxu0
  %v386 = vadd.f32 %v88, %v385
  %v387 = vpop.f32.mrb[0].mxu0
  %v388 = vpop.f32.mrb[0].mxu0
  %v389 = vadd.f32 %v88, %v388
  %v390 = vpop.f32.mrb[0].mxu0
  %391 = vmatprep.mubr.bf16.mxu0 0
  %392 = vmatmul.mubr.bf16.gmra.mrb[0].mxu0 %v255
  %v393 = vpop.f32.mrb[0].mxu0
  %v394 = vadd.f32 %v88, %v393
  %v395 = vpop.f32.mrb[0].mxu0
  %v396 = vpop.f32.mrb[0].mxu0
  %v397 = vadd.f32 %v88, %v396
  %v398 = vpop.f32.mrb[0].mxu0
  %399 = vmatprep.mubr.bf16.mxu0 0
  %400 = vmatmul.mubr.bf16.gmra.mrb[0].mxu0 %v258
  %v401 = vpop.f32.mrb[0].mxu0
  %v402 = vadd.f32 %v88, %v401
  %v403 = vpop.f32.mrb[0].mxu0
  %v404 = vpop.f32.mrb[0].mxu0
  %v405 = vadd.f32 %v88, %v404
  %v406 = vpop.f32.mrb[0].mxu0
  %407 = vmatprep.mubr.bf16.mxu0 0
  %408 = vmatmul.mubr.bf16.gmra.mrb[0].mxu0 %v261
  %v409 = vpop.f32.mrb[0].mxu0
  %v410 = vadd.f32 %v88, %v409
  %v411 = vpop.f32.mrb[0].mxu0
  %v412 = vpop.f32.mrb[0].mxu0
  %v413 = vadd.f32 %v88, %v412
  %v414 = vpop.f32.mrb[0].mxu0
  %415 = vmatprep.mubr.bf16.mxu0 0
  %416 = vmatmul.mubr.bf16.gmra.mrb[0].mxu0 %v264
  %v417 = vpop.f32.mrb[0].mxu0
  %v418 = vadd.f32 %v88, %v417
  %v419 = vpop.f32.mrb[0].mxu0
  %v420 = vpop.f32.mrb[0].mxu0
  %v421 = vadd.f32 %v88, %v420
  %v422 = vpop.f32.mrb[0].mxu0
  %423 = vmatprep.mubr.bf16.mxu0 0
  %424 = vmatmul.mubr.bf16.gmra.mrb[0].mxu0 %v267
  %v425 = vpop.f32.mrb[0].mxu0
  %v426 = vadd.f32 %v88, %v425
  %v427 = vpop.f32.mrb[0].mxu0
  %v428 = vpop.f32.mrb[0].mxu0
  %v429 = vadd.f32 %v88, %v428
  %v430 = vpop.f32.mrb[0].mxu0
  %431 = vmatprep.mubr.bf16.mxu0 0
  %432 = vmatmul.mubr.bf16.gmra.mrb[0].mxu0 %v270
  %v433 = vpop.f32.mrb[0].mxu0
  %v434 = vadd.f32 %v88, %v433
  %v435 = vpop.f32.mrb[0].mxu0
  %v436 = vpop.f32.mrb[0].mxu0
  %v437 = vadd.f32 %v88, %v436
  %v438 = vpop.f32.mrb[0].mxu0
  %439 = vmatprep.mubr.bf16.mxu0 0
  %440 = vmatmul.mubr.bf16.gmra.mrb[0].mxu0 %v273
  %v441 = vpop.f32.mrb[0].mxu0
  %v442 = vadd.f32 %v88, %v441
  %v443 = vpop.f32.mrb[0].mxu0
  %v444 = vpop.f32.mrb[0].mxu0
  %v445 = vadd.f32 %v88, %v444
  %v446 = vpop.f32.mrb[0].mxu0
  %447 = vmatprep.mubr.bf16.mxu0 0
  %448 = vmatmul.mubr.bf16.gmra.mrb[0].mxu0 %v276
  %v449 = vpop.f32.mrb[0].mxu0
  %v450 = vadd.f32 %v88, %v449
  %v451 = vpop.f32.mrb[0].mxu0
  %v452 = vpop.f32.mrb[0].mxu0
  %v453 = vadd.f32 %v88, %v452
  %v454 = vpop.f32.mrb[0].mxu0
  %455 = vmatprep.mubr.bf16.mxu0 0
  %456 = vmatmul.mubr.bf16.gmra.mrb[0].mxu0 %v279
  %v457 = vpop.f32.mrb[0].mxu0
  %v458 = vadd.f32 %v88, %v457
  %v459 = vpop.f32.mrb[0].mxu0
  %v460 = vpop.f32.mrb[0].mxu0
  %v461 = vadd.f32 %v88, %v460
  %v462 = vpop.f32.mrb[0].mxu0
  %463 = vmatprep.mubr.bf16.mxu0 0
  %464 = vmatmul.mubr.bf16.gmra.mrb[0].mxu0 %v282
  %v465 = vpop.f32.mrb[0].mxu0
  %v466 = vadd.f32 %v88, %v465
  %v467 = vpop.f32.mrb[0].mxu0
  %v468 = vpop.f32.mrb[0].mxu0
  %v469 = vadd.f32 %v88, %v468
  %v470 = vpop.f32.mrb[0].mxu0
  %471 = vmatprep.mubr.bf16.mxu0 0
  %472 = vmatmul.mubr.bf16.gmra.mrb[0].mxu0 %v285
  %v473 = vpop.f32.mrb[0].mxu0
  %v474 = vadd.f32 %v88, %v473
  %v475 = vpop.f32.mrb[0].mxu0
  %v476 = vpop.f32.mrb[0].mxu0
  %v477 = vadd.f32 %v88, %v476
  %v478 = vpop.f32.mrb[0].mxu0
  %479 = vmatprep.mubr.bf16.mxu0 0
  %480 = vmatmul.mubr.bf16.gmra.mrb[0].mxu0 %v288
  %v481 = vpop.f32.mrb[0].mxu0
  %v482 = vadd.f32 %v88, %v481
  %v483 = vpop.f32.mrb[0].mxu0
  %v484 = vpop.f32.mrb[0].mxu0
  %v485 = vadd.f32 %v88, %v484
  %v486 = vpop.f32.mrb[0].mxu0
  %487 = vmatprep.mubr.bf16.mxu0 0
  %488 = vmatmul.mubr.bf16.gmra.mrb[0].mxu0 %v291
  %v489 = vpop.f32.mrb[0].mxu0
  %v490 = vadd.f32 %v88, %v489
  %v491 = vpop.f32.mrb[0].mxu0
  %v492 = vpop.f32.mrb[0].mxu0
  %v493 = vadd.f32 %v88, %v492
  %v494 = vpop.f32.mrb[0].mxu0
  %495 = vmatprep.mubr.bf16.mxu0 0
  %496 = vmatmul.mubr.bf16.gmra.mrb[0].mxu0 %v294
  %v497 = vpop.f32.mrb[0].mxu0
  %v498 = vadd.f32 %v88, %v497
  %v499 = vpop.f32.mrb[0].mxu0
  %v500 = vpop.f32.mrb[0].mxu0
  %v501 = vadd.f32 %v88, %v500
  %v502 = vpop.f32.mrb[0].mxu0
  %503 = vmatprep.mubr.bf16.mxu0 0
  %504 = vmatmul.mubr.bf16.gmra.mrb[0].mxu0 %v297
  %v505 = vpop.f32.mrb[0].mxu0
  %v506 = vadd.f32 %v88, %v505
  %v507 = vpop.f32.mrb[0].mxu0
  %v508 = vpop.f32.mrb[0].mxu0
  %v509 = vadd.f32 %v88, %v508
  %v510 = vpop.f32.mrb[0].mxu0
  %511 = vmatprep.mubr.bf16.mxu0 0
  %512 = vmatmul.mubr.bf16.gmra.mrb[0].mxu0 %v300
  %v513 = vpop.f32.mrb[0].mxu0
  %v514 = vadd.f32 %v88, %v513
  %v515 = vpop.f32.mrb[0].mxu0
  %v516 = vpop.f32.mrb[0].mxu0
  %v517 = vadd.f32 %v88, %v516
  %v518 = vpop.f32.mrb[0].mxu0
  %519 = vmatprep.mubr.bf16.mxu0 0
  %520 = vmatmul.mubr.bf16.gmra.mrb[0].mxu0 %v303
  %v521 = vpop.f32.mrb[0].mxu0
  %v522 = vadd.f32 %v88, %v521
  %v523 = vpop.f32.mrb[0].mxu0
  %v524 = vpop.f32.mrb[0].mxu0
  %v525 = vadd.f32 %v88, %v524
  %v526 = vpop.f32.mrb[0].mxu0
  %527 = vmatprep.mubr.bf16.mxu0 0
  %528 = vmatmul.mubr.bf16.gmra.mrb[0].mxu0 %v306
  %v529 = vpop.f32.mrb[0].mxu0
  %v530 = vadd.f32 %v88, %v529
  %v531 = vpop.f32.mrb[0].mxu0
  %v532 = vpop.f32.mrb[0].mxu0
  %v533 = vadd.f32 %v88, %v532
  %v534 = vpop.f32.mrb[0].mxu0
  %535 = vmatprep.mubr.bf16.mxu0 0
  %536 = vmatmul.mubr.bf16.gmra.mrb[0].mxu0 %v309
  %v537 = vpop.f32.mrb[0].mxu0
  %v538 = vadd.f32 %v88, %v537
  %v539 = vpop.f32.mrb[0].mxu0
  %v540 = vpop.f32.mrb[0].mxu0
  %v541 = vadd.f32 %v88, %v540
  %v542 = vpop.f32.mrb[0].mxu0
  %543 = vmatprep.mubr.bf16.mxu0 0
  %544 = vmatmul.mubr.bf16.gmra.mrb[0].mxu0 %v312
  %v545 = vpop.f32.mrb[0].mxu0
  %v546 = vadd.f32 %v88, %v545
  %v547 = vpop.f32.mrb[0].mxu0
  %v548 = vpop.f32.mrb[0].mxu0
  %v549 = vadd.f32 %v88, %v548
  %v550 = vpop.f32.mrb[0].mxu0
  %551 = vmatprep.mubr.bf16.mxu0 0
  %552 = vmatmul.mubr.bf16.gmra.mrb[0].mxu0 %v315
  %v553 = vpop.f32.mrb[0].mxu0
  %v554 = vadd.f32 %v88, %v553
  %v555 = vpop.f32.mrb[0].mxu0
  %v556 = vpop.f32.mrb[0].mxu0
  %v557 = vadd.f32 %v88, %v556
  %v558 = vpop.f32.mrb[0].mxu0
  %559 = vmatprep.mubr.bf16.mxu0 0
  %560 = vmatmul.mubr.bf16.gmra.mrb[0].mxu0 %v318
  %v561 = vpop.f32.mrb[0].mxu0
  %v562 = vadd.f32 %v88, %v561
  %v563 = vpop.f32.mrb[0].mxu0
  %v564 = vpop.f32.mrb[0].mxu0
  %v565 = vadd.f32 %v88, %v564
  %v566 = vpop.f32.mrb[0].mxu0
  %567 = vmatprep.mubr.bf16.mxu0 0
  %568 = vmatmul.mubr.bf16.gmra.mrb[0].mxu0 %v321
  %v569 = vpop.f32.mrb[0].mxu0
  %v570 = vadd.f32 %v88, %v569
  %v571 = vpop.f32.mrb[0].mxu0
  %v572 = vpop.f32.mrb[0].mxu0
  %v573 = vadd.f32 %v88, %v572
  %v574 = vpop.f32.mrb[0].mxu0
  %575 = vmatprep.mubr.bf16.mxu0 0
  %576 = vmatmul.mubr.bf16.gmra.mrb[0].mxu0 %v324
  %v577 = vpop.f32.mrb[0].mxu0
  %v578 = vadd.f32 %v88, %v577
  %v579 = vpop.f32.mrb[0].mxu0
  %v580 = vpop.f32.mrb[0].mxu0
  %v581 = vadd.f32 %v88, %v580
  %v582 = vpop.f32.mrb[0].mxu0
  %583 = vmatprep.mubr.bf16.mxu0 0
  %584 = vmatmul.mubr.bf16.gmra.mrb[0].mxu0 %v327
  %v585 = vpop.f32.mrb[0].mxu0
  %v586 = vadd.f32 %v88, %v585
  %v587 = vpop.f32.mrb[0].mxu0
  %v588 = vpop.f32.mrb[0].mxu0
  %v589 = vadd.f32 %v88, %v588
  %v590 = vpop.f32.mrb[0].mxu0
  %591 = vmatprep.mubr.bf16.mxu0 0
  %592 = vmatmul.mubr.bf16.gmra.mrb[0].mxu0 %v330
  %v593 = vpop.f32.mrb[0].mxu0
  %v594 = vadd.f32 %v88, %v593
  %v595 = vpop.f32.mrb[0].mxu0
  %v596 = vpop.f32.mrb[0].mxu0
  %v597 = vadd.f32 %v88, %v596
  %v598 = vpop.f32.mrb[0].mxu0
  %599 = vmatprep.mubr.bf16.mxu0 0
  %600 = vmatmul.mubr.bf16.gmra.mrb[0].mxu0 %v333
  %v601 = vpop.f32.mrb[0].mxu0
  %v602 = vadd.f32 %v88, %v601
  %v603 = vpop.f32.mrb[0].mxu0
  %v604 = vpop.f32.mrb[0].mxu0
  %v605 = vadd.f32 %v88, %v604
  %v606 = vpop.f32.mrb[0].mxu0
  %607 = vmatprep.mubr.bf16.mxu0 0
  %608 = vmatmul.mubr.bf16.gmra.mrb[0].mxu0 %v336
  %v609 = vpop.f32.mrb[0].mxu0
  %v610 = vadd.f32 %v88, %v609
  %v611 = vpop.f32.mrb[0].mxu0
  %v612 = vpop.f32.mrb[0].mxu0
  %v613 = vadd.f32 %v88, %v612
  %v614 = vpop.f32.mrb[0].mxu0
  %615 = vmatprep.mubr.bf16.mxu0 0
  %616 = vmatmul.mubr.bf16.gmra.mrb[0].mxu0 %v339
  %v617 = vpop.f32.mrb[0].mxu0
  %v618 = vadd.f32 %v88, %v617
  %v619 = vpop.f32.mrb[0].mxu0
  %v620 = vpop.f32.mrb[0].mxu0
  %v621 = vadd.f32 %v88, %v620
  %v622 = vpop.f32.mrb[0].mxu0
  %623 = vmatprep.mubr.bf16.mxu0 0
  %624 = vmatmul.mubr.bf16.gmra.mrb[0].mxu0 %v342
  %v625 = vpop.f32.mrb[0].mxu0
  %v626 = vadd.f32 %v88, %v625
  %v627 = vpop.f32.mrb[0].mxu0
  %v628 = vpop.f32.mrb[0].mxu0
  %v629 = vadd.f32 %v88, %v628
  %v630 = vpop.f32.mrb[0].mxu0
  %631 = vmatprep.mubr.bf16.mxu0 0
  %632 = vmatmul.mubr.bf16.gmra.mrb[0].mxu0 %v345
  %v633 = vpop.f32.mrb[0].mxu0
  %v634 = vadd.f32 %v88, %v633
  %v635 = vpop.f32.mrb[0].mxu0
  %v636 = vpop.f32.mrb[0].mxu0
  %v637 = vadd.f32 %v88, %v636
  %v638 = vpop.f32.mrb[0].mxu0
  %639 = vdwg.mxu0
  %v640 = vld [vmem:[%s3] sm:$0xf]
  %v641 = vld [vmem:[%s3 + $0x4] sm:$0xf]
  %v642 = vld [vmem:[%s3 + $0x8] sm:$0xf]
  %v643 = vld [vmem:[%s3 + $0xc] sm:$0xf]
  %v644 = vld [vmem:[%s3 + $0x10] sm:$0xf]
  %v645 = vld [vmem:[%s3 + $0x14] sm:$0xf]
  %v646 = vld [vmem:[%s3 + $0x18] sm:$0xf]
  %v647 = vld [vmem:[%s3 + $0x1c] sm:$0xf]
  %v648 = vld [vmem:[%s3 + $0x20] sm:$0xf]
  %v649 = vld [vmem:[%s3 + $0x24] sm:$0xf]
  %v650 = vld [vmem:[%s3 + $0x28] sm:$0xf]
  %v651 = vld [vmem:[%s3 + $0x2c] sm:$0xf]
  %v652 = vld [vmem:[%s3 + $0x30] sm:$0xf]
  %v653 = vld [vmem:[%s3 + $0x34] sm:$0xf]
  %v654 = vld [vmem:[%s3 + $0x38] sm:$0xf]
  %v655 = vld [vmem:[%s3 + $0x3c] sm:$0xf]
  %v656 = vld [vmem:[%s3 + $0x40] sm:$0xf]
  %v657 = vld [vmem:[%s3 + $0x44] sm:$0xf]
  %v658 = vld [vmem:[%s3 + $0x48] sm:$0xf]
  %v659 = vld [vmem:[%s3 + $0x4c] sm:$0xf]
  %v660 = vld [vmem:[%s3 + $0x50] sm:$0xf]
  %v661 = vld [vmem:[%s3 + $0x54] sm:$0xf]
  %v662 = vld [vmem:[%s3 + $0x58] sm:$0xf]
  %v663 = vld [vmem:[%s3 + $0x5c] sm:$0xf]
  %v664 = vld [vmem:[%s3 + $0x60] sm:$0xf]
  %v665 = vld [vmem:[%s3 + $0x64] sm:$0xf]
  %v666 = vld [vmem:[%s3 + $0x68] sm:$0xf]
  %v667 = vld [vmem:[%s3 + $0x6c] sm:$0xf]
  %v668 = vld [vmem:[%s3 + $0x70] sm:$0xf]
  %v669 = vld [vmem:[%s3 + $0x74] sm:$0xf]
  %v670 = vld [vmem:[%s3 + $0x78] sm:$0xf]
  %v671 = vld [vmem:[%s3 + $0x7c] sm:$0xf]
  %v672 = vld [vmem:[%s3 + $0x80] sm:$0xf]
  %v673 = vld [vmem:[%s3 + $0x84] sm:$0xf]
  %v674 = vld [vmem:[%s3 + $0x88] sm:$0xf]
  %v675 = vld [vmem:[%s3 + $0x8c] sm:$0xf]
  %v676 = vld [vmem:[%s3 + $0x90] sm:$0xf]
  %v677 = vld [vmem:[%s3 + $0x94] sm:$0xf]
  %v678 = vld [vmem:[%s3 + $0x98] sm:$0xf]
  %v679 = vld [vmem:[%s3 + $0x9c] sm:$0xf]
  %v680 = vld [vmem:[%s3 + $0xa0] sm:$0xf]
  %v681 = vld [vmem:[%s3 + $0xa4] sm:$0xf]
  %v682 = vld [vmem:[%s3 + $0xa8] sm:$0xf]
  %v683 = vld [vmem:[%s3 + $0xac] sm:$0xf]
  %v684 = vld [vmem:[%s3 + $0xb0] sm:$0xf]
  %v685 = vld [vmem:[%s3 + $0xb4] sm:$0xf]
  %v686 = vld [vmem:[%s3 + $0xb8] sm:$0xf]
  %v687 = vld [vmem:[%s3 + $0xbc] sm:$0xf]
  %v688 = vld [vmem:[%s3 + $0xc0] sm:$0xf]
  %v689 = vld [vmem:[%s3 + $0xc4] sm:$0xf]
  %v690 = vld [vmem:[%s3 + $0xc8] sm:$0xf]
  %v691 = vld [vmem:[%s3 + $0xcc] sm:$0xf]
  %v692 = vld [vmem:[%s3 + $0xd0] sm:$0xf]
  %v693 = vld [vmem:[%s3 + $0xd4] sm:$0xf]
  %v694 = vld [vmem:[%s3 + $0xd8] sm:$0xf]
  %v695 = vld [vmem:[%s3 + $0xdc] sm:$0xf]
  %v696 = vld [vmem:[%s3 + $0xe0] sm:$0xf]
  %v697 = vld [vmem:[%s3 + $0xe4] sm:$0xf]
  %v698 = vld [vmem:[%s3 + $0xe8] sm:$0xf]
  %v699 = vld [vmem:[%s3 + $0xec] sm:$0xf]
  %v700 = vld [vmem:[%s3 + $0xf0] sm:$0xf]
  %v701 = vld [vmem:[%s3 + $0xf4] sm:$0xf]
  %v702 = vld [vmem:[%s3 + $0xf8] sm:$0xf]
  %v703 = vld [vmem:[%s3 + $0xfc] sm:$0xf]
  %v704 = vunpack.c.l.bf16 %v640
  %v705 = vunpack.c.l.bf16 %v641
  %v706 = vunpack.c.l.bf16 %v642
  %v707 = vunpack.c.l.bf16 %v643
  %v708 = vunpack.c.l.bf16 %v644
  %v709 = vunpack.c.l.bf16 %v645
  %v710 = vunpack.c.l.bf16 %v646
  %v711 = vunpack.c.l.bf16 %v647
  %v712 = vunpack.c.l.bf16 %v648
  %v713 = vunpack.c.l.bf16 %v649
  %v714 = vunpack.c.l.bf16 %v650
  %v715 = vunpack.c.l.bf16 %v651
  %v716 = vunpack.c.l.bf16 %v652
  %v717 = vunpack.c.l.bf16 %v653
  %v718 = vunpack.c.l.bf16 %v654
  %v719 = vunpack.c.l.bf16 %v655
  %v720 = vunpack.c.l.bf16 %v656
  %v721 = vunpack.c.l.bf16 %v657
  %v722 = vunpack.c.l.bf16 %v658
  %v723 = vunpack.c.l.bf16 %v659
  %v724 = vunpack.c.l.bf16 %v660
  %v725 = vunpack.c.l.bf16 %v661
  %v726 = vunpack.c.l.bf16 %v662
  %v727 = vunpack.c.l.bf16 %v663
  %v728 = vunpack.c.l.bf16 %v664
  %v729 = vunpack.c.l.bf16 %v665
  %v730 = vunpack.c.l.bf16 %v666
  %v731 = vunpack.c.l.bf16 %v667
  %v732 = vunpack.c.l.bf16 %v668
  %v733 = vunpack.c.l.bf16 %v669
  %v734 = vunpack.c.l.bf16 %v670
  %v735 = vunpack.c.l.bf16 %v671
  %v736 = vunpack.c.l.bf16 %v672
  %v737 = vunpack.c.l.bf16 %v673
  %v738 = vunpack.c.l.bf16 %v674
  %v739 = vunpack.c.l.bf16 %v675
  %v740 = vunpack.c.l.bf16 %v676
  %v741 = vunpack.c.l.bf16 %v677
  %v742 = vunpack.c.l.bf16 %v678
  %v743 = vunpack.c.l.bf16 %v679
  %v744 = vunpack.c.l.bf16 %v680
  %v745 = vunpack.c.l.bf16 %v681
  %v746 = vunpack.c.l.bf16 %v682
  %v747 = vunpack.c.l.bf16 %v683
  %v748 = vunpack.c.l.bf16 %v684
  %v749 = vunpack.c.l.bf16 %v685
  %v750 = vunpack.c.l.bf16 %v686
  %v751 = vunpack.c.l.bf16 %v687
  %v752 = vunpack.c.l.bf16 %v688
  %v753 = vunpack.c.l.bf16 %v689
  %v754 = vunpack.c.l.bf16 %v690
  %v755 = vunpack.c.l.bf16 %v691
  %v756 = vunpack.c.l.bf16 %v692
  %v757 = vunpack.c.l.bf16 %v693
  %v758 = vunpack.c.l.bf16 %v694
  %v759 = vunpack.c.l.bf16 %v695
  %v760 = vunpack.c.l.bf16 %v696
  %v761 = vunpack.c.l.bf16 %v697
  %v762 = vunpack.c.l.bf16 %v698
  %v763 = vunpack.c.l.bf16 %v699
  %v764 = vunpack.c.l.bf16 %v700
  %v765 = vunpack.c.l.bf16 %v701
  %v766 = vunpack.c.l.bf16 %v702
  %v767 = vunpack.c.l.bf16 %v703
  %v768 = vadd.f32 %v386, %v704
  %v769 = vadd.f32 %v389, %v705
  %v770 = vadd.f32 %v394, %v706
  %v771 = vadd.f32 %v397, %v707
  %v772 = vadd.f32 %v402, %v708
  %v773 = vadd.f32 %v405, %v709
  %v774 = vadd.f32 %v410, %v710
  %v775 = vadd.f32 %v413, %v711
  %v776 = vadd.f32 %v418, %v712
  %v777 = vadd.f32 %v421, %v713
  %v778 = vadd.f32 %v426, %v714
  %v779 = vadd.f32 %v429, %v715
  %v780 = vadd.f32 %v434, %v716
  %v781 = vadd.f32 %v437, %v717
  %v782 = vadd.f32 %v442, %v718
  %v783 = vadd.f32 %v445, %v719
  %v784 = vadd.f32 %v450, %v720
  %v785 = vadd.f32 %v453, %v721
  %v786 = vadd.f32 %v458, %v722
  %v787 = vadd.f32 %v461, %v723
  %v788 = vadd.f32 %v466, %v724
  %v789 = vadd.f32 %v469, %v725
  %v790 = vadd.f32 %v474, %v726
  %v791 = vadd.f32 %v477, %v727
  %v792 = vadd.f32 %v482, %v728
  %v793 = vadd.f32 %v485, %v729
  %v794 = vadd.f32 %v490, %v730
  %v795 = vadd.f32 %v493, %v731
  %v796 = vadd.f32 %v498, %v732
  %v797 = vadd.f32 %v501, %v733
  %v798 = vadd.f32 %v506, %v734
  %v799 = vadd.f32 %v509, %v735
  %v800 = vadd.f32 %v514, %v736
  %v801 = vadd.f32 %v517, %v737
  %v802 = vadd.f32 %v522, %v738
  %v803 = vadd.f32 %v525, %v739
  %v804 = vadd.f32 %v530, %v740
  %v805 = vadd.f32 %v533, %v741
  %v806 = vadd.f32 %v538, %v742
  %v807 = vadd.f32 %v541, %v743
  %v808 = vadd.f32 %v546, %v744
  %v809 = vadd.f32 %v549, %v745
  %v810 = vadd.f32 %v554, %v746
  %v811 = vadd.f32 %v557, %v747
  %v812 = vadd.f32 %v562, %v748
  %v813 = vadd.f32 %v565, %v749
  %v814 = vadd.f32 %v570, %v750
  %v815 = vadd.f32 %v573, %v751
  %v816 = vadd.f32 %v578, %v752
  %v817 = vadd.f32 %v581, %v753
  %v818 = vadd.f32 %v586, %v754
  %v819 = vadd.f32 %v589, %v755
  %v820 = vadd.f32 %v594, %v756
  %v821 = vadd.f32 %v597, %v757
  %v822 = vadd.f32 %v602, %v758
  %v823 = vadd.f32 %v605, %v759
  %v824 = vadd.f32 %v610, %v760
  %v825 = vadd.f32 %v613, %v761
  %v826 = vadd.f32 %v618, %v762
  %v827 = vadd.f32 %v621, %v763
  %v828 = vadd.f32 %v626, %v764
  %v829 = vadd.f32 %v629, %v765
  %v830 = vadd.f32 %v634, %v766
  %v831 = vadd.f32 %v637, %v767
  %v832 = vmul.f32 %v768, %v768
  %v833 = vmul.f32 %v769, %v769
  %v834 = vmul.f32 %v770, %v770
  %v835 = vmul.f32 %v771, %v771
  %v836 = vmul.f32 %v772, %v772
  %v837 = vmul.f32 %v773, %v773
  %v838 = vmul.f32 %v774, %v774
  %v839 = vmul.f32 %v775, %v775
  %v840 = vmul.f32 %v776, %v776
  %v841 = vmul.f32 %v777, %v777
  %v842 = vmul.f32 %v778, %v778
  %v843 = vmul.f32 %v779, %v779
  %v844 = vmul.f32 %v780, %v780
  %v845 = vmul.f32 %v781, %v781
  %v846 = vmul.f32 %v782, %v782
  %v847 = vmul.f32 %v783, %v783
  %v848 = vmul.f32 %v784, %v784
  %v849 = vmul.f32 %v785, %v785
  %v850 = vmul.f32 %v786, %v786
  %v851 = vmul.f32 %v787, %v787
  %v852 = vmul.f32 %v788, %v788
  %v853 = vmul.f32 %v789, %v789
  %v854 = vmul.f32 %v790, %v790
  %v855 = vmul.f32 %v791, %v791
  %v856 = vmul.f32 %v792, %v792
  %v857 = vmul.f32 %v793, %v793
  %v858 = vmul.f32 %v794, %v794
  %v859 = vmul.f32 %v795, %v795
  %v860 = vmul.f32 %v796, %v796
  %v861 = vmul.f32 %v797, %v797
  %v862 = vmul.f32 %v798, %v798
  %v863 = vmul.f32 %v799, %v799
  %v864 = vmul.f32 %v800, %v800
  %v865 = vmul.f32 %v801, %v801
  %v866 = vmul.f32 %v802, %v802
  %v867 = vmul.f32 %v803, %v803
  %v868 = vmul.f32 %v804, %v804
  %v869 = vmul.f32 %v805, %v805
  %v870 = vmul.f32 %v806, %v806
  %v871 = vmul.f32 %v807, %v807
  %v872 = vmul.f32 %v808, %v808
  %v873 = vmul.f32 %v809, %v809
  %v874 = vmul.f32 %v810, %v810
  %v875 = vmul.f32 %v811, %v811
  %v876 = vmul.f32 %v812, %v812
  %v877 = vmul.f32 %v813, %v813
  %v878 = vmul.f32 %v814, %v814
  %v879 = vmul.f32 %v815, %v815
  %v880 = vmul.f32 %v816, %v816
  %v881 = vmul.f32 %v817, %v817
  %v882 = vmul.f32 %v818, %v818
  %v883 = vmul.f32 %v819, %v819
  %v884 = vmul.f32 %v820, %v820
  %v885 = vmul.f32 %v821, %v821
  %v886 = vmul.f32 %v822, %v822
  %v887 = vmul.f32 %v823, %v823
  %v888 = vmul.f32 %v824, %v824
  %v889 = vmul.f32 %v825, %v825
  %v890 = vmul.f32 %v826, %v826
  %v891 = vmul.f32 %v827, %v827
  %v892 = vmul.f32 %v828, %v828
  %v893 = vmul.f32 %v829, %v829
  %v894 = vmul.f32 %v830, %v830
  %v895 = vmul.f32 %v831, %v831
  %v896 = vmul.f32 %v768, %v832
  %v897 = vmul.f32 %v769, %v833
  %v898 = vmul.f32 %v770, %v834
  %v899 = vmul.f32 %v771, %v835
  %v900 = vmul.f32 %v772, %v836
  %v901 = vmul.f32 %v773, %v837
  %v902 = vmul.f32 %v774, %v838
  %v903 = vmul.f32 %v775, %v839
  %v904 = vmul.f32 %v776, %v840
  %v905 = vmul.f32 %v777, %v841
  %v906 = vmul.f32 %v778, %v842
  %v907 = vmul.f32 %v779, %v843
  %v908 = vmul.f32 %v780, %v844
  %v909 = vmul.f32 %v781, %v845
  %v910 = vmul.f32 %v782, %v846
  %v911 = vmul.f32 %v783, %v847
  %v912 = vmul.f32 %v784, %v848
  %v913 = vmul.f32 %v785, %v849
  %v914 = vmul.f32 %v786, %v850
  %v915 = vmul.f32 %v787, %v851
  %v916 = vmul.f32 %v788, %v852
  %v917 = vmul.f32 %v789, %v853
  %v918 = vmul.f32 %v790, %v854
  %v919 = vmul.f32 %v791, %v855
  %v920 = vmul.f32 %v792, %v856
  %v921 = vmul.f32 %v793, %v857
  %v922 = vmul.f32 %v794, %v858
  %v923 = vmul.f32 %v795, %v859
  %v924 = vmul.f32 %v796, %v860
  %v925 = vmul.f32 %v797, %v861
  %v926 = vmul.f32 %v798, %v862
  %v927 = vmul.f32 %v799, %v863
  %v928 = vmul.f32 %v800, %v864
  %v929 = vmul.f32 %v801, %v865
  %v930 = vmul.f32 %v802, %v866
  %v931 = vmul.f32 %v803, %v867
  %v932 = vmul.f32 %v804, %v868
  %v933 = vmul.f32 %v805, %v869
  %v934 = vmul.f32 %v806, %v870
  %v935 = vmul.f32 %v807, %v871
  %v936 = vmul.f32 %v808, %v872
  %v937 = vmul.f32 %v809, %v873
  %v938 = vmul.f32 %v810, %v874
  %v939 = vmul.f32 %v811, %v875
  %v940 = vmul.f32 %v812, %v876
  %v941 = vmul.f32 %v813, %v877
  %v942 = vmul.f32 %v814, %v878
  %v943 = vmul.f32 %v815, %v879
  %v944 = vmul.f32 %v816, %v880
  %v945 = vmul.f32 %v817, %v881
  %v946 = vmul.f32 %v818, %v882
  %v947 = vmul.f32 %v819, %v883
  %v948 = vmul.f32 %v820, %v884
  %v949 = vmul.f32 %v821, %v885
  %v950 = vmul.f32 %v822, %v886
  %v951 = vmul.f32 %v823, %v887
  %v952 = vmul.f32 %v824, %v888
  %v953 = vmul.f32 %v825, %v889
  %v954 = vmul.f32 %v826, %v890
  %v955 = vmul.f32 %v827, %v891
  %v956 = vmul.f32 %v828, %v892
  %v957 = vmul.f32 %v829, %v893
  %v958 = vmul.f32 %v830, %v894
  %v959 = vmul.f32 %v831, %v895
  %v960 = vmul.f32 %v896, 0.044715
  %v961 = vmul.f32 %v897, 0.044715
  %v962 = vmul.f32 %v898, 0.044715
  %v963 = vmul.f32 %v899, 0.044715
  %v964 = vmul.f32 %v900, 0.044715
  %v965 = vmul.f32 %v901, 0.044715
  %v966 = vmul.f32 %v902, 0.044715
  %v967 = vmul.f32 %v903, 0.044715
  %v968 = vmul.f32 %v904, 0.044715
  %v969 = vmul.f32 %v905, 0.044715
  %v970 = vmul.f32 %v906, 0.044715
  %v971 = vmul.f32 %v907, 0.044715
  %v972 = vmul.f32 %v908, 0.044715
  %v973 = vmul.f32 %v909, 0.044715
  %v974 = vmul.f32 %v910, 0.044715
  %v975 = vmul.f32 %v911, 0.044715
  %v976 = vmul.f32 %v912, 0.044715
  %v977 = vmul.f32 %v913, 0.044715
  %v978 = vmul.f32 %v914, 0.044715
  %v979 = vmul.f32 %v915, 0.044715
  %v980 = vmul.f32 %v916, 0.044715
  %v981 = vmul.f32 %v917, 0.044715
  %v982 = vmul.f32 %v918, 0.044715
  %v983 = vmul.f32 %v919, 0.044715
  %v984 = vmul.f32 %v920, 0.044715
  %v985 = vmul.f32 %v921, 0.044715
  %v986 = vmul.f32 %v922, 0.044715
  %v987 = vmul.f32 %v923, 0.044715
  %v988 = vmul.f32 %v924, 0.044715
  %v989 = vmul.f32 %v925, 0.044715
  %v990 = vmul.f32 %v926, 0.044715
  %v991 = vmul.f32 %v927, 0.044715
  %v992 = vmul.f32 %v928, 0.044715
  %v993 = vmul.f32 %v929, 0.044715
  %v994 = vmul.f32 %v930, 0.044715
  %v995 = vmul.f32 %v931, 0.044715
  %v996 = vmul.f32 %v932, 0.044715
  %v997 = vmul.f32 %v933, 0.044715
  %v998 = vmul.f32 %v934, 0.044715
  %v999 = vmul.f32 %v935, 0.044715
  %v1000 = vmul.f32 %v936, 0.044715
  %v1001 = vmul.f32 %v937, 0.044715
  %v1002 = vmul.f32 %v938, 0.044715
  %v1003 = vmul.f32 %v939, 0.044715
  %v1004 = vmul.f32 %v940, 0.044715
  %v1005 = vmul.f32 %v941, 0.044715
  %v1006 = vmul.f32 %v942, 0.044715
  %v1007 = vmul.f32 %v943, 0.044715
  %v1008 = vmul.f32 %v944, 0.044715
  %v1009 = vmul.f32 %v945, 0.044715
  %v1010 = vmul.f32 %v946, 0.044715
  %v1011 = vmul.f32 %v947, 0.044715
  %v1012 = vmul.f32 %v948, 0.044715
  %v1013 = vmul.f32 %v949, 0.044715
  %v1014 = vmul.f32 %v950, 0.044715
  %v1015 = vmul.f32 %v951, 0.044715
  %v1016 = vmul.f32 %v952, 0.044715
  %v1017 = vmul.f32 %v953, 0.044715
  %v1018 = vmul.f32 %v954, 0.044715
  %v1019 = vmul.f32 %v955, 0.044715
  %v1020 = vmul.f32 %v956, 0.044715
  %v1021 = vmul.f32 %v957, 0.044715
  %v1022 = vmul.f32 %v958, 0.044715
  %v1023 = vmul.f32 %v959, 0.044715
  %v1024 = vadd.f32 %v768, %v960
  %v1025 = vadd.f32 %v769, %v961
  %v1026 = vadd.f32 %v770, %v962
  %v1027 = vadd.f32 %v771, %v963
  %v1028 = vadd.f32 %v772, %v964
  %v1029 = vadd.f32 %v773, %v965
  %v1030 = vadd.f32 %v774, %v966
  %v1031 = vadd.f32 %v775, %v967
  %v1032 = vadd.f32 %v776, %v968
  %v1033 = vadd.f32 %v777, %v969
  %v1034 = vadd.f32 %v778, %v970
  %v1035 = vadd.f32 %v779, %v971
  %v1036 = vadd.f32 %v780, %v972
  %v1037 = vadd.f32 %v781, %v973
  %v1038 = vadd.f32 %v782, %v974
  %v1039 = vadd.f32 %v783, %v975
  %v1040 = vadd.f32 %v784, %v976
  %v1041 = vadd.f32 %v785, %v977
  %v1042 = vadd.f32 %v786, %v978
  %v1043 = vadd.f32 %v787, %v979
  %v1044 = vadd.f32 %v788, %v980
  %v1045 = vadd.f32 %v789, %v981
  %v1046 = vadd.f32 %v790, %v982
  %v1047 = vadd.f32 %v791, %v983
  %v1048 = vadd.f32 %v792, %v984
  %v1049 = vadd.f32 %v793, %v985
  %v1050 = vadd.f32 %v794, %v986
  %v1051 = vadd.f32 %v795, %v987
  %v1052 = vadd.f32 %v796, %v988
  %v1053 = vadd.f32 %v797, %v989
  %v1054 = vadd.f32 %v798, %v990
  %v1055 = vadd.f32 %v799, %v991
  %v1056 = vadd.f32 %v800, %v992
  %v1057 = vadd.f32 %v801, %v993
  %v1058 = vadd.f32 %v802, %v994
  %v1059 = vadd.f32 %v803, %v995
  %v1060 = vadd.f32 %v804, %v996
  %v1061 = vadd.f32 %v805, %v997
  %v1062 = vadd.f32 %v806, %v998
  %v1063 = vadd.f32 %v807, %v999
  %v1064 = vadd.f32 %v808, %v1000
  %v1065 = vadd.f32 %v809, %v1001
  %v1066 = vadd.f32 %v810, %v1002
  %v1067 = vadd.f32 %v811, %v1003
  %v1068 = vadd.f32 %v812, %v1004
  %v1069 = vadd.f32 %v813, %v1005
  %v1070 = vadd.f32 %v814, %v1006
  %v1071 = vadd.f32 %v815, %v1007
  %v1072 = vadd.f32 %v816, %v1008
  %v1073 = vadd.f32 %v817, %v1009
  %v1074 = vadd.f32 %v818, %v1010
  %v1075 = vadd.f32 %v819, %v1011
  %v1076 = vadd.f32 %v820, %v1012
  %v1077 = vadd.f32 %v821, %v1013
  %v1078 = vadd.f32 %v822, %v1014
  %v1079 = vadd.f32 %v823, %v1015
  %v1080 = vadd.f32 %v824, %v1016
  %v1081 = vadd.f32 %v825, %v1017
  %v1082 = vadd.f32 %v826, %v1018
  %v1083 = vadd.f32 %v827, %v1019
  %v1084 = vadd.f32 %v828, %v1020
  %v1085 = vadd.f32 %v829, %v1021
  %v1086 = vadd.f32 %v830, %v1022
  %v1087 = vadd.f32 %v831, %v1023
  %v1088 = vmul.f32 %v1024, 0.7978846
  %v1089 = vmul.f32 %v1025, 0.7978846
  %v1090 = vmul.f32 %v1026, 0.7978846
  %v1091 = vmul.f32 %v1027, 0.7978846
  %v1092 = vmul.f32 %v1028, 0.7978846
  %v1093 = vmul.f32 %v1029, 0.7978846
  %v1094 = vmul.f32 %v1030, 0.7978846
  %v1095 = vmul.f32 %v1031, 0.7978846
  %v1096 = vmul.f32 %v1032, 0.7978846
  %v1097 = vmul.f32 %v1033, 0.7978846
  %v1098 = vmul.f32 %v1034, 0.7978846
  %v1099 = vmul.f32 %v1035, 0.7978846
  %v1100 = vmul.f32 %v1036, 0.7978846
  %v1101 = vmul.f32 %v1037, 0.7978846
  %v1102 = vmul.f32 %v1038, 0.7978846
  %v1103 = vmul.f32 %v1039, 0.7978846
  %v1104 = vmul.f32 %v1040, 0.7978846
  %v1105 = vmul.f32 %v1041, 0.7978846
  %v1106 = vmul.f32 %v1042, 0.7978846
  %v1107 = vmul.f32 %v1043, 0.7978846
  %v1108 = vmul.f32 %v1044, 0.7978846
  %v1109 = vmul.f32 %v1045, 0.7978846
  %v1110 = vmul.f32 %v1046, 0.7978846
  %v1111 = vmul.f32 %v1047, 0.7978846
  %v1112 = vmul.f32 %v1048, 0.7978846
  %v1113 = vmul.f32 %v1049, 0.7978846
  %v1114 = vmul.f32 %v1050, 0.7978846
  %v1115 = vmul.f32 %v1051, 0.7978846
  %v1116 = vmul.f32 %v1052, 0.7978846
  %v1117 = vmul.f32 %v1053, 0.7978846
  %v1118 = vmul.f32 %v1054, 0.7978846
  %v1119 = vmul.f32 %v1055, 0.7978846
  %v1120 = vmul.f32 %v1056, 0.7978846
  %v1121 = vmul.f32 %v1057, 0.7978846
  %v1122 = vmul.f32 %v1058, 0.7978846
  %v1123 = vmul.f32 %v1059, 0.7978846
  %v1124 = vmul.f32 %v1060, 0.7978846
  %v1125 = vmul.f32 %v1061, 0.7978846
  %v1126 = vmul.f32 %v1062, 0.7978846
  %v1127 = vmul.f32 %v1063, 0.7978846
  %v1128 = vmul.f32 %v1064, 0.7978846
  %v1129 = vmul.f32 %v1065, 0.7978846
  %v1130 = vmul.f32 %v1066, 0.7978846
  %v1131 = vmul.f32 %v1067, 0.7978846
  %v1132 = vmul.f32 %v1068, 0.7978846
  %v1133 = vmul.f32 %v1069, 0.7978846
  %v1134 = vmul.f32 %v1070, 0.7978846
  %v1135 = vmul.f32 %v1071, 0.7978846
  %v1136 = vmul.f32 %v1072, 0.7978846
  %v1137 = vmul.f32 %v1073, 0.7978846
  %v1138 = vmul.f32 %v1074, 0.7978846
  %v1139 = vmul.f32 %v1075, 0.7978846
  %v1140 = vmul.f32 %v1076, 0.7978846
  %v1141 = vmul.f32 %v1077, 0.7978846
  %v1142 = vmul.f32 %v1078, 0.7978846
  %v1143 = vmul.f32 %v1079, 0.7978846
  %v1144 = vmul.f32 %v1080, 0.7978846
  %v1145 = vmul.f32 %v1081, 0.7978846
  %v1146 = vmul.f32 %v1082, 0.7978846
  %v1147 = vmul.f32 %v1083, 0.7978846
  %v1148 = vmul.f32 %v1084, 0.7978846
  %v1149 = vmul.f32 %v1085, 0.7978846
  %v1150 = vmul.f32 %v1086, 0.7978846
  %v1151 = vmul.f32 %v1087, 0.7978846
  %v1152 = vtanh.pop %v1088
  %v1153 = vtanh.pop %v1089
  %v1154 = vtanh.pop %v1090
  %v1155 = vtanh.pop %v1091
  %v1156 = vtanh.pop %v1092
  %v1157 = vtanh.pop %v1093
  %v1158 = vtanh.pop %v1094
  %v1159 = vtanh.pop %v1095
  %v1160 = vtanh.pop %v1096
  %v1161 = vtanh.pop %v1097
  %v1162 = vtanh.pop %v1098
  %v1163 = vtanh.pop %v1099
  %v1164 = vtanh.pop %v1100
  %v1165 = vtanh.pop %v1101
  %v1166 = vtanh.pop %v1102
  %v1167 = vtanh.pop %v1103
  %v1168 = vtanh.pop %v1104
  %v1169 = vtanh.pop %v1105
  %v1170 = vtanh.pop %v1106
  %v1171 = vtanh.pop %v1107
  %v1172 = vtanh.pop %v1108
  %v1173 = vtanh.pop %v1109
  %v1174 = vtanh.pop %v1110
  %v1175 = vtanh.pop %v1111
  %v1176 = vtanh.pop %v1112
  %v1177 = vtanh.pop %v1113
  %v1178 = vtanh.pop %v1114
  %v1179 = vtanh.pop %v1115
  %v1180 = vtanh.pop %v1116
  %v1181 = vtanh.pop %v1117
  %v1182 = vtanh.pop %v1118
  %v1183 = vtanh.pop %v1119
  %v1184 = vtanh.pop %v1120
  %v1185 = vtanh.pop %v1121
  %v1186 = vtanh.pop %v1122
  %v1187 = vtanh.pop %v1123
  %v1188 = vtanh.pop %v1124
  %v1189 = vtanh.pop %v1125
  %v1190 = vtanh.pop %v1126
  %v1191 = vtanh.pop %v1127
  %v1192 = vtanh.pop %v1128
  %v1193 = vtanh.pop %v1129
  %v1194 = vtanh.pop %v1130
  %v1195 = vtanh.pop %v1131
  %v1196 = vtanh.pop %v1132
  %v1197 = vtanh.pop %v1133
  %v1198 = vtanh.pop %v1134
  %v1199 = vtanh.pop %v1135
  %v1200 = vtanh.pop %v1136
  %v1201 = vtanh.pop %v1137
  %v1202 = vtanh.pop %v1138
  %v1203 = vtanh.pop %v1139
  %v1204 = vtanh.pop %v1140
  %v1205 = vtanh.pop %v1141
  %v1206 = vtanh.pop %v1142
  %v1207 = vtanh.pop %v1143
  %v1208 = vtanh.pop %v1144
  %v1209 = vtanh.pop %v1145
  %v1210 = vtanh.pop %v1146
  %v1211 = vtanh.pop %v1147
  %v1212 = vtanh.pop %v1148
  %v1213 = vtanh.pop %v1149
  %v1214 = vtanh.pop %v1150
  %v1215 = vtanh.pop %v1151
  %v1216 = vadd.f32 %v1152, 1.0
  %v1217 = vadd.f32 %v1153, 1.0
  %v1218 = vadd.f32 %v1154, 1.0
  %v1219 = vadd.f32 %v1155, 1.0
  %v1220 = vadd.f32 %v1156, 1.0
  %v1221 = vadd.f32 %v1157, 1.0
  %v1222 = vadd.f32 %v1158, 1.0
  %v1223 = vadd.f32 %v1159, 1.0
  %v1224 = vadd.f32 %v1160, 1.0
  %v1225 = vadd.f32 %v1161, 1.0
  %v1226 = vadd.f32 %v1162, 1.0
  %v1227 = vadd.f32 %v1163, 1.0
  %v1228 = vadd.f32 %v1164, 1.0
  %v1229 = vadd.f32 %v1165, 1.0
  %v1230 = vadd.f32 %v1166, 1.0
  %v1231 = vadd.f32 %v1167, 1.0
  %v1232 = vadd.f32 %v1168, 1.0
  %v1233 = vadd.f32 %v1169, 1.0
  %v1234 = vadd.f32 %v1170, 1.0
  %v1235 = vadd.f32 %v1171, 1.0
  %v1236 = vadd.f32 %v1172, 1.0
  %v1237 = vadd.f32 %v1173, 1.0
  %v1238 = vadd.f32 %v1174, 1.0
  %v1239 = vadd.f32 %v1175, 1.0
  %v1240 = vadd.f32 %v1176, 1.0
  %v1241 = vadd.f32 %v1177, 1.0
  %v1242 = vadd.f32 %v1178, 1.0
  %v1243 = vadd.f32 %v1179, 1.0
  %v1244 = vadd.f32 %v1180, 1.0
  %v1245 = vadd.f32 %v1181, 1.0
  %v1246 = vadd.f32 %v1182, 1.0
  %v1247 = vadd.f32 %v1183, 1.0
  %v1248 = vadd.f32 %v1184, 1.0
  %v1249 = vadd.f32 %v1185, 1.0
  %v1250 = vadd.f32 %v1186, 1.0
  %v1251 = vadd.f32 %v1187, 1.0
  %v1252 = vadd.f32 %v1188, 1.0
  %v1253 = vadd.f32 %v1189, 1.0
  %v1254 = vadd.f32 %v1190, 1.0
  %v1255 = vadd.f32 %v1191, 1.0
  %v1256 = vadd.f32 %v1192, 1.0
  %v1257 = vadd.f32 %v1193, 1.0
  %v1258 = vadd.f32 %v1194, 1.0
  %v1259 = vadd.f32 %v1195, 1.0
  %v1260 = vadd.f32 %v1196, 1.0
  %v1261 = vadd.f32 %v1197, 1.0
  %v1262 = vadd.f32 %v1198, 1.0
  %v1263 = vadd.f32 %v1199, 1.0
  %v1264 = vadd.f32 %v1200, 1.0
  %v1265 = vadd.f32 %v1201, 1.0
  %v1266 = vadd.f32 %v1202, 1.0
  %v1267 = vadd.f32 %v1203, 1.0
  %v1268 = vadd.f32 %v1204, 1.0
  %v1269 = vadd.f32 %v1205, 1.0
  %v1270 = vadd.f32 %v1206, 1.0
  %v1271 = vadd.f32 %v1207, 1.0
  %v1272 = vadd.f32 %v1208, 1.0
  %v1273 = vadd.f32 %v1209, 1.0
  %v1274 = vadd.f32 %v1210, 1.0
  %v1275 = vadd.f32 %v1211, 1.0
  %v1276 = vadd.f32 %v1212, 1.0
  %v1277 = vadd.f32 %v1213, 1.0
  %v1278 = vadd.f32 %v1214, 1.0
  %v1279 = vadd.f32 %v1215, 1.0
  %v1280 = vmul.f32 %v1216, 0.5
  %v1281 = vmul.f32 %v1217, 0.5
  %v1282 = vmul.f32 %v1218, 0.5
  %v1283 = vmul.f32 %v1219, 0.5
  %v1284 = vmul.f32 %v1220, 0.5
  %v1285 = vmul.f32 %v1221, 0.5
  %v1286 = vmul.f32 %v1222, 0.5
  %v1287 = vmul.f32 %v1223, 0.5
  %v1288 = vmul.f32 %v1224, 0.5
  %v1289 = vmul.f32 %v1225, 0.5
  %v1290 = vmul.f32 %v1226, 0.5
  %v1291 = vmul.f32 %v1227, 0.5
  %v1292 = vmul.f32 %v1228, 0.5
  %v1293 = vmul.f32 %v1229, 0.5
  %v1294 = vmul.f32 %v1230, 0.5
  %v1295 = vmul.f32 %v1231, 0.5
  %v1296 = vmul.f32 %v1232, 0.5
  %v1297 = vmul.f32 %v1233, 0.5
  %v1298 = vmul.f32 %v1234, 0.5
  %v1299 = vmul.f32 %v1235, 0.5
  %v1300 = vmul.f32 %v1236, 0.5
  %v1301 = vmul.f32 %v1237, 0.5
  %v1302 = vmul.f32 %v1238, 0.5
  %v1303 = vmul.f32 %v1239, 0.5
  %v1304 = vmul.f32 %v1240, 0.5
  %v1305 = vmul.f32 %v1241, 0.5
  %v1306 = vmul.f32 %v1242, 0.5
  %v1307 = vmul.f32 %v1243, 0.5
  %v1308 = vmul.f32 %v1244, 0.5
  %v1309 = vmul.f32 %v1245, 0.5
  %v1310 = vmul.f32 %v1246, 0.5
  %v1311 = vmul.f32 %v1247, 0.5
  %v1312 = vmul.f32 %v1248, 0.5
  %v1313 = vmul.f32 %v1249, 0.5
  %v1314 = vmul.f32 %v1250, 0.5
  %v1315 = vmul.f32 %v1251, 0.5
  %v1316 = vmul.f32 %v1252, 0.5
  %v1317 = vmul.f32 %v1253, 0.5
  %v1318 = vmul.f32 %v1254, 0.5
  %v1319 = vmul.f32 %v1255, 0.5
  %v1320 = vmul.f32 %v1256, 0.5
  %v1321 = vmul.f32 %v1257, 0.5
  %v1322 = vmul.f32 %v1258, 0.5
  %v1323 = vmul.f32 %v1259, 0.5
  %v1324 = vmul.f32 %v1260, 0.5
  %v1325 = vmul.f32 %v1261, 0.5
  %v1326 = vmul.f32 %v1262, 0.5
  %v1327 = vmul.f32 %v1263, 0.5
  %v1328 = vmul.f32 %v1264, 0.5
  %v1329 = vmul.f32 %v1265, 0.5
  %v1330 = vmul.f32 %v1266, 0.5
  %v1331 = vmul.f32 %v1267, 0.5
  %v1332 = vmul.f32 %v1268, 0.5
  %v1333 = vmul.f32 %v1269, 0.5
  %v1334 = vmul.f32 %v1270, 0.5
  %v1335 = vmul.f32 %v1271, 0.5
  %v1336 = vmul.f32 %v1272, 0.5
  %v1337 = vmul.f32 %v1273, 0.5
  %v1338 = vmul.f32 %v1274, 0.5
  %v1339 = vmul.f32 %v1275, 0.5
  %v1340 = vmul.f32 %v1276, 0.5
  %v1341 = vmul.f32 %v1277, 0.5
  %v1342 = vmul.f32 %v1278, 0.5
  %v1343 = vmul.f32 %v1279, 0.5
  %v1344 = vmul.f32 %v768, %v1280
  %v1345 = vmul.f32 %v769, %v1281
  %v1346 = vmul.f32 %v770, %v1282
  %v1347 = vmul.f32 %v771, %v1283
  %v1348 = vmul.f32 %v772, %v1284
  %v1349 = vmul.f32 %v773, %v1285
  %v1350 = vmul.f32 %v774, %v1286
  %v1351 = vmul.f32 %v775, %v1287
  %v1352 = vmul.f32 %v776, %v1288
  %v1353 = vmul.f32 %v777, %v1289
  %v1354 = vmul.f32 %v778, %v1290
  %v1355 = vmul.f32 %v779, %v1291
  %v1356 = vmul.f32 %v780, %v1292
  %v1357 = vmul.f32 %v781, %v1293
  %v1358 = vmul.f32 %v782, %v1294
  %v1359 = vmul.f32 %v783, %v1295
  %v1360 = vmul.f32 %v784, %v1296
  %v1361 = vmul.f32 %v785, %v1297
  %v1362 = vmul.f32 %v786, %v1298
  %v1363 = vmul.f32 %v787, %v1299
  %v1364 = vmul.f32 %v788, %v1300
  %v1365 = vmul.f32 %v789, %v1301
  %v1366 = vmul.f32 %v790, %v1302
  %v1367 = vmul.f32 %v791, %v1303
  %v1368 = vmul.f32 %v792, %v1304
  %v1369 = vmul.f32 %v793, %v1305
  %v1370 = vmul.f32 %v794, %v1306
  %v1371 = vmul.f32 %v795, %v1307
  %v1372 = vmul.f32 %v796, %v1308
  %v1373 = vmul.f32 %v797, %v1309
  %v1374 = vmul.f32 %v798, %v1310
  %v1375 = vmul.f32 %v799, %v1311
  %v1376 = vmul.f32 %v800, %v1312
  %v1377 = vmul.f32 %v801, %v1313
  %v1378 = vmul.f32 %v802, %v1314
  %v1379 = vmul.f32 %v803, %v1315
  %v1380 = vmul.f32 %v804, %v1316
  %v1381 = vmul.f32 %v805, %v1317
  %v1382 = vmul.f32 %v806, %v1318
  %v1383 = vmul.f32 %v807, %v1319
  %v1384 = vmul.f32 %v808, %v1320
  %v1385 = vmul.f32 %v809, %v1321
  %v1386 = vmul.f32 %v810, %v1322
  %v1387 = vmul.f32 %v811, %v1323
  %v1388 = vmul.f32 %v812, %v1324
  %v1389 = vmul.f32 %v813, %v1325
  %v1390 = vmul.f32 %v814, %v1326
  %v1391 = vmul.f32 %v815, %v1327
  %v1392 = vmul.f32 %v816, %v1328
  %v1393 = vmul.f32 %v817, %v1329
  %v1394 = vmul.f32 %v818, %v1330
  %v1395 = vmul.f32 %v819, %v1331
  %v1396 = vmul.f32 %v820, %v1332
  %v1397 = vmul.f32 %v821, %v1333
  %v1398 = vmul.f32 %v822, %v1334
  %v1399 = vmul.f32 %v823, %v1335
  %v1400 = vmul.f32 %v824, %v1336
  %v1401 = vmul.f32 %v825, %v1337
  %v1402 = vmul.f32 %v826, %v1338
  %v1403 = vmul.f32 %v827, %v1339
  %v1404 = vmul.f32 %v828, %v1340
  %v1405 = vmul.f32 %v829, %v1341
  %v1406 = vmul.f32 %v830, %v1342
  %v1407 = vmul.f32 %v831, %v1343
  %v1408 = vpack.c.bf16 %v1345, %v1344
  %v1409 = vpack.c.bf16 %v1347, %v1346
  %v1410 = vpack.c.bf16 %v1349, %v1348
  %v1411 = vpack.c.bf16 %v1351, %v1350
  %v1412 = vpack.c.bf16 %v1353, %v1352
  %v1413 = vpack.c.bf16 %v1355, %v1354
  %v1414 = vpack.c.bf16 %v1357, %v1356
  %v1415 = vpack.c.bf16 %v1359, %v1358
  %v1416 = vpack.c.bf16 %v1361, %v1360
  %v1417 = vpack.c.bf16 %v1363, %v1362
  %v1418 = vpack.c.bf16 %v1365, %v1364
  %v1419 = vpack.c.bf16 %v1367, %v1366
  %v1420 = vpack.c.bf16 %v1369, %v1368
  %v1421 = vpack.c.bf16 %v1371, %v1370
  %v1422 = vpack.c.bf16 %v1373, %v1372
  %v1423 = vpack.c.bf16 %v1375, %v1374
  %v1424 = vpack.c.bf16 %v1377, %v1376
  %v1425 = vpack.c.bf16 %v1379, %v1378
  %v1426 = vpack.c.bf16 %v1381, %v1380
  %v1427 = vpack.c.bf16 %v1383, %v1382
  %v1428 = vpack.c.bf16 %v1385, %v1384
  %v1429 = vpack.c.bf16 %v1387, %v1386
  %v1430 = vpack.c.bf16 %v1389, %v1388
  %v1431 = vpack.c.bf16 %v1391, %v1390
  %v1432 = vpack.c.bf16 %v1393, %v1392
  %v1433 = vpack.c.bf16 %v1395, %v1394
  %v1434 = vpack.c.bf16 %v1397, %v1396
  %v1435 = vpack.c.bf16 %v1399, %v1398
  %v1436 = vpack.c.bf16 %v1401, %v1400
  %v1437 = vpack.c.bf16 %v1403, %v1402
  %v1438 = vpack.c.bf16 %v1405, %v1404
  %v1439 = vpack.c.bf16 %v1407, %v1406
  %v1472 = vunpack.c.l.b16 %v1408
  %v1473 = vunpack.c.h.b16 %v1408
  %v1474 = vunpack.c.l.b16 %v1409
  %v1475 = vunpack.c.h.b16 %v1409
  %v1476 = vunpack.c.l.b16 %v1410
  %v1477 = vunpack.c.h.b16 %v1410
  %v1478 = vunpack.c.l.b16 %v1411
  %v1479 = vunpack.c.h.b16 %v1411
  %v1480 = vunpack.c.l.b16 %v1412
  %v1481 = vunpack.c.h.b16 %v1412
  %v1482 = vunpack.c.l.b16 %v1413
  %v1483 = vunpack.c.h.b16 %v1413
  %v1484 = vunpack.c.l.b16 %v1414
  %v1485 = vunpack.c.h.b16 %v1414
  %v1486 = vunpack.c.l.b16 %v1415
  %v1487 = vunpack.c.h.b16 %v1415
  %v1488 = vunpack.c.l.b16 %v1416
  %v1489 = vunpack.c.h.b16 %v1416
  %v1490 = vunpack.c.l.b16 %v1417
  %v1491 = vunpack.c.h.b16 %v1417
  %v1492 = vunpack.c.l.b16 %v1418
  %v1493 = vunpack.c.h.b16 %v1418
  %v1494 = vunpack.c.l.b16 %v1419
  %v1495 = vunpack.c.h.b16 %v1419
  %v1496 = vunpack.c.l.b16 %v1420
  %v1497 = vunpack.c.h.b16 %v1420
  %v1498 = vunpack.c.l.b16 %v1421
  %v1499 = vunpack.c.h.b16 %v1421
  %v1500 = vunpack.c.l.b16 %v1422
  %v1501 = vunpack.c.h.b16 %v1422
  %v1502 = vunpack.c.l.b16 %v1423
  %v1503 = vunpack.c.h.b16 %v1423
  %v1504 = vunpack.c.l.b16 %v1424
  %v1505 = vunpack.c.h.b16 %v1424
  %v1506 = vunpack.c.l.b16 %v1425
  %v1507 = vunpack.c.h.b16 %v1425
  %v1508 = vunpack.c.l.b16 %v1426
  %v1509 = vunpack.c.h.b16 %v1426
  %v1510 = vunpack.c.l.b16 %v1427
  %v1511 = vunpack.c.h.b16 %v1427
  %v1512 = vunpack.c.l.b16 %v1428
  %v1513 = vunpack.c.h.b16 %v1428
  %v1514 = vunpack.c.l.b16 %v1429
  %v1515 = vunpack.c.h.b16 %v1429
  %v1516 = vunpack.c.l.b16 %v1430
  %v1517 = vunpack.c.h.b16 %v1430
  %v1518 = vunpack.c.l.b16 %v1431
  %v1519 = vunpack.c.h.b16 %v1431
  %v1520 = vunpack.c.l.b16 %v1432
  %v1521 = vunpack.c.h.b16 %v1432
  %v1522 = vunpack.c.l.b16 %v1433
  %v1523 = vunpack.c.h.b16 %v1433
  %v1524 = vunpack.c.l.b16 %v1434
  %v1525 = vunpack.c.h.b16 %v1434
  %v1526 = vunpack.c.l.b16 %v1435
  %v1527 = vunpack.c.h.b16 %v1435
  %v1528 = vunpack.c.l.b16 %v1436
  %v1529 = vunpack.c.h.b16 %v1436
  %v1530 = vunpack.c.l.b16 %v1437
  %v1531 = vunpack.c.h.b16 %v1437
  %v1532 = vunpack.c.l.b16 %v1438
  %v1533 = vunpack.c.h.b16 %v1438
  %v1534 = vunpack.c.l.b16 %v1439
  %v1535 = vunpack.c.h.b16 %v1439
  %v1536 = vpack.c.b16 %v1472, %v1472
  %v1537 = vpack.c.b16 %v1473, %v1473
  %v1538 = vpack.c.b16 %v1474, %v1474
  %v1539 = vpack.c.b16 %v1475, %v1475
  %v1540 = vpack.c.b16 %v1476, %v1476
  %v1541 = vpack.c.b16 %v1477, %v1477
  %v1542 = vpack.c.b16 %v1478, %v1478
  %v1543 = vpack.c.b16 %v1479, %v1479
  %v1544 = vpack.c.b16 %v1480, %v1480
  %v1545 = vpack.c.b16 %v1481, %v1481
  %v1546 = vpack.c.b16 %v1482, %v1482
  %v1547 = vpack.c.b16 %v1483, %v1483
  %v1548 = vpack.c.b16 %v1484, %v1484
  %v1549 = vpack.c.b16 %v1485, %v1485
  %v1550 = vpack.c.b16 %v1486, %v1486
  %v1551 = vpack.c.b16 %v1487, %v1487
  %v1552 = vpack.c.b16 %v1488, %v1488
  %v1553 = vpack.c.b16 %v1489, %v1489
  %v1554 = vpack.c.b16 %v1490, %v1490
  %v1555 = vpack.c.b16 %v1491, %v1491
  %v1556 = vpack.c.b16 %v1492, %v1492
  %v1557 = vpack.c.b16 %v1493, %v1493
  %v1558 = vpack.c.b16 %v1494, %v1494
  %v1559 = vpack.c.b16 %v1495, %v1495
  %v1560 = vpack.c.b16 %v1496, %v1496
  %v1561 = vpack.c.b16 %v1497, %v1497
  %v1562 = vpack.c.b16 %v1498, %v1498
  %v1563 = vpack.c.b16 %v1499, %v1499
  %v1564 = vpack.c.b16 %v1500, %v1500
  %v1565 = vpack.c.b16 %v1501, %v1501
  %v1566 = vpack.c.b16 %v1502, %v1502
  %v1567 = vpack.c.b16 %v1503, %v1503
  %v1568 = vpack.c.b16 %v1504, %v1504
  %v1569 = vpack.c.b16 %v1505, %v1505
  %v1570 = vpack.c.b16 %v1506, %v1506
  %v1571 = vpack.c.b16 %v1507, %v1507
  %v1572 = vpack.c.b16 %v1508, %v1508
  %v1573 = vpack.c.b16 %v1509, %v1509
  %v1574 = vpack.c.b16 %v1510, %v1510
  %v1575 = vpack.c.b16 %v1511, %v1511
  %v1576 = vpack.c.b16 %v1512, %v1512
  %v1577 = vpack.c.b16 %v1513, %v1513
  %v1578 = vpack.c.b16 %v1514, %v1514
  %v1579 = vpack.c.b16 %v1515, %v1515
  %v1580 = vpack.c.b16 %v1516, %v1516
  %v1581 = vpack.c.b16 %v1517, %v1517
  %v1582 = vpack.c.b16 %v1518, %v1518
  %v1583 = vpack.c.b16 %v1519, %v1519
  %v1584 = vpack.c.b16 %v1520, %v1520
  %v1585 = vpack.c.b16 %v1521, %v1521
  %v1586 = vpack.c.b16 %v1522, %v1522
  %v1587 = vpack.c.b16 %v1523, %v1523
  %v1588 = vpack.c.b16 %v1524, %v1524
  %v1589 = vpack.c.b16 %v1525, %v1525
  %v1590 = vpack.c.b16 %v1526, %v1526
  %v1591 = vpack.c.b16 %v1527, %v1527
  %v1592 = vpack.c.b16 %v1528, %v1528
  %v1593 = vpack.c.b16 %v1529, %v1529
  %v1594 = vpack.c.b16 %v1530, %v1530
  %v1595 = vpack.c.b16 %v1531, %v1531
  %v1596 = vpack.c.b16 %v1532, %v1532
  %v1597 = vpack.c.b16 %v1533, %v1533
  %v1598 = vpack.c.b16 %v1534, %v1534
  %v1599 = vpack.c.b16 %v1535, %v1535
  %vm1664 = vcmask 60416
  %1665 = vst.msk [vmem:[%s4] sm:$0xf] %vm1664, %v1536
  %1666 = vst.msk [vmem:[%s4 + $0x4] sm:$0xf] %vm1664, %v1537
  %1667 = vst.msk [vmem:[%s4 + $0x8] sm:$0xf] %vm1664, %v1538
  %1668 = vst.msk [vmem:[%s4 + $0xc] sm:$0xf] %vm1664, %v1539
  %1669 = vst.msk [vmem:[%s4 + $0x10] sm:$0xf] %vm1664, %v1540
  %1670 = vst.msk [vmem:[%s4 + $0x14] sm:$0xf] %vm1664, %v1541
  %1671 = vst.msk [vmem:[%s4 + $0x18] sm:$0xf] %vm1664, %v1542
  %1672 = vst.msk [vmem:[%s4 + $0x1c] sm:$0xf] %vm1664, %v1543
  %1673 = vst.msk [vmem:[%s4 + $0x20] sm:$0xf] %vm1664, %v1544
  %1674 = vst.msk [vmem:[%s4 + $0x24] sm:$0xf] %vm1664, %v1545
  %1675 = vst.msk [vmem:[%s4 + $0x28] sm:$0xf] %vm1664, %v1546
  %1676 = vst.msk [vmem:[%s4 + $0x2c] sm:$0xf] %vm1664, %v1547
  %1677 = vst.msk [vmem:[%s4 + $0x30] sm:$0xf] %vm1664, %v1548
  %1678 = vst.msk [vmem:[%s4 + $0x34] sm:$0xf] %vm1664, %v1549
  %1679 = vst.msk [vmem:[%s4 + $0x38] sm:$0xf] %vm1664, %v1550
  %1680 = vst.msk [vmem:[%s4 + $0x3c] sm:$0xf] %vm1664, %v1551
  %1681 = vst.msk [vmem:[%s4 + $0x40] sm:$0xf] %vm1664, %v1552
  %1682 = vst.msk [vmem:[%s4 + $0x44] sm:$0xf] %vm1664, %v1553
  %1683 = vst.msk [vmem:[%s4 + $0x48] sm:$0xf] %vm1664, %v1554
  %1684 = vst.msk [vmem:[%s4 + $0x4c] sm:$0xf] %vm1664, %v1555
  %1685 = vst.msk [vmem:[%s4 + $0x50] sm:$0xf] %vm1664, %v1556
  %1686 = vst.msk [vmem:[%s4 + $0x54] sm:$0xf] %vm1664, %v1557
  %1687 = vst.msk [vmem:[%s4 + $0x58] sm:$0xf] %vm1664, %v1558
  %1688 = vst.msk [vmem:[%s4 + $0x5c] sm:$0xf] %vm1664, %v1559
  %1689 = vst.msk [vmem:[%s4 + $0x60] sm:$0xf] %vm1664, %v1560
  %1690 = vst.msk [vmem:[%s4 + $0x64] sm:$0xf] %vm1664, %v1561
  %1691 = vst.msk [vmem:[%s4 + $0x68] sm:$0xf] %vm1664, %v1562
  %1692 = vst.msk [vmem:[%s4 + $0x6c] sm:$0xf] %vm1664, %v1563
  %1693 = vst.msk [vmem:[%s4 + $0x70] sm:$0xf] %vm1664, %v1564
  %1694 = vst.msk [vmem:[%s4 + $0x74] sm:$0xf] %vm1664, %v1565
  %1695 = vst.msk [vmem:[%s4 + $0x78] sm:$0xf] %vm1664, %v1566
  %1696 = vst.msk [vmem:[%s4 + $0x7c] sm:$0xf] %vm1664, %v1567
  %1697 = vst.msk [vmem:[%s4 + $0x80] sm:$0xf] %vm1664, %v1568
  %1698 = vst.msk [vmem:[%s4 + $0x84] sm:$0xf] %vm1664, %v1569
  %1699 = vst.msk [vmem:[%s4 + $0x88] sm:$0xf] %vm1664, %v1570
  %1700 = vst.msk [vmem:[%s4 + $0x8c] sm:$0xf] %vm1664, %v1571
  %1701 = vst.msk [vmem:[%s4 + $0x90] sm:$0xf] %vm1664, %v1572
  %1702 = vst.msk [vmem:[%s4 + $0x94] sm:$0xf] %vm1664, %v1573
  %1703 = vst.msk [vmem:[%s4 + $0x98] sm:$0xf] %vm1664, %v1574
  %1704 = vst.msk [vmem:[%s4 + $0x9c] sm:$0xf] %vm1664, %v1575
  %1705 = vst.msk [vmem:[%s4 + $0xa0] sm:$0xf] %vm1664, %v1576
  %1706 = vst.msk [vmem:[%s4 + $0xa4] sm:$0xf] %vm1664, %v1577
  %1707 = vst.msk [vmem:[%s4 + $0xa8] sm:$0xf] %vm1664, %v1578
  %1708 = vst.msk [vmem:[%s4 + $0xac] sm:$0xf] %vm1664, %v1579
  %1709 = vst.msk [vmem:[%s4 + $0xb0] sm:$0xf] %vm1664, %v1580
  %1710 = vst.msk [vmem:[%s4 + $0xb4] sm:$0xf] %vm1664, %v1581
  %1711 = vst.msk [vmem:[%s4 + $0xb8] sm:$0xf] %vm1664, %v1582
  %1712 = vst.msk [vmem:[%s4 + $0xbc] sm:$0xf] %vm1664, %v1583
  %1713 = vst.msk [vmem:[%s4 + $0xc0] sm:$0xf] %vm1664, %v1584
  %1714 = vst.msk [vmem:[%s4 + $0xc4] sm:$0xf] %vm1664, %v1585
  %1715 = vst.msk [vmem:[%s4 + $0xc8] sm:$0xf] %vm1664, %v1586
  %1716 = vst.msk [vmem:[%s4 + $0xcc] sm:$0xf] %vm1664, %v1587
  %1717 = vst.msk [vmem:[%s4 + $0xd0] sm:$0xf] %vm1664, %v1588
  %1718 = vst.msk [vmem:[%s4 + $0xd4] sm:$0xf] %vm1664, %v1589
  %1719 = vst.msk [vmem:[%s4 + $0xd8] sm:$0xf] %vm1664, %v1590
  %1720 = vst.msk [vmem:[%s4 + $0xdc] sm:$0xf] %vm1664, %v1591
  %1721 = vst.msk [vmem:[%s4 + $0xe0] sm:$0xf] %vm1664, %v1592
  %1722 = vst.msk [vmem:[%s4 + $0xe4] sm:$0xf] %vm1664, %v1593
  %1723 = vst.msk [vmem:[%s4 + $0xe8] sm:$0xf] %vm1664, %v1594
  %1724 = vst.msk [vmem:[%s4 + $0xec] sm:$0xf] %vm1664, %v1595
  %1725 = vst.msk [vmem:[%s4 + $0xf0] sm:$0xf] %vm1664, %v1596
  %1726 = vst.msk [vmem:[%s4 + $0xf4] sm:$0xf] %vm1664, %v1597
  %1727 = vst.msk [vmem:[%s4 + $0xf8] sm:$0xf] %vm1664, %v1598
  %1728 = vst.msk [vmem:[%s4 + $0xfc] sm:$0xf] %vm1664, %v1599
  // Predicated region
  $region18: #{_lambda_.11} parent=0 // pred_check
    _
  $region19: #{_lambda_.11} parent=0 // pred_check_branch
    %1730 = sbr.rel (0) target = $region21
  $region20: #{_lambda_.11} parent=0 // pred_region
    _
  $region21: #{_lambda_.11} parent=0 // pred_fallthru
    _
  // Predicated region
  $region22: #{_lambda_.11} parent=0 // pred_check
    _
  $region23: #{_lambda_.11} parent=0 // pred_check_branch
    %1732 = sbr.rel (0) target = $region25
  $region24: #{_lambda_.11} parent=0 // pred_region
    _
  $region25: #{_lambda_.11} parent=0 // pred_fallthru
    _

</llo_original>
